<compile_context>
chip_gen: v7x
topology: tpu7x:2x2x1
jax: 0.10.0
libtpu: 0.0.40
codegen_flags: <defaults>
</compile_context>

<pallas_src>
import functools

import jax
import jax.numpy as jnp
from jax import lax
from jax.experimental import pallas as pl
from jax.experimental.pallas import tpu as pltpu

_BN_EPS = 1e-5


# --------------------------------------------------------------------------
# In-kernel tap accumulation (wide-tap): for tap (phase p, oh, ow) the slab
#   x[p, oh*wq + ow : oh*wq + ow + ho*wq, :]
# covers every valid output position (junk in the out-of-range columns is
# discarded by the wrapper), so each tap is one contiguous matmul.
# --------------------------------------------------------------------------
def _accumulate_taps(x_ref, w_ref, taps, wq, ho, cout):
    m = ho * wq                                   # "wide" output rows
    acc = jnp.zeros((m, cout), jnp.float32)
    for t, (p, oh, ow) in enumerate(taps):        # static python unroll
        start = oh * wq + ow
        lhs = x_ref[0, p, start:start + m, :]     # (m, cin), unit stride
        acc = acc + jnp.dot(lhs, w_ref[t], preferred_element_type=jnp.float32)
    return acc


def _conv_kernel(x_ref, w_ref, b_ref, *rest, taps, wq, ho, cout,
                 apply_relu, has_residual):
    """conv (tap accumulation) + folded-BN bias [+ residual] [+ ReLU]."""
    if has_residual:
        r_ref, o_ref = rest
    else:
        (o_ref,) = rest
    acc = _accumulate_taps(x_ref, w_ref, taps, wq, ho, cout)
    acc = acc + b_ref[...]                          # (1, cout) broadcast, f32
    if has_residual:
        acc = acc + r_ref[0].astype(jnp.float32)
    if apply_relu:
        acc = jnp.maximum(acc, 0.0)
    o_ref[0] = acc.astype(o_ref.dtype)


def _conv_dual_kernel(x_ref, w_ref, b_ref, wd_ref, bd_ref, o_ref, od_ref, *,
                      taps, tap_ds, wq, ho, cout):
    """cv1 (3x3 + BN + ReLU) and the 1x1 strided downsample (+ BN), fused:
    both read the same activation block, so the input is read once."""
    acc = _accumulate_taps(x_ref, w_ref, taps, wq, ho, cout)
    o_ref[0] = jnp.maximum(acc + b_ref[...], 0.0).astype(o_ref.dtype)
    accd = _accumulate_taps(x_ref, wd_ref, tap_ds, wq, ho, cout)
    od_ref[0] = (accd + bd_ref[...]).astype(od_ref.dtype)


# --------------------------------------------------------------------------
# pallas_call wrappers
# --------------------------------------------------------------------------
def _compiler_params():
    return pltpu.CompilerParams(dimension_semantics=("parallel",))


def conv_bn_act(xq, wmat, bias, *, taps, ho, wq, apply_relu,
                residual=None, out_dtype=jnp.bfloat16):
    """relu?(conv(xq, wmat) + bias [+ residual]) with per-image grid blocks.
    Output is in the 'wide' layout (N, ho*wq, Cout)."""
    N, P, Mi, Cin = xq.shape
    ntaps, _, Cout = wmat.shape
    m = ho * wq
    kernel = functools.partial(
        _conv_kernel, taps=tuple(taps), wq=wq, ho=ho, cout=Cout,
        apply_relu=apply_relu, has_residual=residual is not None)

    in_specs = [
        pl.BlockSpec((1, P, Mi, Cin), lambda n: (n, 0, 0, 0)),      # activations
        pl.BlockSpec((ntaps, Cin, Cout), lambda n: (0, 0, 0)),      # resident weights
        pl.BlockSpec((1, Cout), lambda n: (0, 0)),                  # folded-BN bias
    ]
    args = [xq, wmat, bias]
    if residual is not None:
        in_specs.append(pl.BlockSpec((1, m, Cout), lambda n: (n, 0, 0)))
        args.append(residual)

    in_bytes = sum(int(a.size) * a.dtype.itemsize for a in args)
    out_bytes = N * m * Cout * jnp.dtype(out_dtype).itemsize
    return pl.pallas_call(
        kernel,
        out_shape=jax.ShapeDtypeStruct((N, m, Cout), out_dtype),
        grid=(N,),
        in_specs=in_specs,
        out_specs=pl.BlockSpec((1, m, Cout), lambda n: (n, 0, 0)),
        compiler_params=_compiler_params(),
        cost_estimate=pl.CostEstimate(
            flops=2 * N * m * Cin * Cout * ntaps,
            transcendentals=0,
            bytes_accessed=int(in_bytes + out_bytes)),
    )(*args)


def conv_bn_relu_with_downsample(xq, wmat, bias, wd, bd, *, taps, tap_ds, ho, wq):
    """cv1 + BN + ReLU and the fused 1x1 strided downsample + BN (residual)."""
    N, P, Mi, Cin = xq.shape
    ntaps, _, Cout = wmat.shape
    m = ho * wq
    kernel = functools.partial(
        _conv_dual_kernel, taps=tuple(taps), tap_ds=tuple(tap_ds),
        wq=wq, ho=ho, cout=Cout)

    in_bytes = sum(int(a.size) * a.dtype.itemsize for a in (xq, wmat, bias, wd, bd))
    out_bytes = N * m * Cout * (2 + 4)     # bf16 main + f32 residual
    return pl.pallas_call(
        kernel,
        out_shape=(jax.ShapeDtypeStruct((N, m, Cout), jnp.bfloat16),   # cv1 out
                   jax.ShapeDtypeStruct((N, m, Cout), jnp.float32)),   # residual
        grid=(N,),
        in_specs=[
            pl.BlockSpec((1, P, Mi, Cin), lambda n: (n, 0, 0, 0)),
            pl.BlockSpec((ntaps, Cin, Cout), lambda n: (0, 0, 0)),
            pl.BlockSpec((1, Cout), lambda n: (0, 0)),
            pl.BlockSpec((1, Cin, Cout), lambda n: (0, 0, 0)),
            pl.BlockSpec((1, Cout), lambda n: (0, 0)),
        ],
        out_specs=(pl.BlockSpec((1, m, Cout), lambda n: (n, 0, 0)),
                   pl.BlockSpec((1, m, Cout), lambda n: (n, 0, 0))),
        compiler_params=_compiler_params(),
        cost_estimate=pl.CostEstimate(
            flops=2 * N * m * Cin * Cout * (ntaps + 1),
            transcendentals=0,
            bytes_accessed=int(in_bytes + out_bytes)),
    )(xq, wmat, bias, wd, bd)


# --------------------------------------------------------------------------
# Wrapper-side layout glue (one cheap pass over the activation, no 9x blow-up)
# --------------------------------------------------------------------------
def build_phase_input(x_nhwc, ksize, stride, pad):
    """Pad + space-to-depth + flatten spatial, so conv tap (dh, dw) is the
    contiguous slab  xq[n, (dh%s)*s+(dw%s), (dh//s)*wq+(dw//s) : +ho*wq, :]."""
    N, H, W, C = x_nhwc.shape
    ho = (H + 2 * pad - ksize) // stride + 1
    wo = (W + 2 * pad - ksize) // stride + 1
    hq = ho + (ksize - 1) // stride + 1     # +1 row keeps wide slabs in-bounds
    wq = wo + (ksize - 1) // stride
    xp = jnp.pad(x_nhwc, ((0, 0),
                          (pad, stride * hq - H - pad),
                          (pad, stride * wq - W - pad),
                          (0, 0)))
    xq = xp.reshape(N, hq, stride, wq, stride, C)
    xq = jnp.transpose(xq, (0, 2, 4, 1, 3, 5))           # (N, s, s, hq, wq, C)
    xq = xq.reshape(N, stride * stride, hq * wq, C)
    return xq, ho, wo, wq


def make_taps(ksize, stride):
    taps = []
    for dh in range(ksize):
        for dw in range(ksize):
            taps.append(((dh % stride) * stride + (dw % stride),
                         dh // stride, dw // stride))
    return taps


def to_wide(x_nhwc, wq):
    """(N, H, W, C) -> (N, H*wq, C), zero-padding columns [W, wq)."""
    N, H, W, C = x_nhwc.shape
    xp = jnp.pad(x_nhwc, ((0, 0), (0, 0), (0, wq - W), (0, 0)))
    return xp.reshape(N, H * wq, C)


def from_wide(o_wide, ho, wq, wo, cout):
    """(N, ho*wq, C) -> (N, ho, wo, C): drop the junk columns."""
    N = o_wide.shape[0]
    return o_wide.reshape(N, ho, wq, cout)[:, :, :wo, :]


def make_conv_bn_params(key, cin, cout, kernel):
    k1, k2, k3, k4, k5 = jax.random.split(key, 5)
    return dict(
        w=jax.random.normal(k1, (cout, cin, kernel, kernel), jnp.float32) * 0.1,
        gamma=jax.random.uniform(k2, (cout,), jnp.float32, 0.5, 1.5),
        beta=jax.random.normal(k3, (cout,), jnp.float32) * 0.1,
        mean=jax.random.normal(k4, (cout,), jnp.float32) * 0.1,
        var=jax.random.uniform(k5, (cout,), jnp.float32, 0.5, 1.5),
    )


def fold_bn(p):
    """Fold eval-mode BN into the conv; return (ntaps, Cin, Cout) bf16 + f32 bias."""
    scale = p["gamma"] / jnp.sqrt(p["var"] + _BN_EPS)
    wf = p["w"] * scale[:, None, None, None]               # (O, I, kh, kw)
    bf = p["beta"] - p["mean"] * scale                     # (O,)
    O, I, kh, kw = wf.shape
    wmat = jnp.transpose(wf, (2, 3, 1, 0)).reshape(kh * kw, I, O)
    return wmat.astype(jnp.bfloat16), bf.reshape(1, O).astype(jnp.float32)


# --------------------------------------------------------------------------
# BasicBlock forward (Pallas)
# --------------------------------------------------------------------------
def basic_block_forward(x_nchw, p_cv1, p_cv2, p_down, *, stride):
    N, c_in, H, W = x_nchw.shape
    x = jnp.transpose(x_nchw, (0, 2, 3, 1)).astype(jnp.bfloat16)   # NHWC bf16

    w1, b1 = fold_bn(p_cv1)
    w2, b2 = fold_bn(p_cv2)
    cout = w1.shape[-1]

    # Shared padded / phase layout for cv1 and the strided 1x1 downsample.
    xq1, ho, wo, wq1 = build_phase_input(x, 3, stride, 1)
    taps1 = make_taps(3, stride)

    if p_down is not None:
        wd, bd = fold_bn(p_down)
        # Original pixel (s*h, s*w) sits at padded coord (s*h+1, s*w+1) -> tap (1,1).
        tap_ds = (((1 % stride) * stride + (1 % stride), 1 // stride, 1 // stride),)
        o1w, resw = conv_bn_relu_with_downsample(
            xq1, w1, b1, wd, bd, taps=taps1, tap_ds=tap_ds, ho=ho, wq=wq1)
        residual = from_wide(resw, ho, wq1, wo, cout)          # f32 (N,ho,wo,cout)
    else:
        # Identity residual is only valid for stride == 1 and c_in == c_out.
        assert stride == 1 and c_in == cout, \
            "identity residual requires stride == 1 and in_channel == out_channel"
        o1w = conv_bn_act(xq1, w1, b1, taps=taps1, ho=ho, wq=wq1,
                          apply_relu=True, out_dtype=jnp.bfloat16)
        residual = x.astype(jnp.float32)                       # (N,H,W,C)
    o1 = from_wide(o1w, ho, wq1, wo, cout)                     # bf16 (N,ho,wo,cout)

    # cv2: 3x3 stride 1 pad 1 + BN, fused residual add + ReLU.
    xq2, ho2, wo2, wq2 = build_phase_input(o1, 3, 1, 1)
    res_wide = to_wide(residual, wq2)                          # (N, ho*wq2, cout)
    o2w = conv_bn_act(xq2, w2, b2, taps=make_taps(3, 1), ho=ho2, wq=wq2,
                      apply_relu=True, residual=res_wide, out_dtype=jnp.float32)
    out = from_wide(o2w, ho2, wq2, wo2, cout)                  # (N, ho, wo, cout) f32
    return jnp.transpose(out, (0, 3, 1, 2))                    # back to NCHW


# --------------------------------------------------------------------------
# Pure-JAX reference (f32 lax conv) for validation
# --------------------------------------------------------------------------
def _ref_conv_bn(x, p, stride, padding, relu):
    y = lax.conv_general_dilated(
        x, p["w"], (stride, stride),
        [(padding, padding), (padding, padding)],
        dimension_numbers=("NCHW", "OIHW", "NCHW"))
    scale = p["gamma"] / jnp.sqrt(p["var"] + _BN_EPS)
    y = y * scale[None, :, None, None] + (p["beta"] - p["mean"] * scale)[None, :, None, None]
    return jnp.maximum(y, 0.0) if relu else y


def ref_basic_block(x, p_cv1, p_cv2, p_down, stride):
    out = _ref_conv_bn(x, p_cv1, stride, 1, True)
    out = _ref_conv_bn(out, p_cv2, 1, 1, False)
    residual = _ref_conv_bn(x, p_down, stride, 0, False) if p_down is not None else x
    return jnp.maximum(out + residual, 0.0)


# --------------------------------------------------------------------------
if __name__ == "__main__":
    key = jax.random.PRNGKey(0)
    kx, k1, k2, kd, kx2, k12, k22 = jax.random.split(key, 7)

    # --- config 1: stride-2 block with 1x1 downsample (channel change) ---
    in_c, out_c, stride = 4, 8, 2
    x = jax.random.normal(kx, (2, in_c, 16, 16), jnp.float32)
    p_cv1 = make_conv_bn_params(k1, in_c, out_c, 3)
    p_cv2 = make_conv_bn_params(k2, out_c, out_c, 3)
    p_down = make_conv_bn_params(kd, in_c, out_c, 1)

    fwd = jax.jit(functools.partial(basic_block_forward, stride=stride))
    out = jax.block_until_ready(fwd(x, p_cv1, p_cv2, p_down))
    ref = jax.block_until_ready(ref_basic_block(x, p_cv1, p_cv2, p_down, stride))
    assert out.shape == ref.shape == (2, out_c, 8, 8)
    assert jnp.allclose(out, ref, rtol=3e-2, atol=3e-2), \
        f"max abs err {jnp.max(jnp.abs(out - ref))}"

    # --- config 2: identity residual (stride 1, in_channel == out_channel) ---
    c = 8
    x2 = jax.random.normal(kx2, (2, c, 16, 16), jnp.float32)
    q_cv1 = make_conv_bn_params(k12, c, c, 3)
    q_cv2 = make_conv_bn_params(k22, c, c, 3)
    fwd1 = jax.jit(functools.partial(basic_block_forward, stride=1))
    out2 = jax.block_until_ready(fwd1(x2, q_cv1, q_cv2, None))
    ref2 = jax.block_until_ready(ref_basic_block(x2, q_cv1, q_cv2, None, 1))
    assert out2.shape == ref2.shape == (2, c, 16, 16)
    assert jnp.allclose(out2, ref2, rtol=3e-2, atol=3e-2), \
        f"max abs err {jnp.max(jnp.abs(out2 - ref2))}"

    print("KERNEL_OK")
</pallas_src>

<mosaic_0001>
module attributes {stable_mosaic.version = 11 : i64} {
  func.func @_conv_dual_kernel(%arg0: i32, %arg1: memref<1x4x90x4xbf16, #tpu.memory_space<vmem>>, %arg2: memref<9x4x8xbf16, #tpu.memory_space<vmem>>, %arg3: memref<1x8xf32, #tpu.memory_space<vmem>>, %arg4: memref<1x4x8xbf16, #tpu.memory_space<vmem>>, %arg5: memref<1x8xf32, #tpu.memory_space<vmem>>, %arg6: memref<1x72x8xbf16, #tpu.memory_space<vmem>>, %arg7: memref<1x72x8xf32, #tpu.memory_space<vmem>>) attributes {dimension_semantics = [#tpu.dimension_semantics<parallel>], iteration_bounds = array<i64: 2>, scalar_prefetch = 0 : i64, scratch_operands = 0 : i64, tpu.core_type = #tpu.core_type<tc>, window_params = [{transform_indices = @transform_0, window_bounds = array<i64: 1, 4, 90, 4>}, {pipeline_mode = #tpu.pipeline_mode<synchronous>, transform_indices = @transform_1, window_bounds = array<i64: 9, 4, 8>}, {pipeline_mode = #tpu.pipeline_mode<synchronous>, transform_indices = @transform_2, window_bounds = array<i64: 1, 8>}, {pipeline_mode = #tpu.pipeline_mode<synchronous>, transform_indices = @transform_3, window_bounds = array<i64: 1, 4, 8>}, {pipeline_mode = #tpu.pipeline_mode<synchronous>, transform_indices = @transform_4, window_bounds = array<i64: 1, 8>}, {transform_indices = @transform_5, window_bounds = array<i64: 1, 72, 8>}, {transform_indices = @transform_6, window_bounds = array<i64: 1, 72, 8>}]} {
    %cst = arith.constant 0.000000e+00 : f32
    %0 = vector.broadcast %cst : f32 to vector<72x8xf32>
    %c0 = arith.constant 0 : index
    %c0_0 = arith.constant 0 : index
    %c0_1 = arith.constant 0 : index
    %c0_2 = arith.constant 0 : index
    %1 = vector.load %arg1[%c0, %c0_0, %c0_1, %c0_2] : memref<1x4x90x4xbf16, #tpu.memory_space<vmem>>, vector<1x1x72x4xbf16>
    %2 = vector.shape_cast %1 : vector<1x1x72x4xbf16> to vector<72x4xbf16>
    %c0_3 = arith.constant 0 : index
    %c0_4 = arith.constant 0 : index
    %c0_5 = arith.constant 0 : index
    %3 = vector.load %arg2[%c0_3, %c0_4, %c0_5] : memref<9x4x8xbf16, #tpu.memory_space<vmem>>, vector<1x4x8xbf16>
    %4 = vector.shape_cast %3 : vector<1x4x8xbf16> to vector<4x8xbf16>
    %cst_6 = arith.constant dense<0.000000e+00> : vector<72x8xf32>
    %5 = tpu.matmul %2, %4, %cst_6 {dimension_numbers = #tpu.dot_dimension_numbers<[1], [0], [0], [1], [0, 0, 1, 1], [], []>} : vector<72x4xbf16>, vector<4x8xbf16>, vector<72x8xf32> -> vector<72x8xf32>
    %6 = arith.addf %0, %5 : vector<72x8xf32>
    %c0_7 = arith.constant 0 : index
    %c1 = arith.constant 1 : index
    %c0_8 = arith.constant 0 : index
    %c0_9 = arith.constant 0 : index
    %7 = vector.load %arg1[%c0_7, %c1, %c0_8, %c0_9] : memref<1x4x90x4xbf16, #tpu.memory_space<vmem>>, vector<1x1x72x4xbf16>
    %8 = vector.shape_cast %7 : vector<1x1x72x4xbf16> to vector<72x4xbf16>
    %c1_10 = arith.constant 1 : index
    %c0_11 = arith.constant 0 : index
    %c0_12 = arith.constant 0 : index
    %9 = vector.load %arg2[%c1_10, %c0_11, %c0_12] : memref<9x4x8xbf16, #tpu.memory_space<vmem>>, vector<1x4x8xbf16>
    %10 = vector.shape_cast %9 : vector<1x4x8xbf16> to vector<4x8xbf16>
    %cst_13 = arith.constant dense<0.000000e+00> : vector<72x8xf32>
    %11 = tpu.matmul %8, %10, %cst_13 {dimension_numbers = #tpu.dot_dimension_numbers<[1], [0], [0], [1], [0, 0, 1, 1], [], []>} : vector<72x4xbf16>, vector<4x8xbf16>, vector<72x8xf32> -> vector<72x8xf32>
    %12 = arith.addf %6, %11 : vector<72x8xf32>
    %c0_14 = arith.constant 0 : index
    %c0_15 = arith.constant 0 : index
    %c1_16 = arith.constant 1 : index
    %c0_17 = arith.constant 0 : index
    %13 = vector.load %arg1[%c0_14, %c0_15, %c1_16, %c0_17] : memref<1x4x90x4xbf16, #tpu.memory_space<vmem>>, vector<1x1x72x4xbf16>
    %14 = vector.shape_cast %13 : vector<1x1x72x4xbf16> to vector<72x4xbf16>
    %c2 = arith.constant 2 : index
    %c0_18 = arith.constant 0 : index
    %c0_19 = arith.constant 0 : index
    %15 = vector.load %arg2[%c2, %c0_18, %c0_19] : memref<9x4x8xbf16, #tpu.memory_space<vmem>>, vector<1x4x8xbf16>
    %16 = vector.shape_cast %15 : vector<1x4x8xbf16> to vector<4x8xbf16>
    %cst_20 = arith.constant dense<0.000000e+00> : vector<72x8xf32>
    %17 = tpu.matmul %14, %16, %cst_20 {dimension_numbers = #tpu.dot_dimension_numbers<[1], [0], [0], [1], [0, 0, 1, 1], [], []>} : vector<72x4xbf16>, vector<4x8xbf16>, vector<72x8xf32> -> vector<72x8xf32>
    %18 = arith.addf %12, %17 : vector<72x8xf32>
    %c0_21 = arith.constant 0 : index
    %c2_22 = arith.constant 2 : index
    %c0_23 = arith.constant 0 : index
    %c0_24 = arith.constant 0 : index
    %19 = vector.load %arg1[%c0_21, %c2_22, %c0_23, %c0_24] : memref<1x4x90x4xbf16, #tpu.memory_space<vmem>>, vector<1x1x72x4xbf16>
    %20 = vector.shape_cast %19 : vector<1x1x72x4xbf16> to vector<72x4xbf16>
    %c3 = arith.constant 3 : index
    %c0_25 = arith.constant 0 : index
    %c0_26 = arith.constant 0 : index
    %21 = vector.load %arg2[%c3, %c0_25, %c0_26] : memref<9x4x8xbf16, #tpu.memory_space<vmem>>, vector<1x4x8xbf16>
    %22 = vector.shape_cast %21 : vector<1x4x8xbf16> to vector<4x8xbf16>
    %cst_27 = arith.constant dense<0.000000e+00> : vector<72x8xf32>
    %23 = tpu.matmul %20, %22, %cst_27 {dimension_numbers = #tpu.dot_dimension_numbers<[1], [0], [0], [1], [0, 0, 1, 1], [], []>} : vector<72x4xbf16>, vector<4x8xbf16>, vector<72x8xf32> -> vector<72x8xf32>
    %24 = arith.addf %18, %23 : vector<72x8xf32>
    %c0_28 = arith.constant 0 : index
    %c3_29 = arith.constant 3 : index
    %c0_30 = arith.constant 0 : index
    %c0_31 = arith.constant 0 : index
    %25 = vector.load %arg1[%c0_28, %c3_29, %c0_30, %c0_31] : memref<1x4x90x4xbf16, #tpu.memory_space<vmem>>, vector<1x1x72x4xbf16>
    %26 = vector.shape_cast %25 : vector<1x1x72x4xbf16> to vector<72x4xbf16>
    %c4 = arith.constant 4 : index
    %c0_32 = arith.constant 0 : index
    %c0_33 = arith.constant 0 : index
    %27 = vector.load %arg2[%c4, %c0_32, %c0_33] : memref<9x4x8xbf16, #tpu.memory_space<vmem>>, vector<1x4x8xbf16>
    %28 = vector.shape_cast %27 : vector<1x4x8xbf16> to vector<4x8xbf16>
    %cst_34 = arith.constant dense<0.000000e+00> : vector<72x8xf32>
    %29 = tpu.matmul %26, %28, %cst_34 {dimension_numbers = #tpu.dot_dimension_numbers<[1], [0], [0], [1], [0, 0, 1, 1], [], []>} : vector<72x4xbf16>, vector<4x8xbf16>, vector<72x8xf32> -> vector<72x8xf32>
    %30 = arith.addf %24, %29 : vector<72x8xf32>
    %c0_35 = arith.constant 0 : index
    %c2_36 = arith.constant 2 : index
    %c1_37 = arith.constant 1 : index
    %c0_38 = arith.constant 0 : index
    %31 = vector.load %arg1[%c0_35, %c2_36, %c1_37, %c0_38] : memref<1x4x90x4xbf16, #tpu.memory_space<vmem>>, vector<1x1x72x4xbf16>
    %32 = vector.shape_cast %31 : vector<1x1x72x4xbf16> to vector<72x4xbf16>
    %c5 = arith.constant 5 : index
    %c0_39 = arith.constant 0 : index
    %c0_40 = arith.constant 0 : index
    %33 = vector.load %arg2[%c5, %c0_39, %c0_40] : memref<9x4x8xbf16, #tpu.memory_space<vmem>>, vector<1x4x8xbf16>
    %34 = vector.shape_cast %33 : vector<1x4x8xbf16> to vector<4x8xbf16>
    %cst_41 = arith.constant dense<0.000000e+00> : vector<72x8xf32>
    %35 = tpu.matmul %32, %34, %cst_41 {dimension_numbers = #tpu.dot_dimension_numbers<[1], [0], [0], [1], [0, 0, 1, 1], [], []>} : vector<72x4xbf16>, vector<4x8xbf16>, vector<72x8xf32> -> vector<72x8xf32>
    %36 = arith.addf %30, %35 : vector<72x8xf32>
    %c0_42 = arith.constant 0 : index
    %c0_43 = arith.constant 0 : index
    %c9 = arith.constant 9 : index
    %c0_44 = arith.constant 0 : index
    %37 = vector.load %arg1[%c0_42, %c0_43, %c9, %c0_44] : memref<1x4x90x4xbf16, #tpu.memory_space<vmem>>, vector<1x1x72x4xbf16>
    %38 = vector.shape_cast %37 : vector<1x1x72x4xbf16> to vector<72x4xbf16>
    %c6 = arith.constant 6 : index
    %c0_45 = arith.constant 0 : index
    %c0_46 = arith.constant 0 : index
    %39 = vector.load %arg2[%c6, %c0_45, %c0_46] : memref<9x4x8xbf16, #tpu.memory_space<vmem>>, vector<1x4x8xbf16>
    %40 = vector.shape_cast %39 : vector<1x4x8xbf16> to vector<4x8xbf16>
    %cst_47 = arith.constant dense<0.000000e+00> : vector<72x8xf32>
    %41 = tpu.matmul %38, %40, %cst_47 {dimension_numbers = #tpu.dot_dimension_numbers<[1], [0], [0], [1], [0, 0, 1, 1], [], []>} : vector<72x4xbf16>, vector<4x8xbf16>, vector<72x8xf32> -> vector<72x8xf32>
    %42 = arith.addf %36, %41 : vector<72x8xf32>
    %c0_48 = arith.constant 0 : index
    %c1_49 = arith.constant 1 : index
    %c9_50 = arith.constant 9 : index
    %c0_51 = arith.constant 0 : index
    %43 = vector.load %arg1[%c0_48, %c1_49, %c9_50, %c0_51] : memref<1x4x90x4xbf16, #tpu.memory_space<vmem>>, vector<1x1x72x4xbf16>
    %44 = vector.shape_cast %43 : vector<1x1x72x4xbf16> to vector<72x4xbf16>
    %c7 = arith.constant 7 : index
    %c0_52 = arith.constant 0 : index
    %c0_53 = arith.constant 0 : index
    %45 = vector.load %arg2[%c7, %c0_52, %c0_53] : memref<9x4x8xbf16, #tpu.memory_space<vmem>>, vector<1x4x8xbf16>
    %46 = vector.shape_cast %45 : vector<1x4x8xbf16> to vector<4x8xbf16>
    %cst_54 = arith.constant dense<0.000000e+00> : vector<72x8xf32>
    %47 = tpu.matmul %44, %46, %cst_54 {dimension_numbers = #tpu.dot_dimension_numbers<[1], [0], [0], [1], [0, 0, 1, 1], [], []>} : vector<72x4xbf16>, vector<4x8xbf16>, vector<72x8xf32> -> vector<72x8xf32>
    %48 = arith.addf %42, %47 : vector<72x8xf32>
    %c0_55 = arith.constant 0 : index
    %c0_56 = arith.constant 0 : index
    %c10 = arith.constant 10 : index
    %c0_57 = arith.constant 0 : index
    %49 = vector.load %arg1[%c0_55, %c0_56, %c10, %c0_57] : memref<1x4x90x4xbf16, #tpu.memory_space<vmem>>, vector<1x1x72x4xbf16>
    %50 = vector.shape_cast %49 : vector<1x1x72x4xbf16> to vector<72x4xbf16>
    %c8 = arith.constant 8 : index
    %c0_58 = arith.constant 0 : index
    %c0_59 = arith.constant 0 : index
    %51 = vector.load %arg2[%c8, %c0_58, %c0_59] : memref<9x4x8xbf16, #tpu.memory_space<vmem>>, vector<1x4x8xbf16>
    %52 = vector.shape_cast %51 : vector<1x4x8xbf16> to vector<4x8xbf16>
    %cst_60 = arith.constant dense<0.000000e+00> : vector<72x8xf32>
    %53 = tpu.matmul %50, %52, %cst_60 {dimension_numbers = #tpu.dot_dimension_numbers<[1], [0], [0], [1], [0, 0, 1, 1], [], []>} : vector<72x4xbf16>, vector<4x8xbf16>, vector<72x8xf32> -> vector<72x8xf32>
    %54 = arith.addf %48, %53 : vector<72x8xf32>
    %c0_61 = arith.constant 0 : index
    %c0_62 = arith.constant 0 : index
    %55 = vector.load %arg3[%c0_61, %c0_62] : memref<1x8xf32, #tpu.memory_space<vmem>>, vector<1x8xf32>
    %56 = vector.broadcast %55 : vector<1x8xf32> to vector<72x8xf32>
    %57 = arith.addf %54, %56 : vector<72x8xf32>
    %cst_63 = arith.constant 0.000000e+00 : f32
    %58 = vector.broadcast %cst_63 : f32 to vector<72x8xf32>
    %59 = arith.maximumf %57, %58 : vector<72x8xf32>
    %60 = arith.truncf %59 : vector<72x8xf32> to vector<72x8xbf16>
    %c0_64 = arith.constant 0 : index
    %c0_65 = arith.constant 0 : index
    %c0_66 = arith.constant 0 : index
    %61 = vector.load %arg6[%c0_64, %c0_65, %c0_66] : memref<1x72x8xbf16, #tpu.memory_space<vmem>>, vector<1x72x8xbf16>
    %62 = vector.shape_cast %61 : vector<1x72x8xbf16> to vector<72x8xbf16>
    %63 = vector.shape_cast %60 : vector<72x8xbf16> to vector<1x72x8xbf16>
    tpu.vector_store %arg6[%c0_64, %c0_65, %c0_66], %63 {strides = array<i32>} : memref<1x72x8xbf16, #tpu.memory_space<vmem>>, vector<1x72x8xbf16>,
    %cst_67 = arith.constant 0.000000e+00 : f32
    %64 = vector.broadcast %cst_67 : f32 to vector<72x8xf32>
    %c0_68 = arith.constant 0 : index
    %c3_69 = arith.constant 3 : index
    %c0_70 = arith.constant 0 : index
    %c0_71 = arith.constant 0 : index
    %65 = vector.load %arg1[%c0_68, %c3_69, %c0_70, %c0_71] : memref<1x4x90x4xbf16, #tpu.memory_space<vmem>>, vector<1x1x72x4xbf16>
    %66 = vector.shape_cast %65 : vector<1x1x72x4xbf16> to vector<72x4xbf16>
    %c0_72 = arith.constant 0 : index
    %c0_73 = arith.constant 0 : index
    %c0_74 = arith.constant 0 : index
    %67 = vector.load %arg4[%c0_72, %c0_73, %c0_74] : memref<1x4x8xbf16, #tpu.memory_space<vmem>>, vector<1x4x8xbf16>
    %68 = vector.shape_cast %67 : vector<1x4x8xbf16> to vector<4x8xbf16>
    %cst_75 = arith.constant dense<0.000000e+00> : vector<72x8xf32>
    %69 = tpu.matmul %66, %68, %cst_75 {dimension_numbers = #tpu.dot_dimension_numbers<[1], [0], [0], [1], [0, 0, 1, 1], [], []>} : vector<72x4xbf16>, vector<4x8xbf16>, vector<72x8xf32> -> vector<72x8xf32>
    %70 = arith.addf %64, %69 : vector<72x8xf32>
    %c0_76 = arith.constant 0 : index
    %c0_77 = arith.constant 0 : index
    %71 = vector.load %arg5[%c0_76, %c0_77] : memref<1x8xf32, #tpu.memory_space<vmem>>, vector<1x8xf32>
    %72 = vector.broadcast %71 : vector<1x8xf32> to vector<72x8xf32>
    %73 = arith.addf %70, %72 : vector<72x8xf32>
    %c0_78 = arith.constant 0 : index
    %c0_79 = arith.constant 0 : index
    %c0_80 = arith.constant 0 : index
    %74 = vector.load %arg7[%c0_78, %c0_79, %c0_80] : memref<1x72x8xf32, #tpu.memory_space<vmem>>, vector<1x72x8xf32>
    %75 = vector.shape_cast %74 : vector<1x72x8xf32> to vector<72x8xf32>
    %76 = vector.shape_cast %73 : vector<72x8xf32> to vector<1x72x8xf32>
    tpu.vector_store %arg7[%c0_78, %c0_79, %c0_80], %76 {strides = array<i32>} : memref<1x72x8xf32, #tpu.memory_space<vmem>>, vector<1x72x8xf32>,
    return
  }
  func.func @transform_0(%arg0: i32) -> (i32, i32, i32, i32) {
    %c0_i32 = arith.constant 0 : i32
    %c0_i32_0 = arith.constant 0 : i32
    %c0_i32_1 = arith.constant 0 : i32
    %c0_i32_2 = arith.constant 0 : i32
    return %arg0, %c0_i32, %c0_i32_0, %c0_i32_1 : i32, i32, i32, i32
  }
  func.func @transform_1(%arg0: i32) -> (i32, i32, i32) {
    %c0_i32 = arith.constant 0 : i32
    %c0_i32_0 = arith.constant 0 : i32
    %c0_i32_1 = arith.constant 0 : i32
    %c0_i32_2 = arith.constant 0 : i32
    return %c0_i32, %c0_i32_0, %c0_i32_1 : i32, i32, i32
  }
  func.func @transform_2(%arg0: i32) -> (i32, i32) {
    %c0_i32 = arith.constant 0 : i32
    %c0_i32_0 = arith.constant 0 : i32
    %c0_i32_1 = arith.constant 0 : i32
    return %c0_i32, %c0_i32_0 : i32, i32
  }
  func.func @transform_3(%arg0: i32) -> (i32, i32, i32) {
    %c0_i32 = arith.constant 0 : i32
    %c0_i32_0 = arith.constant 0 : i32
    %c0_i32_1 = arith.constant 0 : i32
    %c0_i32_2 = arith.constant 0 : i32
    return %c0_i32, %c0_i32_0, %c0_i32_1 : i32, i32, i32
  }
  func.func @transform_4(%arg0: i32) -> (i32, i32) {
    %c0_i32 = arith.constant 0 : i32
    %c0_i32_0 = arith.constant 0 : i32
    %c0_i32_1 = arith.constant 0 : i32
    return %c0_i32, %c0_i32_0 : i32, i32
  }
  func.func @transform_5(%arg0: i32) -> (i32, i32, i32) {
    %c0_i32 = arith.constant 0 : i32
    %c0_i32_0 = arith.constant 0 : i32
    %c0_i32_1 = arith.constant 0 : i32
    return %arg0, %c0_i32, %c0_i32_0 : i32, i32, i32
  }
  func.func @transform_6(%arg0: i32) -> (i32, i32, i32) {
    %c0_i32 = arith.constant 0 : i32
    %c0_i32_0 = arith.constant 0 : i32
    %c0_i32_1 = arith.constant 0 : i32
    return %arg0, %c0_i32, %c0_i32_0 : i32, i32, i32
  }
}

module attributes {stable_mosaic.version = 11 : i64} {
  func.func @_conv_kernel(%arg0: i32, %arg1: memref<1x1x110x8xbf16, #tpu.memory_space<vmem>>, %arg2: memref<9x8x8xbf16, #tpu.memory_space<vmem>>, %arg3: memref<1x8xf32, #tpu.memory_space<vmem>>, %arg4: memref<1x80x8xf32, #tpu.memory_space<vmem>>, %arg5: memref<1x80x8xf32, #tpu.memory_space<vmem>>) attributes {dimension_semantics = [#tpu.dimension_semantics<parallel>], iteration_bounds = array<i64: 2>, scalar_prefetch = 0 : i64, scratch_operands = 0 : i64, tpu.core_type = #tpu.core_type<tc>, window_params = [{transform_indices = @transform_0, window_bounds = array<i64: 1, 1, 110, 8>}, {pipeline_mode = #tpu.pipeline_mode<synchronous>, transform_indices = @transform_1, window_bounds = array<i64: 9, 8, 8>}, {pipeline_mode = #tpu.pipeline_mode<synchronous>, transform_indices = @transform_2, window_bounds = array<i64: 1, 8>}, {transform_indices = @transform_3, window_bounds = array<i64: 1, 80, 8>}, {transform_indices = @transform_4, window_bounds = array<i64: 1, 80, 8>}]} {
    %cst = arith.constant 0.000000e+00 : f32
    %0 = vector.broadcast %cst : f32 to vector<80x8xf32>
    %c0 = arith.constant 0 : index
    %c0_0 = arith.constant 0 : index
    %c0_1 = arith.constant 0 : index
    %c0_2 = arith.constant 0 : index
    %1 = vector.load %arg1[%c0, %c0_0, %c0_1, %c0_2] : memref<1x1x110x8xbf16, #tpu.memory_space<vmem>>, vector<1x1x80x8xbf16>
    %2 = vector.shape_cast %1 : vector<1x1x80x8xbf16> to vector<80x8xbf16>
    %c0_3 = arith.constant 0 : index
    %c0_4 = arith.constant 0 : index
    %c0_5 = arith.constant 0 : index
    %3 = vector.load %arg2[%c0_3, %c0_4, %c0_5] : memref<9x8x8xbf16, #tpu.memory_space<vmem>>, vector<1x8x8xbf16>
    %4 = vector.shape_cast %3 : vector<1x8x8xbf16> to vector<8x8xbf16>
    %cst_6 = arith.constant dense<0.000000e+00> : vector<80x8xf32>
    %5 = tpu.matmul %2, %4, %cst_6 {dimension_numbers = #tpu.dot_dimension_numbers<[1], [0], [0], [1], [0, 0, 1, 1], [], []>} : vector<80x8xbf16>, vector<8x8xbf16>, vector<80x8xf32> -> vector<80x8xf32>
    %6 = arith.addf %0, %5 : vector<80x8xf32>
    %c0_7 = arith.constant 0 : index
    %c0_8 = arith.constant 0 : index
    %c1 = arith.constant 1 : index
    %c0_9 = arith.constant 0 : index
    %7 = vector.load %arg1[%c0_7, %c0_8, %c1, %c0_9] : memref<1x1x110x8xbf16, #tpu.memory_space<vmem>>, vector<1x1x80x8xbf16>
    %8 = vector.shape_cast %7 : vector<1x1x80x8xbf16> to vector<80x8xbf16>
    %c1_10 = arith.constant 1 : index
    %c0_11 = arith.constant 0 : index
    %c0_12 = arith.constant 0 : index
    %9 = vector.load %arg2[%c1_10, %c0_11, %c0_12] : memref<9x8x8xbf16, #tpu.memory_space<vmem>>, vector<1x8x8xbf16>
    %10 = vector.shape_cast %9 : vector<1x8x8xbf16> to vector<8x8xbf16>
    %cst_13 = arith.constant dense<0.000000e+00> : vector<80x8xf32>
    %11 = tpu.matmul %8, %10, %cst_13 {dimension_numbers = #tpu.dot_dimension_numbers<[1], [0], [0], [1], [0, 0, 1, 1], [], []>} : vector<80x8xbf16>, vector<8x8xbf16>, vector<80x8xf32> -> vector<80x8xf32>
    %12 = arith.addf %6, %11 : vector<80x8xf32>
    %c0_14 = arith.constant 0 : index
    %c0_15 = arith.constant 0 : index
    %c2 = arith.constant 2 : index
    %c0_16 = arith.constant 0 : index
    %13 = vector.load %arg1[%c0_14, %c0_15, %c2, %c0_16] : memref<1x1x110x8xbf16, #tpu.memory_space<vmem>>, vector<1x1x80x8xbf16>
    %14 = vector.shape_cast %13 : vector<1x1x80x8xbf16> to vector<80x8xbf16>
    %c2_17 = arith.constant 2 : index
    %c0_18 = arith.constant 0 : index
    %c0_19 = arith.constant 0 : index
    %15 = vector.load %arg2[%c2_17, %c0_18, %c0_19] : memref<9x8x8xbf16, #tpu.memory_space<vmem>>, vector<1x8x8xbf16>
    %16 = vector.shape_cast %15 : vector<1x8x8xbf16> to vector<8x8xbf16>
    %cst_20 = arith.constant dense<0.000000e+00> : vector<80x8xf32>
    %17 = tpu.matmul %14, %16, %cst_20 {dimension_numbers = #tpu.dot_dimension_numbers<[1], [0], [0], [1], [0, 0, 1, 1], [], []>} : vector<80x8xbf16>, vector<8x8xbf16>, vector<80x8xf32> -> vector<80x8xf32>
    %18 = arith.addf %12, %17 : vector<80x8xf32>
    %c0_21 = arith.constant 0 : index
    %c0_22 = arith.constant 0 : index
    %c10 = arith.constant 10 : index
    %c0_23 = arith.constant 0 : index
    %19 = vector.load %arg1[%c0_21, %c0_22, %c10, %c0_23] : memref<1x1x110x8xbf16, #tpu.memory_space<vmem>>, vector<1x1x80x8xbf16>
    %20 = vector.shape_cast %19 : vector<1x1x80x8xbf16> to vector<80x8xbf16>
    %c3 = arith.constant 3 : index
    %c0_24 = arith.constant 0 : index
    %c0_25 = arith.constant 0 : index
    %21 = vector.load %arg2[%c3, %c0_24, %c0_25] : memref<9x8x8xbf16, #tpu.memory_space<vmem>>, vector<1x8x8xbf16>
    %22 = vector.shape_cast %21 : vector<1x8x8xbf16> to vector<8x8xbf16>
    %cst_26 = arith.constant dense<0.000000e+00> : vector<80x8xf32>
    %23 = tpu.matmul %20, %22, %cst_26 {dimension_numbers = #tpu.dot_dimension_numbers<[1], [0], [0], [1], [0, 0, 1, 1], [], []>} : vector<80x8xbf16>, vector<8x8xbf16>, vector<80x8xf32> -> vector<80x8xf32>
    %24 = arith.addf %18, %23 : vector<80x8xf32>
    %c0_27 = arith.constant 0 : index
    %c0_28 = arith.constant 0 : index
    %c11 = arith.constant 11 : index
    %c0_29 = arith.constant 0 : index
    %25 = vector.load %arg1[%c0_27, %c0_28, %c11, %c0_29] : memref<1x1x110x8xbf16, #tpu.memory_space<vmem>>, vector<1x1x80x8xbf16>
    %26 = vector.shape_cast %25 : vector<1x1x80x8xbf16> to vector<80x8xbf16>
    %c4 = arith.constant 4 : index
    %c0_30 = arith.constant 0 : index
    %c0_31 = arith.constant 0 : index
    %27 = vector.load %arg2[%c4, %c0_30, %c0_31] : memref<9x8x8xbf16, #tpu.memory_space<vmem>>, vector<1x8x8xbf16>
    %28 = vector.shape_cast %27 : vector<1x8x8xbf16> to vector<8x8xbf16>
    %cst_32 = arith.constant dense<0.000000e+00> : vector<80x8xf32>
    %29 = tpu.matmul %26, %28, %cst_32 {dimension_numbers = #tpu.dot_dimension_numbers<[1], [0], [0], [1], [0, 0, 1, 1], [], []>} : vector<80x8xbf16>, vector<8x8xbf16>, vector<80x8xf32> -> vector<80x8xf32>
    %30 = arith.addf %24, %29 : vector<80x8xf32>
    %c0_33 = arith.constant 0 : index
    %c0_34 = arith.constant 0 : index
    %c12 = arith.constant 12 : index
    %c0_35 = arith.constant 0 : index
    %31 = vector.load %arg1[%c0_33, %c0_34, %c12, %c0_35] : memref<1x1x110x8xbf16, #tpu.memory_space<vmem>>, vector<1x1x80x8xbf16>
    %32 = vector.shape_cast %31 : vector<1x1x80x8xbf16> to vector<80x8xbf16>
    %c5 = arith.constant 5 : index
    %c0_36 = arith.constant 0 : index
    %c0_37 = arith.constant 0 : index
    %33 = vector.load %arg2[%c5, %c0_36, %c0_37] : memref<9x8x8xbf16, #tpu.memory_space<vmem>>, vector<1x8x8xbf16>
    %34 = vector.shape_cast %33 : vector<1x8x8xbf16> to vector<8x8xbf16>
    %cst_38 = arith.constant dense<0.000000e+00> : vector<80x8xf32>
    %35 = tpu.matmul %32, %34, %cst_38 {dimension_numbers = #tpu.dot_dimension_numbers<[1], [0], [0], [1], [0, 0, 1, 1], [], []>} : vector<80x8xbf16>, vector<8x8xbf16>, vector<80x8xf32> -> vector<80x8xf32>
    %36 = arith.addf %30, %35 : vector<80x8xf32>
    %c0_39 = arith.constant 0 : index
    %c0_40 = arith.constant 0 : index
    %c20 = arith.constant 20 : index
    %c0_41 = arith.constant 0 : index
    %37 = vector.load %arg1[%c0_39, %c0_40, %c20, %c0_41] : memref<1x1x110x8xbf16, #tpu.memory_space<vmem>>, vector<1x1x80x8xbf16>
    %38 = vector.shape_cast %37 : vector<1x1x80x8xbf16> to vector<80x8xbf16>
    %c6 = arith.constant 6 : index
    %c0_42 = arith.constant 0 : index
    %c0_43 = arith.constant 0 : index
    %39 = vector.load %arg2[%c6, %c0_42, %c0_43] : memref<9x8x8xbf16, #tpu.memory_space<vmem>>, vector<1x8x8xbf16>
    %40 = vector.shape_cast %39 : vector<1x8x8xbf16> to vector<8x8xbf16>
    %cst_44 = arith.constant dense<0.000000e+00> : vector<80x8xf32>
    %41 = tpu.matmul %38, %40, %cst_44 {dimension_numbers = #tpu.dot_dimension_numbers<[1], [0], [0], [1], [0, 0, 1, 1], [], []>} : vector<80x8xbf16>, vector<8x8xbf16>, vector<80x8xf32> -> vector<80x8xf32>
    %42 = arith.addf %36, %41 : vector<80x8xf32>
    %c0_45 = arith.constant 0 : index
    %c0_46 = arith.constant 0 : index
    %c21 = arith.constant 21 : index
    %c0_47 = arith.constant 0 : index
    %43 = vector.load %arg1[%c0_45, %c0_46, %c21, %c0_47] : memref<1x1x110x8xbf16, #tpu.memory_space<vmem>>, vector<1x1x80x8xbf16>
    %44 = vector.shape_cast %43 : vector<1x1x80x8xbf16> to vector<80x8xbf16>
    %c7 = arith.constant 7 : index
    %c0_48 = arith.constant 0 : index
    %c0_49 = arith.constant 0 : index
    %45 = vector.load %arg2[%c7, %c0_48, %c0_49] : memref<9x8x8xbf16, #tpu.memory_space<vmem>>, vector<1x8x8xbf16>
    %46 = vector.shape_cast %45 : vector<1x8x8xbf16> to vector<8x8xbf16>
    %cst_50 = arith.constant dense<0.000000e+00> : vector<80x8xf32>
    %47 = tpu.matmul %44, %46, %cst_50 {dimension_numbers = #tpu.dot_dimension_numbers<[1], [0], [0], [1], [0, 0, 1, 1], [], []>} : vector<80x8xbf16>, vector<8x8xbf16>, vector<80x8xf32> -> vector<80x8xf32>
    %48 = arith.addf %42, %47 : vector<80x8xf32>
    %c0_51 = arith.constant 0 : index
    %c0_52 = arith.constant 0 : index
    %c22 = arith.constant 22 : index
    %c0_53 = arith.constant 0 : index
    %49 = vector.load %arg1[%c0_51, %c0_52, %c22, %c0_53] : memref<1x1x110x8xbf16, #tpu.memory_space<vmem>>, vector<1x1x80x8xbf16>
    %50 = vector.shape_cast %49 : vector<1x1x80x8xbf16> to vector<80x8xbf16>
    %c8 = arith.constant 8 : index
    %c0_54 = arith.constant 0 : index
    %c0_55 = arith.constant 0 : index
    %51 = vector.load %arg2[%c8, %c0_54, %c0_55] : memref<9x8x8xbf16, #tpu.memory_space<vmem>>, vector<1x8x8xbf16>
    %52 = vector.shape_cast %51 : vector<1x8x8xbf16> to vector<8x8xbf16>
    %cst_56 = arith.constant dense<0.000000e+00> : vector<80x8xf32>
    %53 = tpu.matmul %50, %52, %cst_56 {dimension_numbers = #tpu.dot_dimension_numbers<[1], [0], [0], [1], [0, 0, 1, 1], [], []>} : vector<80x8xbf16>, vector<8x8xbf16>, vector<80x8xf32> -> vector<80x8xf32>
    %54 = arith.addf %48, %53 : vector<80x8xf32>
    %c0_57 = arith.constant 0 : index
    %c0_58 = arith.constant 0 : index
    %55 = vector.load %arg3[%c0_57, %c0_58] : memref<1x8xf32, #tpu.memory_space<vmem>>, vector<1x8xf32>
    %56 = vector.broadcast %55 : vector<1x8xf32> to vector<80x8xf32>
    %57 = arith.addf %54, %56 : vector<80x8xf32>
    %c0_59 = arith.constant 0 : index
    %c0_60 = arith.constant 0 : index
    %c0_61 = arith.constant 0 : index
    %58 = vector.load %arg4[%c0_59, %c0_60, %c0_61] : memref<1x80x8xf32, #tpu.memory_space<vmem>>, vector<1x80x8xf32>
    %59 = vector.shape_cast %58 : vector<1x80x8xf32> to vector<80x8xf32>
    %60 = arith.addf %57, %59 : vector<80x8xf32>
    %cst_62 = arith.constant 0.000000e+00 : f32
    %61 = vector.broadcast %cst_62 : f32 to vector<80x8xf32>
    %62 = arith.maximumf %60, %61 : vector<80x8xf32>
    %c0_63 = arith.constant 0 : index
    %c0_64 = arith.constant 0 : index
    %c0_65 = arith.constant 0 : index
    %63 = vector.load %arg5[%c0_63, %c0_64, %c0_65] : memref<1x80x8xf32, #tpu.memory_space<vmem>>, vector<1x80x8xf32>
    %64 = vector.shape_cast %63 : vector<1x80x8xf32> to vector<80x8xf32>
    %65 = vector.shape_cast %62 : vector<80x8xf32> to vector<1x80x8xf32>
    tpu.vector_store %arg5[%c0_63, %c0_64, %c0_65], %65 {strides = array<i32>} : memref<1x80x8xf32, #tpu.memory_space<vmem>>, vector<1x80x8xf32>,
    return
  }
  func.func @transform_0(%arg0: i32) -> (i32, i32, i32, i32) {
    %c0_i32 = arith.constant 0 : i32
    %c0_i32_0 = arith.constant 0 : i32
    %c0_i32_1 = arith.constant 0 : i32
    %c0_i32_2 = arith.constant 0 : i32
    return %arg0, %c0_i32, %c0_i32_0, %c0_i32_1 : i32, i32, i32, i32
  }
  func.func @transform_1(%arg0: i32) -> (i32, i32, i32) {
    %c0_i32 = arith.constant 0 : i32
    %c0_i32_0 = arith.constant 0 : i32
    %c0_i32_1 = arith.constant 0 : i32
    %c0_i32_2 = arith.constant 0 : i32
    return %c0_i32, %c0_i32_0, %c0_i32_1 : i32, i32, i32
  }
  func.func @transform_2(%arg0: i32) -> (i32, i32) {
    %c0_i32 = arith.constant 0 : i32
    %c0_i32_0 = arith.constant 0 : i32
    %c0_i32_1 = arith.constant 0 : i32
    return %c0_i32, %c0_i32_0 : i32, i32
  }
  func.func @transform_3(%arg0: i32) -> (i32, i32, i32) {
    %c0_i32 = arith.constant 0 : i32
    %c0_i32_0 = arith.constant 0 : i32
    %c0_i32_1 = arith.constant 0 : i32
    return %arg0, %c0_i32, %c0_i32_0 : i32, i32, i32
  }
  func.func @transform_4(%arg0: i32) -> (i32, i32, i32) {
    %c0_i32 = arith.constant 0 : i32
    %c0_i32_0 = arith.constant 0 : i32
    %c0_i32_1 = arith.constant 0 : i32
    return %arg0, %c0_i32, %c0_i32_0 : i32, i32, i32
  }
}

</mosaic_0001>

<llo_original>
// kernel: basic_block_forward.2
$region0: #{basic_block_forward.2}
  #allocation0 [shape = 'u32[]', space=smem, size = 0x4, offset = 0x4, fixed_abs, tag = 'smem constant byte address 0x4 - core index']
  #allocation1 [shape = 'u32[144,128]{1,0:T(1,128)}', space=vmem, size = 0x12000, scoped, tag = 'internal scratch']
  %s0 = inlined_call_operand.vmem [shape: bf16[2,4,90,4], index: 0, kind: input, shape index: {}]
  %s1 = inlined_call_operand.vmem [shape: bf16[9,4,8], index: 1, kind: input, shape index: {}]
  %s2 = inlined_call_operand.vmem [shape: f32[1,8], index: 2, kind: input, shape index: {}]
  %s3 = inlined_call_operand.vmem [shape: bf16[1,4,8], index: 3, kind: input, shape index: {}]
  %s4 = inlined_call_operand.vmem [shape: f32[1,8], index: 4, kind: input, shape index: {}]
  %s5 = inlined_call_operand.vmem [shape: bf16[2,72,8], index: 5, kind: output, shape index: {0}]
  %s6 = inlined_call_operand.vmem [shape: f32[2,72,8], index: 6, kind: output, shape index: {1}]
  %7 = xla_tuple %s5, %s6
  %s8 = sld [smem:[#allocation0]]
  $region61: #{basic_block_forward.2} parent=0
    _
  %s10 = ssub.s32 1, %s8
  %s11 = scalar_select 0, %s10, %s8
  loop: start=0, step=1, limit=4
  $region2: #{basic_block_forward.2} parent=0 // loop_pre_header
    _
  $region3: #{basic_block_forward.2} parent=0 // loop_header
    %s13 = sphi 0, %s17
    %p14 = scmp.ge.s32.totalorder %s13, 4
    %s23 = sphi 0, %s25
    %s26 = sphi 0, %s23
    %s27 = sphi 0, %s26
    %s43 = sphi 0, %s27
    %s47 = sphi 0, %s47
    %s49 = sphi 0, %s47
    %s50 = sphi 0, %s49
    %s64 = sphi 0, %s50
    %s68 = sphi 0, %s68
    %s70 = sphi 0, %s68
    %s71 = sphi 0, %s70
    %s85 = sphi 0, %s71
    %s89 = sphi 0, %s89
    %s91 = sphi 0, %s89
    %s92 = sphi 0, %s91
    %s106 = sphi 0, %s92
    %s110 = sphi 0, %s110
    %s112 = sphi 0, %s110
    %s113 = sphi 0, %s112
    %s127 = sphi 0, %s113
    %s133 = sphi 0, %s135
    %s136 = sphi 0, %s133
    %s137 = sphi 0, %s136
    %s153 = sphi 0, %s137
    %s159 = sphi 0, %s161
    %s162 = sphi 0, %s159
    %s163 = sphi 0, %s162
    %s179 = sphi 0, %s163
  $region4: #{basic_block_forward.2} parent=0 // loop_header_branch
    %16 = sbr.rel (%p14) target = $region8
  $region5: #{basic_block_forward.2} parent=0 // loop_body
    %s18 = ssub.s32 %s13, 1
    %s19 = ssub.s32 %s13, 2
    %s20 = sadd.s32 %s13, 1
    %s21 = ssub.s32 %s13, %s20
    %p22 = scmp.eq.s32.totalorder %s21, 0
    %s24 = sadd.s32 %s23, 1
    %s25 = scalar_select %p22, %s23, %s24
    %p28 = pneg %p22
    %p29 = scmp.eq.s32.totalorder %s13, 1
    %p30 = por %p28, %p29
    %p31 = scmp.ne.s32.totalorder %s23, %s26
    %p32 = scmp.eq.s32.totalorder %s13, 0
    %p33 = por %p31, %p32
    %p34 = scmp.ne.s32.totalorder %s23, %s26
    %p35 = scmp.eq.s32.totalorder %s18, 1
    %p36 = por %p34, %p35
    %p37 = scmp.ne.s32.totalorder %s26, %s27
    %p38 = scmp.eq.s32.totalorder %s18, 0
    %p39 = por %p37, %p38
    %p40 = scmp.ne.s32.totalorder %s26, %s27
    %p41 = scmp.eq.s32.totalorder %s19, 1
    %p42 = por %p40, %p41
    %p44 = scmp.ne.s32.totalorder %s27, %s43
    %p45 = scmp.eq.s32.totalorder %s19, 0
    %p46 = por %p44, %p45
    %s48 = sadd.s32 %s47, 1
    %p51 = scmp.eq.s32.totalorder %s13, 1
    %p52 = scmp.ne.s32.totalorder %s47, %s49
    %p53 = scmp.eq.s32.totalorder %s13, 0
    %p54 = por %p52, %p53
    %p55 = scmp.ne.s32.totalorder %s47, %s49
    %p56 = scmp.eq.s32.totalorder %s18, 1
    %p57 = por %p55, %p56
    %p58 = scmp.ne.s32.totalorder %s49, %s50
    %p59 = scmp.eq.s32.totalorder %s18, 0
    %p60 = por %p58, %p59
    %p61 = scmp.ne.s32.totalorder %s49, %s50
    %p62 = scmp.eq.s32.totalorder %s19, 1
    %p63 = por %p61, %p62
    %p65 = scmp.ne.s32.totalorder %s50, %s64
    %p66 = scmp.eq.s32.totalorder %s19, 0
    %p67 = por %p65, %p66
    %s69 = sadd.s32 %s68, 1
    %p72 = scmp.eq.s32.totalorder %s13, 1
    %p73 = scmp.ne.s32.totalorder %s68, %s70
    %p74 = scmp.eq.s32.totalorder %s13, 0
    %p75 = por %p73, %p74
    %p76 = scmp.ne.s32.totalorder %s68, %s70
    %p77 = scmp.eq.s32.totalorder %s18, 1
    %p78 = por %p76, %p77
    %p79 = scmp.ne.s32.totalorder %s70, %s71
    %p80 = scmp.eq.s32.totalorder %s18, 0
    %p81 = por %p79, %p80
    %p82 = scmp.ne.s32.totalorder %s70, %s71
    %p83 = scmp.eq.s32.totalorder %s19, 1
    %p84 = por %p82, %p83
    %p86 = scmp.ne.s32.totalorder %s71, %s85
    %p87 = scmp.eq.s32.totalorder %s19, 0
    %p88 = por %p86, %p87
    %s90 = sadd.s32 %s89, 1
    %p93 = scmp.eq.s32.totalorder %s13, 1
    %p94 = scmp.ne.s32.totalorder %s89, %s91
    %p95 = scmp.eq.s32.totalorder %s13, 0
    %p96 = por %p94, %p95
    %p97 = scmp.ne.s32.totalorder %s89, %s91
    %p98 = scmp.eq.s32.totalorder %s18, 1
    %p99 = por %p97, %p98
    %p100 = scmp.ne.s32.totalorder %s91, %s92
    %p101 = scmp.eq.s32.totalorder %s18, 0
    %p102 = por %p100, %p101
    %p103 = scmp.ne.s32.totalorder %s91, %s92
    %p104 = scmp.eq.s32.totalorder %s19, 1
    %p105 = por %p103, %p104
    %p107 = scmp.ne.s32.totalorder %s92, %s106
    %p108 = scmp.eq.s32.totalorder %s19, 0
    %p109 = por %p107, %p108
    %s111 = sadd.s32 %s110, 1
    %p114 = scmp.eq.s32.totalorder %s13, 1
    %p115 = scmp.ne.s32.totalorder %s110, %s112
    %p116 = scmp.eq.s32.totalorder %s13, 0
    %p117 = por %p115, %p116
    %p118 = scmp.ne.s32.totalorder %s110, %s112
    %p119 = scmp.eq.s32.totalorder %s18, 1
    %p120 = por %p118, %p119
    %p121 = scmp.ne.s32.totalorder %s112, %s113
    %p122 = scmp.eq.s32.totalorder %s18, 0
    %p123 = por %p121, %p122
    %p124 = scmp.ne.s32.totalorder %s112, %s113
    %p125 = scmp.eq.s32.totalorder %s19, 1
    %p126 = por %p124, %p125
    %p128 = scmp.ne.s32.totalorder %s113, %s127
    %p129 = scmp.eq.s32.totalorder %s19, 0
    %p130 = por %p128, %p129
    %s131 = ssub.s32 %s13, %s20
    %p132 = scmp.eq.s32.totalorder %s131, 0
    %s134 = sadd.s32 %s133, 1
    %s135 = scalar_select %p132, %s133, %s134
    %p138 = pneg %p132
    %p139 = scmp.eq.s32.totalorder %s13, 1
    %p140 = por %p138, %p139
    %p141 = scmp.ne.s32.totalorder %s133, %s136
    %p142 = scmp.eq.s32.totalorder %s13, 0
    %p143 = por %p141, %p142
    %p144 = scmp.ne.s32.totalorder %s133, %s136
    %p145 = scmp.eq.s32.totalorder %s18, 1
    %p146 = por %p144, %p145
    %p147 = scmp.ne.s32.totalorder %s136, %s137
    %p148 = scmp.eq.s32.totalorder %s18, 0
    %p149 = por %p147, %p148
    %p150 = scmp.ne.s32.totalorder %s136, %s137
    %p151 = scmp.eq.s32.totalorder %s19, 1
    %p152 = por %p150, %p151
    %p154 = scmp.ne.s32.totalorder %s137, %s153
    %p155 = scmp.eq.s32.totalorder %s19, 0
    %p156 = por %p154, %p155
    %s157 = ssub.s32 %s13, %s20
    %p158 = scmp.eq.s32.totalorder %s157, 0
    %s160 = sadd.s32 %s159, 1
    %s161 = scalar_select %p158, %s159, %s160
    %p164 = pneg %p158
    %p165 = scmp.eq.s32.totalorder %s13, 1
    %p166 = por %p164, %p165
    %p167 = scmp.ne.s32.totalorder %s159, %s162
    %p168 = scmp.eq.s32.totalorder %s13, 0
    %p169 = por %p167, %p168
    %p170 = scmp.ne.s32.totalorder %s159, %s162
    %p171 = scmp.eq.s32.totalorder %s18, 1
    %p172 = por %p170, %p171
    %p173 = scmp.ne.s32.totalorder %s162, %s163
    %p174 = scmp.eq.s32.totalorder %s18, 0
    %p175 = por %p173, %p174
    %p176 = scmp.ne.s32.totalorder %s162, %s163
    %p177 = scmp.eq.s32.totalorder %s19, 1
    %p178 = por %p176, %p177
    %p180 = scmp.ne.s32.totalorder %s163, %s179
    %p181 = scmp.eq.s32.totalorder %s19, 0
    %p182 = por %p180, %p181
    %p183 = scmp.le.s32.totalorder 1, %s13
    %p184 = scmp.lt.s32.totalorder %s13, 3
    %p185 = pnand %p183, %p184
    %p186 = pneg %p185
    // Predicated region
    $region9: #{basic_block_forward.2} parent=5 // pred_check
      _
    $region10: #{basic_block_forward.2} parent=5 // pred_check_branch
      %188 = sbr.rel (%p185) target = $region12
    $region11: #{basic_block_forward.2} parent=5 // pred_region
      %s189 = ssub.s32 %s13, 1
      // Predicated region
      $region13: #{basic_block_forward.2} parent=11 // pred_check
        %p190 = pneg %p60
      $region14: #{basic_block_forward.2} parent=11 // pred_check_branch
        %192 = sbr.rel (%p190) target = $region16
      $region15: #{basic_block_forward.2} parent=11 // pred_region
        _
      $region16: #{basic_block_forward.2} parent=11 // pred_fallthru
        _
      // Predicated region
      $region17: #{basic_block_forward.2} parent=11 // pred_check
        %p193 = pneg %p81
      $region18: #{basic_block_forward.2} parent=11 // pred_check_branch
        %195 = sbr.rel (%p193) target = $region20
      $region19: #{basic_block_forward.2} parent=11 // pred_region
        _
      $region20: #{basic_block_forward.2} parent=11 // pred_fallthru
        _
      // Predicated region
      $region21: #{basic_block_forward.2} parent=11 // pred_check
        %p196 = pneg %p102
      $region22: #{basic_block_forward.2} parent=11 // pred_check_branch
        %198 = sbr.rel (%p196) target = $region24
      $region23: #{basic_block_forward.2} parent=11 // pred_region
        _
      $region24: #{basic_block_forward.2} parent=11 // pred_fallthru
        _
      // Predicated region
      $region25: #{basic_block_forward.2} parent=11 // pred_check
        %p199 = pneg %p123
      $region26: #{basic_block_forward.2} parent=11 // pred_check_branch
        %201 = sbr.rel (%p199) target = $region28
      $region27: #{basic_block_forward.2} parent=11 // pred_region
        _
      $region28: #{basic_block_forward.2} parent=11 // pred_fallthru
        _
    $region12: #{basic_block_forward.2} parent=5 // pred_fallthru
      _
    %p202 = scmp.lt.s32.totalorder %s13, 2
    // Predicated region
    $region29: #{basic_block_forward.2} parent=5 // pred_check
      %p203 = pneg %p202
    $region30: #{basic_block_forward.2} parent=5 // pred_check_branch
      %205 = sbr.rel (%p203) target = $region32
    $region31: #{basic_block_forward.2} parent=5 // pred_region
      // Predicated region
      $region33: #{basic_block_forward.2} parent=31 // pred_check
        %p206 = pneg %p33
      $region34: #{basic_block_forward.2} parent=31 // pred_check_branch
        %208 = sbr.rel (%p206) target = $region36
      $region35: #{basic_block_forward.2} parent=31 // pred_region
        %p209 = scmp.lt.s32.totalorder %s13, 1
        %s210 = scalar_select %p209, %s13, 1
        %s211 = smul.addr %s210, 48
        %s212 = smul.addr %s211, 4
        %s213 = scalar_lea.vmem %s0, %s212
      $region36: #{basic_block_forward.2} parent=31 // pred_fallthru
        _
    $region32: #{basic_block_forward.2} parent=5 // pred_fallthru
      _
    %p214 = scmp.le.s32.totalorder 1, %s13
    %p215 = scmp.lt.s32.totalorder %s13, 3
    %p216 = pnand %p214, %p215
    %p217 = pneg %p216
    // Predicated region
    $region37: #{basic_block_forward.2} parent=5 // pred_check
      _
    $region38: #{basic_block_forward.2} parent=5 // pred_check_branch
      %219 = sbr.rel (%p216) target = $region40
    $region39: #{basic_block_forward.2} parent=5 // pred_region
      %s220 = ssub.s32 %s13, 1
      %p221 = scmp.lt.s32.totalorder %s18, 1
      %s222 = scalar_select %p221, %s18, 1
      %s223 = smul.addr %s222, 48
      %s224 = smul.addr %s223, 4
      %s225 = scalar_lea.vmem %s0, %s224
      %p226 = pneg %p39
      %p227 = pneg %p36
      %p228 = pneg %p60
      %p229 = pneg %p57
      %p230 = pneg %p81
      %p231 = pneg %p78
      %p232 = pneg %p102
      %p233 = pneg %p99
      %p234 = pneg %p123
      %p235 = pneg %p120
      %p236 = pneg %p149
      %p237 = pneg %p146
      %p238 = scmp.lt.s32.totalorder %s18, 1
      %s239 = scalar_select %p238, %s18, 1
      %s240 = smul.addr %s239, 9
      %s241 = smul.addr %s240, 4
      %s242 = scalar_lea.vmem %s5, %s241
      %p243 = pneg %p175
      %p244 = pneg %p172
      %p245 = scmp.lt.s32.totalorder %s18, 1
      %s246 = scalar_select %p245, %s18, 1
      %s247 = smul.addr %s246, 9
      %s248 = smul.addr %s247, 8
      %s249 = scalar_lea.vmem %s6, %s248
      %p250 = scmp.lt.s32.totalorder %s18, 1
      %s251 = scalar_select %p250, %s18, 1
      %s252 = smul.addr %s251, 48
      %s253 = smul.addr %s252, 4
      %s254 = scalar_lea.vmem %s0, %s253
      %p255 = scmp.lt.s32.totalorder %s18, 1
      %s256 = scalar_select %p255, %s18, 1
      %s257 = smul.addr %s256, 9
      %s258 = smul.addr %s257, 4
      %s259 = scalar_lea.vmem %s5, %s258
      %p260 = scmp.lt.s32.totalorder %s18, 1
      %s261 = scalar_select %p260, %s18, 1
      %s262 = smul.addr %s261, 9
      %s263 = smul.addr %s262, 8
      %s264 = scalar_lea.vmem %s6, %s263
      %v266 = vld [vmem:[%s254] sm:$0xf]
      %v267 = vld [vmem:[%s254 + $0x4] sm:$0xf]
      %v268 = vld [vmem:[%s254 + $0x8] sm:$0xf]
      %v269 = vld [vmem:[%s254 + $0xc] sm:$0xf]
      %v270 = vld [vmem:[%s254 + $0x10] sm:$0xf]
      %v271 = vld [vmem:[%s254 + $0x14] sm:$0xf]
      %v272 = vld [vmem:[%s254 + $0x18] sm:$0xf]
      %v273 = vld [vmem:[%s254 + $0x1c] sm:$0xf]
      %v274 = vld [vmem:[%s254 + $0x20] sm:$0xf]
      %v275 = vld [vmem:[%s1] sm:$0x3]
      %s276 = scalar_lea.vmem %s254, 48
      %v277 = vld [vmem:[%s276] sm:$0xf]
      %v278 = vld [vmem:[%s276 + $0x4] sm:$0xf]
      %v279 = vld [vmem:[%s276 + $0x8] sm:$0xf]
      %v280 = vld [vmem:[%s276 + $0xc] sm:$0xf]
      %v281 = vld [vmem:[%s276 + $0x10] sm:$0xf]
      %v282 = vld [vmem:[%s276 + $0x14] sm:$0xf]
      %v283 = vld [vmem:[%s276 + $0x18] sm:$0xf]
      %v284 = vld [vmem:[%s276 + $0x1c] sm:$0xf]
      %v285 = vld [vmem:[%s276 + $0x20] sm:$0xf]
      %s286 = scalar_lea.vmem %s1, 2
      %v287 = vld [vmem:[%s286] sm:$0x3]
      %v297 = vunpack.c.l.b16 %v277
      %v298 = vunpack.c.l.b16 %v278
      %v299 = vunpack.c.l.b16 %v279
      %v300 = vunpack.c.l.b16 %v280
      %v301 = vunpack.c.l.b16 %v281
      %v302 = vunpack.c.l.b16 %v282
      %v303 = vunpack.c.l.b16 %v283
      %v304 = vunpack.c.l.b16 %v284
      %v305 = vunpack.c.l.b16 %v285
      %v306 = vpack.c.b16 %v298, %v297
      %v307 = vpack.c.b16 %v300, %v299
      %v308 = vpack.c.b16 %v302, %v301
      %v309 = vpack.c.b16 %v304, %v303
      %v310 = vpack.c.b16 %v305, %v305
      %vm311 = vcmask 31744
      %v313 = vsel %vm311, %v306, 0
      %v316 = vsel %vm311, %v307, 0
      %v319 = vsel %vm311, %v308, 0
      %v322 = vsel %vm311, %v309, 0
      %v325 = vsel %vm311, %v310, 0
      %vm327 = vcmask 1041408
      %v329 = vsel %vm327, %v287, 0
      %331 = vmatprep.subr.bf16.mxu0 0
      %332 = vmatpush1.bf16.msra.mxu0 %v329
      %333 = vmatprep.subr.bf16.mxu0 0
      %334 = vmatpush1.bf16.msra.mxu0 0
      %335 = vmatprep.subr.bf16.mxu0 0
      %336 = vmatpush1.bf16.msra.mxu0 0
      %337 = vmatprep.subr.bf16.mxu0 0
      %338 = vmatpush1.bf16.msra.mxu0 0
      %339 = vmatprep.subr.bf16.mxu0 0
      %340 = vmatpush1.bf16.msra.mxu0 0
      %341 = vmatprep.subr.bf16.mxu0 0
      %342 = vmatpush1.bf16.msra.mxu0 0
      %343 = vmatprep.subr.bf16.mxu0 0
      %344 = vmatpush1.bf16.msra.mxu0 0
      %345 = vmatprep.subr.bf16.mxu0 0
      %346 = vmatpush1.bf16.msra.mxu0 0
      %347 = vmatprep.subr.bf16.mxu0 0
      %348 = vmatpush1.bf16.msra.mxu0 0
      %349 = vmatprep.subr.bf16.mxu0 0
      %350 = vmatpush1.bf16.msra.mxu0 0
      %351 = vmatprep.subr.bf16.mxu0 0
      %352 = vmatpush1.bf16.msra.mxu0 0
      %353 = vmatprep.subr.bf16.mxu0 0
      %354 = vmatpush1.bf16.msra.mxu0 0
      %355 = vmatprep.subr.bf16.mxu0 0
      %356 = vmatpush1.bf16.msra.mxu0 0
      %357 = vmatprep.subr.bf16.mxu0 0
      %358 = vmatpush1.bf16.msra.mxu0 0
      %359 = vmatprep.subr.bf16.mxu0 0
      %360 = vmatpush1.bf16.msra.mxu0 0
      %361 = vmatprep.subr.bf16.mxu0 0
      %362 = vmatpush1.bf16.msra.mxu0 0
      %363 = vmatprep.mubr.bf16.mxu0 0
      %364 = vmatmul.mubr.bf16.gmra.mrb[0].mxu0 %v313
      %v365 = vpop.f32.mrb[0].mxu0
      %v366 = vadd.f32 0.0, %v365
      %v367 = vpop.f32.mrb[0].mxu0
      %v368 = vpop.f32.mrb[0].mxu0
      %v369 = vadd.f32 0.0, %v368
      %v370 = vpop.f32.mrb[0].mxu0
      %371 = vmatprep.mubr.bf16.mxu0 0
      %372 = vmatmul.mubr.bf16.gmra.mrb[0].mxu0 %v316
      %v373 = vpop.f32.mrb[0].mxu0
      %v374 = vadd.f32 0.0, %v373
      %v375 = vpop.f32.mrb[0].mxu0
      %v376 = vpop.f32.mrb[0].mxu0
      %v377 = vadd.f32 0.0, %v376
      %v378 = vpop.f32.mrb[0].mxu0
      %379 = vmatprep.mubr.bf16.mxu0 0
      %380 = vmatmul.mubr.bf16.gmra.mrb[0].mxu0 %v319
      %v381 = vpop.f32.mrb[0].mxu0
      %v382 = vadd.f32 0.0, %v381
      %v383 = vpop.f32.mrb[0].mxu0
      %v384 = vpop.f32.mrb[0].mxu0
      %v385 = vadd.f32 0.0, %v384
      %v386 = vpop.f32.mrb[0].mxu0
      %387 = vmatprep.mubr.bf16.mxu0 0
      %388 = vmatmul.mubr.bf16.gmra.mrb[0].mxu0 %v322
      %v389 = vpop.f32.mrb[0].mxu0
      %v390 = vadd.f32 0.0, %v389
      %v391 = vpop.f32.mrb[0].mxu0
      %v392 = vpop.f32.mrb[0].mxu0
      %v393 = vadd.f32 0.0, %v392
      %v394 = vpop.f32.mrb[0].mxu0
      %395 = vmatprep.mubr.bf16.mxu0 0
      %396 = vmatmul.mubr.bf16.gmra.mrb[0].mxu0 %v325
      %v397 = vpop.f32.mrb[0].mxu0
      %v398 = vadd.f32 0.0, %v397
      %v399 = vpop.f32.mrb[0].mxu0
      %v400 = vpop.f32.mrb[0].mxu0
      %v401 = vpop.f32.mrb[0].mxu0
      %402 = vdwg.mxu0
      %v412 = vunpack.c.l.b16 %v266
      %v413 = vunpack.c.l.b16 %v267
      %v414 = vunpack.c.l.b16 %v268
      %v415 = vunpack.c.l.b16 %v269
      %v416 = vunpack.c.l.b16 %v270
      %v417 = vunpack.c.l.b16 %v271
      %v418 = vunpack.c.l.b16 %v272
      %v419 = vunpack.c.l.b16 %v273
      %v420 = vunpack.c.l.b16 %v274
      %v421 = vpack.c.b16 %v413, %v412
      %v422 = vpack.c.b16 %v415, %v414
      %v423 = vpack.c.b16 %v417, %v416
      %v424 = vpack.c.b16 %v419, %v418
      %v425 = vpack.c.b16 %v420, %v420
      %v427 = vsel %vm311, %v421, 0
      %v430 = vsel %vm311, %v422, 0
      %v433 = vsel %vm311, %v423, 0
      %v436 = vsel %vm311, %v424, 0
      %v439 = vsel %vm311, %v425, 0
      %v442 = vsel %vm327, %v275, 0
      %444 = vmatprep.subr.bf16.mxu0 0
      %445 = vmatpush1.bf16.msra.mxu0 %v442
      %446 = vmatprep.subr.bf16.mxu0 0
      %447 = vmatpush1.bf16.msra.mxu0 0
      %448 = vmatprep.subr.bf16.mxu0 0
      %449 = vmatpush1.bf16.msra.mxu0 0
      %450 = vmatprep.subr.bf16.mxu0 0
      %451 = vmatpush1.bf16.msra.mxu0 0
      %452 = vmatprep.subr.bf16.mxu0 0
      %453 = vmatpush1.bf16.msra.mxu0 0
      %454 = vmatprep.subr.bf16.mxu0 0
      %455 = vmatpush1.bf16.msra.mxu0 0
      %456 = vmatprep.subr.bf16.mxu0 0
      %457 = vmatpush1.bf16.msra.mxu0 0
      %458 = vmatprep.subr.bf16.mxu0 0
      %459 = vmatpush1.bf16.msra.mxu0 0
      %460 = vmatprep.subr.bf16.mxu0 0
      %461 = vmatpush1.bf16.msra.mxu0 0
      %462 = vmatprep.subr.bf16.mxu0 0
      %463 = vmatpush1.bf16.msra.mxu0 0
      %464 = vmatprep.subr.bf16.mxu0 0
      %465 = vmatpush1.bf16.msra.mxu0 0
      %466 = vmatprep.subr.bf16.mxu0 0
      %467 = vmatpush1.bf16.msra.mxu0 0
      %468 = vmatprep.subr.bf16.mxu0 0
      %469 = vmatpush1.bf16.msra.mxu0 0
      %470 = vmatprep.subr.bf16.mxu0 0
      %471 = vmatpush1.bf16.msra.mxu0 0
      %472 = vmatprep.subr.bf16.mxu0 0
      %473 = vmatpush1.bf16.msra.mxu0 0
      %474 = vmatprep.subr.bf16.mxu0 0
      %475 = vmatpush1.bf16.msra.mxu0 0
      %476 = vmatprep.mubr.bf16.mxu0 0
      %477 = vmatmul.mubr.bf16.gmra.mrb[0].mxu0 %v427
      %v478 = vpop.f32.mrb[0].mxu0
      %v479 = vadd.f32 %v366, %v478
      %v480 = vpop.f32.mrb[0].mxu0
      %v481 = vpop.f32.mrb[0].mxu0
      %v482 = vadd.f32 %v369, %v481
      %v483 = vpop.f32.mrb[0].mxu0
      %484 = vmatprep.mubr.bf16.mxu0 0
      %485 = vmatmul.mubr.bf16.gmra.mrb[0].mxu0 %v430
      %v486 = vpop.f32.mrb[0].mxu0
      %v487 = vadd.f32 %v374, %v486
      %v488 = vpop.f32.mrb[0].mxu0
      %v489 = vpop.f32.mrb[0].mxu0
      %v490 = vadd.f32 %v377, %v489
      %v491 = vpop.f32.mrb[0].mxu0
      %492 = vmatprep.mubr.bf16.mxu0 0
      %493 = vmatmul.mubr.bf16.gmra.mrb[0].mxu0 %v433
      %v494 = vpop.f32.mrb[0].mxu0
      %v495 = vadd.f32 %v382, %v494
      %v496 = vpop.f32.mrb[0].mxu0
      %v497 = vpop.f32.mrb[0].mxu0
      %v498 = vadd.f32 %v385, %v497
      %v499 = vpop.f32.mrb[0].mxu0
      %500 = vmatprep.mubr.bf16.mxu0 0
      %501 = vmatmul.mubr.bf16.gmra.mrb[0].mxu0 %v436
      %v502 = vpop.f32.mrb[0].mxu0
      %v503 = vadd.f32 %v390, %v502
      %v504 = vpop.f32.mrb[0].mxu0
      %v505 = vpop.f32.mrb[0].mxu0
      %v506 = vadd.f32 %v393, %v505
      %v507 = vpop.f32.mrb[0].mxu0
      %508 = vmatprep.mubr.bf16.mxu0 0
      %509 = vmatmul.mubr.bf16.gmra.mrb[0].mxu0 %v439
      %v510 = vpop.f32.mrb[0].mxu0
      %v511 = vadd.f32 %v398, %v510
      %v512 = vpop.f32.mrb[0].mxu0
      %v513 = vpop.f32.mrb[0].mxu0
      %v514 = vpop.f32.mrb[0].mxu0
      %515 = vdwg.mxu0
      %v516 = vld [vmem:[%s254] sm:$0xf]
      %v517 = vld [vmem:[%s254 + $0x4] sm:$0xf]
      %v518 = vld [vmem:[%s254 + $0x8] sm:$0xf]
      %v519 = vld [vmem:[%s254 + $0xc] sm:$0xf]
      %v520 = vld [vmem:[%s254 + $0x10] sm:$0xf]
      %v521 = vld [vmem:[%s254 + $0x14] sm:$0xf]
      %v522 = vld [vmem:[%s254 + $0x18] sm:$0xf]
      %v523 = vld [vmem:[%s254 + $0x1c] sm:$0xf]
      %v524 = vld [vmem:[%s254 + $0x20] sm:$0xf]
      %v525 = vld [vmem:[%s254 + $0x24] sm:$0x1]
      %s526 = scalar_lea.vmem %s1, 4
      %v527 = vld [vmem:[%s526] sm:$0x3]
      %v538 = vunpack.c.l.b16 %v516
      %v539 = vunpack.c.l.b16 %v517
      %v540 = vunpack.c.l.b16 %v518
      %v541 = vunpack.c.l.b16 %v519
      %v542 = vunpack.c.l.b16 %v520
      %v543 = vunpack.c.l.b16 %v521
      %v544 = vunpack.c.l.b16 %v522
      %v545 = vunpack.c.l.b16 %v523
      %v546 = vunpack.c.l.b16 %v524
      %v547 = vunpack.c.l.b16 %v525
      %v548 = vpack.c.b16 %v539, %v538
      %v549 = vpack.c.b16 %v541, %v540
      %v550 = vpack.c.b16 %v543, %v542
      %v551 = vpack.c.b16 %v545, %v544
      %v552 = vpack.c.b16 %v547, %v546
      %vm553 = vsmask.f32 7424
      %v555 = vshrl.u32 %v548, 16
      %v557 = vshll.u32 %v548, 16
      %v559 = vrot.slane %v557, 1
      %v560 = vor.u32 %v555, %v559
      %v562 = vshll.u32 %v549, 16
      %v564 = vrot.slane %v562, 1
      %v565 = vsel %vm553, %v560, %v564
      %v566 = vshrl.u32 %v549, 16
      %v568 = vor.u32 %v566, %v564
      %v570 = vshll.u32 %v550, 16
      %v572 = vrot.slane %v570, 1
      %v573 = vsel %vm553, %v568, %v572
      %v574 = vshrl.u32 %v550, 16
      %v576 = vor.u32 %v574, %v572
      %v578 = vshll.u32 %v551, 16
      %v580 = vrot.slane %v578, 1
      %v581 = vsel %vm553, %v576, %v580
      %v582 = vshrl.u32 %v551, 16
      %v584 = vor.u32 %v582, %v580
      %v586 = vshll.u32 %v552, 16
      %v588 = vrot.slane %v586, 1
      %v589 = vsel %vm553, %v584, %v588
      %v590 = vshrl.u32 %v552, 16
      %v592 = vor.u32 %v590, %v588
      %v594 = vsel %vm311, %v565, 0
      %v597 = vsel %vm311, %v573, 0
      %v600 = vsel %vm311, %v581, 0
      %v603 = vsel %vm311, %v589, 0
      %v606 = vsel %vm311, %v592, 0
      %v609 = vsel %vm327, %v527, 0
      %611 = vmatprep.subr.bf16.mxu0 0
      %612 = vmatpush1.bf16.msra.mxu0 %v609
      %613 = vmatprep.subr.bf16.mxu0 0
      %614 = vmatpush1.bf16.msra.mxu0 0
      %615 = vmatprep.subr.bf16.mxu0 0
      %616 = vmatpush1.bf16.msra.mxu0 0
      %617 = vmatprep.subr.bf16.mxu0 0
      %618 = vmatpush1.bf16.msra.mxu0 0
      %619 = vmatprep.subr.bf16.mxu0 0
      %620 = vmatpush1.bf16.msra.mxu0 0
      %621 = vmatprep.subr.bf16.mxu0 0
      %622 = vmatpush1.bf16.msra.mxu0 0
      %623 = vmatprep.subr.bf16.mxu0 0
      %624 = vmatpush1.bf16.msra.mxu0 0
      %625 = vmatprep.subr.bf16.mxu0 0
      %626 = vmatpush1.bf16.msra.mxu0 0
      %627 = vmatprep.subr.bf16.mxu0 0
      %628 = vmatpush1.bf16.msra.mxu0 0
      %629 = vmatprep.subr.bf16.mxu0 0
      %630 = vmatpush1.bf16.msra.mxu0 0
      %631 = vmatprep.subr.bf16.mxu0 0
      %632 = vmatpush1.bf16.msra.mxu0 0
      %633 = vmatprep.subr.bf16.mxu0 0
      %634 = vmatpush1.bf16.msra.mxu0 0
      %635 = vmatprep.subr.bf16.mxu0 0
      %636 = vmatpush1.bf16.msra.mxu0 0
      %637 = vmatprep.subr.bf16.mxu0 0
      %638 = vmatpush1.bf16.msra.mxu0 0
      %639 = vmatprep.subr.bf16.mxu0 0
      %640 = vmatpush1.bf16.msra.mxu0 0
      %641 = vmatprep.subr.bf16.mxu0 0
      %642 = vmatpush1.bf16.msra.mxu0 0
      %643 = vmatprep.mubr.bf16.mxu0 0
      %644 = vmatmul.mubr.bf16.gmra.mrb[0].mxu0 %v594
      %v645 = vpop.f32.mrb[0].mxu0
      %v646 = vadd.f32 0.0, %v645
      %v647 = vpop.f32.mrb[0].mxu0
      %v648 = vpop.f32.mrb[0].mxu0
      %v649 = vadd.f32 0.0, %v648
      %v650 = vpop.f32.mrb[0].mxu0
      %651 = vmatprep.mubr.bf16.mxu0 0
      %652 = vmatmul.mubr.bf16.gmra.mrb[0].mxu0 %v597
      %v653 = vpop.f32.mrb[0].mxu0
      %v654 = vadd.f32 0.0, %v653
      %v655 = vpop.f32.mrb[0].mxu0
      %v656 = vpop.f32.mrb[0].mxu0
      %v657 = vadd.f32 0.0, %v656
      %v658 = vpop.f32.mrb[0].mxu0
      %659 = vmatprep.mubr.bf16.mxu0 0
      %660 = vmatmul.mubr.bf16.gmra.mrb[0].mxu0 %v600
      %v661 = vpop.f32.mrb[0].mxu0
      %v662 = vadd.f32 0.0, %v661
      %v663 = vpop.f32.mrb[0].mxu0
      %v664 = vpop.f32.mrb[0].mxu0
      %v665 = vadd.f32 0.0, %v664
      %v666 = vpop.f32.mrb[0].mxu0
      %667 = vmatprep.mubr.bf16.mxu0 0
      %668 = vmatmul.mubr.bf16.gmra.mrb[0].mxu0 %v603
      %v669 = vpop.f32.mrb[0].mxu0
      %v670 = vadd.f32 0.0, %v669
      %v671 = vpop.f32.mrb[0].mxu0
      %v672 = vpop.f32.mrb[0].mxu0
      %v673 = vadd.f32 0.0, %v672
      %v674 = vpop.f32.mrb[0].mxu0
      %675 = vmatprep.mubr.bf16.mxu0 0
      %676 = vmatmul.mubr.bf16.gmra.mrb[0].mxu0 %v606
      %v677 = vpop.f32.mrb[0].mxu0
      %v678 = vadd.f32 0.0, %v677
      %v679 = vpop.f32.mrb[0].mxu0
      %v680 = vpop.f32.mrb[0].mxu0
      %v681 = vpop.f32.mrb[0].mxu0
      %682 = vdwg.mxu0
      %v683 = vadd.f32 %v479, %v646
      %v684 = vadd.f32 %v482, %v649
      %v685 = vadd.f32 %v487, %v654
      %v686 = vadd.f32 %v490, %v657
      %v687 = vadd.f32 %v495, %v662
      %v688 = vadd.f32 %v498, %v665
      %v689 = vadd.f32 %v503, %v670
      %v690 = vadd.f32 %v506, %v673
      %v691 = vadd.f32 %v511, %v678
      %s692 = scalar_lea.vmem %s254, 96
      %v693 = vld [vmem:[%s692] sm:$0xf]
      %v694 = vld [vmem:[%s692 + $0x4] sm:$0xf]
      %v695 = vld [vmem:[%s692 + $0x8] sm:$0xf]
      %v696 = vld [vmem:[%s692 + $0xc] sm:$0xf]
      %v697 = vld [vmem:[%s692 + $0x10] sm:$0xf]
      %v698 = vld [vmem:[%s692 + $0x14] sm:$0xf]
      %v699 = vld [vmem:[%s692 + $0x18] sm:$0xf]
      %v700 = vld [vmem:[%s692 + $0x1c] sm:$0xf]
      %v701 = vld [vmem:[%s692 + $0x20] sm:$0xf]
      %s702 = scalar_lea.vmem %s1, 6
      %v703 = vld [vmem:[%s702] sm:$0x3]
      %v713 = vunpack.c.l.b16 %v693
      %v714 = vunpack.c.l.b16 %v694
      %v715 = vunpack.c.l.b16 %v695
      %v716 = vunpack.c.l.b16 %v696
      %v717 = vunpack.c.l.b16 %v697
      %v718 = vunpack.c.l.b16 %v698
      %v719 = vunpack.c.l.b16 %v699
      %v720 = vunpack.c.l.b16 %v700
      %v721 = vunpack.c.l.b16 %v701
      %v722 = vpack.c.b16 %v714, %v713
      %v723 = vpack.c.b16 %v716, %v715
      %v724 = vpack.c.b16 %v718, %v717
      %v725 = vpack.c.b16 %v720, %v719
      %v726 = vpack.c.b16 %v721, %v721
      %v728 = vsel %vm311, %v722, 0
      %v731 = vsel %vm311, %v723, 0
      %v734 = vsel %vm311, %v724, 0
      %v737 = vsel %vm311, %v725, 0
      %v740 = vsel %vm311, %v726, 0
      %v743 = vsel %vm327, %v703, 0
      %745 = vmatprep.subr.bf16.mxu0 0
      %746 = vmatpush1.bf16.msra.mxu0 %v743
      %747 = vmatprep.subr.bf16.mxu0 0
      %748 = vmatpush1.bf16.msra.mxu0 0
      %749 = vmatprep.subr.bf16.mxu0 0
      %750 = vmatpush1.bf16.msra.mxu0 0
      %751 = vmatprep.subr.bf16.mxu0 0
      %752 = vmatpush1.bf16.msra.mxu0 0
      %753 = vmatprep.subr.bf16.mxu0 0
      %754 = vmatpush1.bf16.msra.mxu0 0
      %755 = vmatprep.subr.bf16.mxu0 0
      %756 = vmatpush1.bf16.msra.mxu0 0
      %757 = vmatprep.subr.bf16.mxu0 0
      %758 = vmatpush1.bf16.msra.mxu0 0
      %759 = vmatprep.subr.bf16.mxu0 0
      %760 = vmatpush1.bf16.msra.mxu0 0
      %761 = vmatprep.subr.bf16.mxu0 0
      %762 = vmatpush1.bf16.msra.mxu0 0
      %763 = vmatprep.subr.bf16.mxu0 0
      %764 = vmatpush1.bf16.msra.mxu0 0
      %765 = vmatprep.subr.bf16.mxu0 0
      %766 = vmatpush1.bf16.msra.mxu0 0
      %767 = vmatprep.subr.bf16.mxu0 0
      %768 = vmatpush1.bf16.msra.mxu0 0
      %769 = vmatprep.subr.bf16.mxu0 0
      %770 = vmatpush1.bf16.msra.mxu0 0
      %771 = vmatprep.subr.bf16.mxu0 0
      %772 = vmatpush1.bf16.msra.mxu0 0
      %773 = vmatprep.subr.bf16.mxu0 0
      %774 = vmatpush1.bf16.msra.mxu0 0
      %775 = vmatprep.subr.bf16.mxu0 0
      %776 = vmatpush1.bf16.msra.mxu0 0
      %777 = vmatprep.mubr.bf16.mxu0 0
      %778 = vmatmul.mubr.bf16.gmra.mrb[0].mxu0 %v728
      %v779 = vpop.f32.mrb[0].mxu0
      %v780 = vadd.f32 0.0, %v779
      %v781 = vpop.f32.mrb[0].mxu0
      %v782 = vpop.f32.mrb[0].mxu0
      %v783 = vadd.f32 0.0, %v782
      %v784 = vpop.f32.mrb[0].mxu0
      %785 = vmatprep.mubr.bf16.mxu0 0
      %786 = vmatmul.mubr.bf16.gmra.mrb[0].mxu0 %v731
      %v787 = vpop.f32.mrb[0].mxu0
      %v788 = vadd.f32 0.0, %v787
      %v789 = vpop.f32.mrb[0].mxu0
      %v790 = vpop.f32.mrb[0].mxu0
      %v791 = vadd.f32 0.0, %v790
      %v792 = vpop.f32.mrb[0].mxu0
      %793 = vmatprep.mubr.bf16.mxu0 0
      %794 = vmatmul.mubr.bf16.gmra.mrb[0].mxu0 %v734
      %v795 = vpop.f32.mrb[0].mxu0
      %v796 = vadd.f32 0.0, %v795
      %v797 = vpop.f32.mrb[0].mxu0
      %v798 = vpop.f32.mrb[0].mxu0
      %v799 = vadd.f32 0.0, %v798
      %v800 = vpop.f32.mrb[0].mxu0
      %801 = vmatprep.mubr.bf16.mxu0 0
      %802 = vmatmul.mubr.bf16.gmra.mrb[0].mxu0 %v737
      %v803 = vpop.f32.mrb[0].mxu0
      %v804 = vadd.f32 0.0, %v803
      %v805 = vpop.f32.mrb[0].mxu0
      %v806 = vpop.f32.mrb[0].mxu0
      %v807 = vadd.f32 0.0, %v806
      %v808 = vpop.f32.mrb[0].mxu0
      %809 = vmatprep.mubr.bf16.mxu0 0
      %810 = vmatmul.mubr.bf16.gmra.mrb[0].mxu0 %v740
      %v811 = vpop.f32.mrb[0].mxu0
      %v812 = vadd.f32 0.0, %v811
      %v813 = vpop.f32.mrb[0].mxu0
      %v814 = vpop.f32.mrb[0].mxu0
      %v815 = vpop.f32.mrb[0].mxu0
      %816 = vdwg.mxu0
      %v817 = vadd.f32 %v683, %v780
      %v818 = vadd.f32 %v684, %v783
      %v819 = vadd.f32 %v685, %v788
      %v820 = vadd.f32 %v686, %v791
      %v821 = vadd.f32 %v687, %v796
      %v822 = vadd.f32 %v688, %v799
      %v823 = vadd.f32 %v689, %v804
      %v824 = vadd.f32 %v690, %v807
      %v825 = vadd.f32 %v691, %v812
      %s826 = scalar_lea.vmem %s254, 144
      %v827 = vld [vmem:[%s826] sm:$0xf]
      %v828 = vld [vmem:[%s826 + $0x4] sm:$0xf]
      %v829 = vld [vmem:[%s826 + $0x8] sm:$0xf]
      %v830 = vld [vmem:[%s826 + $0xc] sm:$0xf]
      %v831 = vld [vmem:[%s826 + $0x10] sm:$0xf]
      %v832 = vld [vmem:[%s826 + $0x14] sm:$0xf]
      %v833 = vld [vmem:[%s826 + $0x18] sm:$0xf]
      %v834 = vld [vmem:[%s826 + $0x1c] sm:$0xf]
      %v835 = vld [vmem:[%s826 + $0x20] sm:$0xf]
      %s836 = scalar_lea.vmem %s1, 8
      %v837 = vld [vmem:[%s836] sm:$0x3]
      %v847 = vunpack.c.l.b16 %v827
      %v848 = vunpack.c.l.b16 %v828
      %v849 = vunpack.c.l.b16 %v829
      %v850 = vunpack.c.l.b16 %v830
      %v851 = vunpack.c.l.b16 %v831
      %v852 = vunpack.c.l.b16 %v832
      %v853 = vunpack.c.l.b16 %v833
      %v854 = vunpack.c.l.b16 %v834
      %v855 = vunpack.c.l.b16 %v835
      %v856 = vpack.c.b16 %v848, %v847
      %v857 = vpack.c.b16 %v850, %v849
      %v858 = vpack.c.b16 %v852, %v851
      %v859 = vpack.c.b16 %v854, %v853
      %v860 = vpack.c.b16 %v855, %v855
      %v862 = vsel %vm311, %v856, 0
      %v865 = vsel %vm311, %v857, 0
      %v868 = vsel %vm311, %v858, 0
      %v871 = vsel %vm311, %v859, 0
      %v874 = vsel %vm311, %v860, 0
      %v877 = vsel %vm327, %v837, 0
      %879 = vmatprep.subr.bf16.mxu0 0
      %880 = vmatpush1.bf16.msra.mxu0 %v877
      %881 = vmatprep.subr.bf16.mxu0 0
      %882 = vmatpush1.bf16.msra.mxu0 0
      %883 = vmatprep.subr.bf16.mxu0 0
      %884 = vmatpush1.bf16.msra.mxu0 0
      %885 = vmatprep.subr.bf16.mxu0 0
      %886 = vmatpush1.bf16.msra.mxu0 0
      %887 = vmatprep.subr.bf16.mxu0 0
      %888 = vmatpush1.bf16.msra.mxu0 0
      %889 = vmatprep.subr.bf16.mxu0 0
      %890 = vmatpush1.bf16.msra.mxu0 0
      %891 = vmatprep.subr.bf16.mxu0 0
      %892 = vmatpush1.bf16.msra.mxu0 0
      %893 = vmatprep.subr.bf16.mxu0 0
      %894 = vmatpush1.bf16.msra.mxu0 0
      %895 = vmatprep.subr.bf16.mxu0 0
      %896 = vmatpush1.bf16.msra.mxu0 0
      %897 = vmatprep.subr.bf16.mxu0 0
      %898 = vmatpush1.bf16.msra.mxu0 0
      %899 = vmatprep.subr.bf16.mxu0 0
      %900 = vmatpush1.bf16.msra.mxu0 0
      %901 = vmatprep.subr.bf16.mxu0 0
      %902 = vmatpush1.bf16.msra.mxu0 0
      %903 = vmatprep.subr.bf16.mxu0 0
      %904 = vmatpush1.bf16.msra.mxu0 0
      %905 = vmatprep.subr.bf16.mxu0 0
      %906 = vmatpush1.bf16.msra.mxu0 0
      %907 = vmatprep.subr.bf16.mxu0 0
      %908 = vmatpush1.bf16.msra.mxu0 0
      %909 = vmatprep.subr.bf16.mxu0 0
      %910 = vmatpush1.bf16.msra.mxu0 0
      %911 = vmatprep.mubr.bf16.mxu0 0
      %912 = vmatmul.mubr.bf16.gmra.mrb[0].mxu0 %v862
      %v913 = vpop.f32.mrb[0].mxu0
      %v914 = vadd.f32 0.0, %v913
      %v915 = vpop.f32.mrb[0].mxu0
      %v916 = vpop.f32.mrb[0].mxu0
      %v917 = vadd.f32 0.0, %v916
      %v918 = vpop.f32.mrb[0].mxu0
      %919 = vmatprep.mubr.bf16.mxu0 0
      %920 = vmatmul.mubr.bf16.gmra.mrb[0].mxu0 %v865
      %v921 = vpop.f32.mrb[0].mxu0
      %v922 = vadd.f32 0.0, %v921
      %v923 = vpop.f32.mrb[0].mxu0
      %v924 = vpop.f32.mrb[0].mxu0
      %v925 = vadd.f32 0.0, %v924
      %v926 = vpop.f32.mrb[0].mxu0
      %927 = vmatprep.mubr.bf16.mxu0 0
      %928 = vmatmul.mubr.bf16.gmra.mrb[0].mxu0 %v868
      %v929 = vpop.f32.mrb[0].mxu0
      %v930 = vadd.f32 0.0, %v929
      %v931 = vpop.f32.mrb[0].mxu0
      %v932 = vpop.f32.mrb[0].mxu0
      %v933 = vadd.f32 0.0, %v932
      %v934 = vpop.f32.mrb[0].mxu0
      %935 = vmatprep.mubr.bf16.mxu0 0
      %936 = vmatmul.mubr.bf16.gmra.mrb[0].mxu0 %v871
      %v937 = vpop.f32.mrb[0].mxu0
      %v938 = vadd.f32 0.0, %v937
      %v939 = vpop.f32.mrb[0].mxu0
      %v940 = vpop.f32.mrb[0].mxu0
      %v941 = vadd.f32 0.0, %v940
      %v942 = vpop.f32.mrb[0].mxu0
      %943 = vmatprep.mubr.bf16.mxu0 0
      %944 = vmatmul.mubr.bf16.gmra.mrb[0].mxu0 %v874
      %v945 = vpop.f32.mrb[0].mxu0
      %v946 = vadd.f32 0.0, %v945
      %v947 = vpop.f32.mrb[0].mxu0
      %v948 = vpop.f32.mrb[0].mxu0
      %v949 = vpop.f32.mrb[0].mxu0
      %950 = vdwg.mxu0
      %v951 = vadd.f32 %v817, %v914
      %v952 = vadd.f32 %v818, %v917
      %v953 = vadd.f32 %v819, %v922
      %v954 = vadd.f32 %v820, %v925
      %v955 = vadd.f32 %v821, %v930
      %v956 = vadd.f32 %v822, %v933
      %v957 = vadd.f32 %v823, %v938
      %v958 = vadd.f32 %v824, %v941
      %v959 = vadd.f32 %v825, %v946
      %v960 = vld [vmem:[%s692] sm:$0xf]
      %v961 = vld [vmem:[%s692 + $0x4] sm:$0xf]
      %v962 = vld [vmem:[%s692 + $0x8] sm:$0xf]
      %v963 = vld [vmem:[%s692 + $0xc] sm:$0xf]
      %v964 = vld [vmem:[%s692 + $0x10] sm:$0xf]
      %v965 = vld [vmem:[%s692 + $0x14] sm:$0xf]
      %v966 = vld [vmem:[%s692 + $0x18] sm:$0xf]
      %v967 = vld [vmem:[%s692 + $0x1c] sm:$0xf]
      %v968 = vld [vmem:[%s692 + $0x20] sm:$0xf]
      %v969 = vld [vmem:[%s692 + $0x24] sm:$0x1]
      %s970 = scalar_lea.vmem %s1, 10
      %v971 = vld [vmem:[%s970] sm:$0x3]
      %v982 = vunpack.c.l.b16 %v960
      %v983 = vunpack.c.l.b16 %v961
      %v984 = vunpack.c.l.b16 %v962
      %v985 = vunpack.c.l.b16 %v963
      %v986 = vunpack.c.l.b16 %v964
      %v987 = vunpack.c.l.b16 %v965
      %v988 = vunpack.c.l.b16 %v966
      %v989 = vunpack.c.l.b16 %v967
      %v990 = vunpack.c.l.b16 %v968
      %v991 = vunpack.c.l.b16 %v969
      %v992 = vpack.c.b16 %v983, %v982
      %v993 = vpack.c.b16 %v985, %v984
      %v994 = vpack.c.b16 %v987, %v986
      %v995 = vpack.c.b16 %v989, %v988
      %v996 = vpack.c.b16 %v991, %v990
      %v998 = vshrl.u32 %v992, 16
      %v1000 = vshll.u32 %v992, 16
      %v1002 = vrot.slane %v1000, 1
      %v1003 = vor.u32 %v998, %v1002
      %v1005 = vshll.u32 %v993, 16
      %v1007 = vrot.slane %v1005, 1
      %v1008 = vsel %vm553, %v1003, %v1007
      %v1009 = vshrl.u32 %v993, 16
      %v1011 = vor.u32 %v1009, %v1007
      %v1013 = vshll.u32 %v994, 16
      %v1015 = vrot.slane %v1013, 1
      %v1016 = vsel %vm553, %v1011, %v1015
      %v1017 = vshrl.u32 %v994, 16
      %v1019 = vor.u32 %v1017, %v1015
      %v1021 = vshll.u32 %v995, 16
      %v1023 = vrot.slane %v1021, 1
      %v1024 = vsel %vm553, %v1019, %v1023
      %v1025 = vshrl.u32 %v995, 16
      %v1027 = vor.u32 %v1025, %v1023
      %v1029 = vshll.u32 %v996, 16
      %v1031 = vrot.slane %v1029, 1
      %v1032 = vsel %vm553, %v1027, %v1031
      %v1033 = vshrl.u32 %v996, 16
      %v1035 = vor.u32 %v1033, %v1031
      %v1037 = vsel %vm311, %v1008, 0
      %v1040 = vsel %vm311, %v1016, 0
      %v1043 = vsel %vm311, %v1024, 0
      %v1046 = vsel %vm311, %v1032, 0
      %v1049 = vsel %vm311, %v1035, 0
      %v1052 = vsel %vm327, %v971, 0
      %1054 = vmatprep.subr.bf16.mxu0 0
      %1055 = vmatpush1.bf16.msra.mxu0 %v1052
      %1056 = vmatprep.subr.bf16.mxu0 0
      %1057 = vmatpush1.bf16.msra.mxu0 0
      %1058 = vmatprep.subr.bf16.mxu0 0
      %1059 = vmatpush1.bf16.msra.mxu0 0
      %1060 = vmatprep.subr.bf16.mxu0 0
      %1061 = vmatpush1.bf16.msra.mxu0 0
      %1062 = vmatprep.subr.bf16.mxu0 0
      %1063 = vmatpush1.bf16.msra.mxu0 0
      %1064 = vmatprep.subr.bf16.mxu0 0
      %1065 = vmatpush1.bf16.msra.mxu0 0
      %1066 = vmatprep.subr.bf16.mxu0 0
      %1067 = vmatpush1.bf16.msra.mxu0 0
      %1068 = vmatprep.subr.bf16.mxu0 0
      %1069 = vmatpush1.bf16.msra.mxu0 0
      %1070 = vmatprep.subr.bf16.mxu0 0
      %1071 = vmatpush1.bf16.msra.mxu0 0
      %1072 = vmatprep.subr.bf16.mxu0 0
      %1073 = vmatpush1.bf16.msra.mxu0 0
      %1074 = vmatprep.subr.bf16.mxu0 0
      %1075 = vmatpush1.bf16.msra.mxu0 0
      %1076 = vmatprep.subr.bf16.mxu0 0
      %1077 = vmatpush1.bf16.msra.mxu0 0
      %1078 = vmatprep.subr.bf16.mxu0 0
      %1079 = vmatpush1.bf16.msra.mxu0 0
      %1080 = vmatprep.subr.bf16.mxu0 0
      %1081 = vmatpush1.bf16.msra.mxu0 0
      %1082 = vmatprep.subr.bf16.mxu0 0
      %1083 = vmatpush1.bf16.msra.mxu0 0
      %1084 = vmatprep.subr.bf16.mxu0 0
      %1085 = vmatpush1.bf16.msra.mxu0 0
      %1086 = vmatprep.mubr.bf16.mxu0 0
      %1087 = vmatmul.mubr.bf16.gmra.mrb[0].mxu0 %v1037
      %v1088 = vpop.f32.mrb[0].mxu0
      %v1089 = vadd.f32 0.0, %v1088
      %v1090 = vpop.f32.mrb[0].mxu0
      %v1091 = vpop.f32.mrb[0].mxu0
      %v1092 = vadd.f32 0.0, %v1091
      %v1093 = vpop.f32.mrb[0].mxu0
      %1094 = vmatprep.mubr.bf16.mxu0 0
      %1095 = vmatmul.mubr.bf16.gmra.mrb[0].mxu0 %v1040
      %v1096 = vpop.f32.mrb[0].mxu0
      %v1097 = vadd.f32 0.0, %v1096
      %v1098 = vpop.f32.mrb[0].mxu0
      %v1099 = vpop.f32.mrb[0].mxu0
      %v1100 = vadd.f32 0.0, %v1099
      %v1101 = vpop.f32.mrb[0].mxu0
      %1102 = vmatprep.mubr.bf16.mxu0 0
      %1103 = vmatmul.mubr.bf16.gmra.mrb[0].mxu0 %v1043
      %v1104 = vpop.f32.mrb[0].mxu0
      %v1105 = vadd.f32 0.0, %v1104
      %v1106 = vpop.f32.mrb[0].mxu0
      %v1107 = vpop.f32.mrb[0].mxu0
      %v1108 = vadd.f32 0.0, %v1107
      %v1109 = vpop.f32.mrb[0].mxu0
      %1110 = vmatprep.mubr.bf16.mxu0 0
      %1111 = vmatmul.mubr.bf16.gmra.mrb[0].mxu0 %v1046
      %v1112 = vpop.f32.mrb[0].mxu0
      %v1113 = vadd.f32 0.0, %v1112
      %v1114 = vpop.f32.mrb[0].mxu0
      %v1115 = vpop.f32.mrb[0].mxu0
      %v1116 = vadd.f32 0.0, %v1115
      %v1117 = vpop.f32.mrb[0].mxu0
      %1118 = vmatprep.mubr.bf16.mxu0 0
      %1119 = vmatmul.mubr.bf16.gmra.mrb[0].mxu0 %v1049
      %v1120 = vpop.f32.mrb[0].mxu0
      %v1121 = vadd.f32 0.0, %v1120
      %v1122 = vpop.f32.mrb[0].mxu0
      %v1123 = vpop.f32.mrb[0].mxu0
      %v1124 = vpop.f32.mrb[0].mxu0
      %1125 = vdwg.mxu0
      %v1126 = vadd.f32 %v951, %v1089
      %v1127 = vadd.f32 %v952, %v1092
      %v1128 = vadd.f32 %v953, %v1097
      %v1129 = vadd.f32 %v954, %v1100
      %v1130 = vadd.f32 %v955, %v1105
      %v1131 = vadd.f32 %v956, %v1108
      %v1132 = vadd.f32 %v957, %v1113
      %v1133 = vadd.f32 %v958, %v1116
      %v1134 = vadd.f32 %v959, %v1121
      %v1135 = vld [vmem:[%s254 + $0x4] sm:$0xf]
      %v1136 = vld [vmem:[%s254 + $0x8] sm:$0xf]
      %v1137 = vld [vmem:[%s254 + $0xc] sm:$0xf]
      %v1138 = vld [vmem:[%s254 + $0x10] sm:$0xf]
      %v1139 = vld [vmem:[%s254 + $0x14] sm:$0xf]
      %v1140 = vld [vmem:[%s254 + $0x18] sm:$0xf]
      %v1141 = vld [vmem:[%s254 + $0x1c] sm:$0xf]
      %v1142 = vld [vmem:[%s254 + $0x20] sm:$0xf]
      %v1143 = vld [vmem:[%s254 + $0x24] sm:$0xf]
      %v1144 = vld [vmem:[%s254 + $0x28] sm:$0x1]
      %s1145 = scalar_lea.vmem %s1, 12
      %v1146 = vld [vmem:[%s1145] sm:$0x3]
      %v1157 = vunpack.c.l.b16 %v1135
      %v1158 = vunpack.c.l.b16 %v1136
      %v1159 = vunpack.c.l.b16 %v1137
      %v1160 = vunpack.c.l.b16 %v1138
      %v1161 = vunpack.c.l.b16 %v1139
      %v1162 = vunpack.c.l.b16 %v1140
      %v1163 = vunpack.c.l.b16 %v1141
      %v1164 = vunpack.c.l.b16 %v1142
      %v1165 = vunpack.c.l.b16 %v1143
      %v1166 = vunpack.c.l.b16 %v1144
      %v1167 = vpack.c.b16 %v1158, %v1157
      %v1168 = vpack.c.b16 %v1160, %v1159
      %v1169 = vpack.c.b16 %v1162, %v1161
      %v1170 = vpack.c.b16 %v1164, %v1163
      %v1171 = vpack.c.b16 %v1166, %v1165
      %v1173 = vshrl.u32 %v1167, 16
      %v1175 = vshll.u32 %v1167, 16
      %v1177 = vrot.slane %v1175, 1
      %v1178 = vor.u32 %v1173, %v1177
      %v1180 = vshll.u32 %v1168, 16
      %v1182 = vrot.slane %v1180, 1
      %v1183 = vsel %vm553, %v1178, %v1182
      %v1184 = vshrl.u32 %v1168, 16
      %v1186 = vor.u32 %v1184, %v1182
      %v1188 = vshll.u32 %v1169, 16
      %v1190 = vrot.slane %v1188, 1
      %v1191 = vsel %vm553, %v1186, %v1190
      %v1192 = vshrl.u32 %v1169, 16
      %v1194 = vor.u32 %v1192, %v1190
      %v1196 = vshll.u32 %v1170, 16
      %v1198 = vrot.slane %v1196, 1
      %v1199 = vsel %vm553, %v1194, %v1198
      %v1200 = vshrl.u32 %v1170, 16
      %v1202 = vor.u32 %v1200, %v1198
      %v1204 = vshll.u32 %v1171, 16
      %v1206 = vrot.slane %v1204, 1
      %v1207 = vsel %vm553, %v1202, %v1206
      %v1208 = vshrl.u32 %v1171, 16
      %v1210 = vor.u32 %v1208, %v1206
      %v1212 = vsel %vm311, %v1183, 0
      %v1215 = vsel %vm311, %v1191, 0
      %v1218 = vsel %vm311, %v1199, 0
      %v1221 = vsel %vm311, %v1207, 0
      %v1224 = vsel %vm311, %v1210, 0
      %v1227 = vsel %vm327, %v1146, 0
      %1229 = vmatprep.subr.bf16.mxu0 0
      %1230 = vmatpush1.bf16.msra.mxu0 %v1227
      %1231 = vmatprep.subr.bf16.mxu0 0
      %1232 = vmatpush1.bf16.msra.mxu0 0
      %1233 = vmatprep.subr.bf16.mxu0 0
      %1234 = vmatpush1.bf16.msra.mxu0 0
      %1235 = vmatprep.subr.bf16.mxu0 0
      %1236 = vmatpush1.bf16.msra.mxu0 0
      %1237 = vmatprep.subr.bf16.mxu0 0
      %1238 = vmatpush1.bf16.msra.mxu0 0
      %1239 = vmatprep.subr.bf16.mxu0 0
      %1240 = vmatpush1.bf16.msra.mxu0 0
      %1241 = vmatprep.subr.bf16.mxu0 0
      %1242 = vmatpush1.bf16.msra.mxu0 0
      %1243 = vmatprep.subr.bf16.mxu0 0
      %1244 = vmatpush1.bf16.msra.mxu0 0
      %1245 = vmatprep.subr.bf16.mxu0 0
      %1246 = vmatpush1.bf16.msra.mxu0 0
      %1247 = vmatprep.subr.bf16.mxu0 0
      %1248 = vmatpush1.bf16.msra.mxu0 0
      %1249 = vmatprep.subr.bf16.mxu0 0
      %1250 = vmatpush1.bf16.msra.mxu0 0
      %1251 = vmatprep.subr.bf16.mxu0 0
      %1252 = vmatpush1.bf16.msra.mxu0 0
      %1253 = vmatprep.subr.bf16.mxu0 0
      %1254 = vmatpush1.bf16.msra.mxu0 0
      %1255 = vmatprep.subr.bf16.mxu0 0
      %1256 = vmatpush1.bf16.msra.mxu0 0
      %1257 = vmatprep.subr.bf16.mxu0 0
      %1258 = vmatpush1.bf16.msra.mxu0 0
      %1259 = vmatprep.subr.bf16.mxu0 0
      %1260 = vmatpush1.bf16.msra.mxu0 0
      %1261 = vmatprep.mubr.bf16.mxu0 0
      %1262 = vmatmul.mubr.bf16.gmra.mrb[0].mxu0 %v1212
      %v1263 = vpop.f32.mrb[0].mxu0
      %v1264 = vadd.f32 0.0, %v1263
      %v1265 = vpop.f32.mrb[0].mxu0
      %v1266 = vpop.f32.mrb[0].mxu0
      %v1267 = vadd.f32 0.0, %v1266
      %v1268 = vpop.f32.mrb[0].mxu0
      %1269 = vmatprep.mubr.bf16.mxu0 0
      %1270 = vmatmul.mubr.bf16.gmra.mrb[0].mxu0 %v1215
      %v1271 = vpop.f32.mrb[0].mxu0
      %v1272 = vadd.f32 0.0, %v1271
      %v1273 = vpop.f32.mrb[0].mxu0
      %v1274 = vpop.f32.mrb[0].mxu0
      %v1275 = vadd.f32 0.0, %v1274
      %v1276 = vpop.f32.mrb[0].mxu0
      %1277 = vmatprep.mubr.bf16.mxu0 0
      %1278 = vmatmul.mubr.bf16.gmra.mrb[0].mxu0 %v1218
      %v1279 = vpop.f32.mrb[0].mxu0
      %v1280 = vadd.f32 0.0, %v1279
      %v1281 = vpop.f32.mrb[0].mxu0
      %v1282 = vpop.f32.mrb[0].mxu0
      %v1283 = vadd.f32 0.0, %v1282
      %v1284 = vpop.f32.mrb[0].mxu0
      %1285 = vmatprep.mubr.bf16.mxu0 0
      %1286 = vmatmul.mubr.bf16.gmra.mrb[0].mxu0 %v1221
      %v1287 = vpop.f32.mrb[0].mxu0
      %v1288 = vadd.f32 0.0, %v1287
      %v1289 = vpop.f32.mrb[0].mxu0
      %v1290 = vpop.f32.mrb[0].mxu0
      %v1291 = vadd.f32 0.0, %v1290
      %v1292 = vpop.f32.mrb[0].mxu0
      %1293 = vmatprep.mubr.bf16.mxu0 0
      %1294 = vmatmul.mubr.bf16.gmra.mrb[0].mxu0 %v1224
      %v1295 = vpop.f32.mrb[0].mxu0
      %v1296 = vadd.f32 0.0, %v1295
      %v1297 = vpop.f32.mrb[0].mxu0
      %v1298 = vpop.f32.mrb[0].mxu0
      %v1299 = vpop.f32.mrb[0].mxu0
      %1300 = vdwg.mxu0
      %v1301 = vadd.f32 %v1126, %v1264
      %v1302 = vadd.f32 %v1127, %v1267
      %v1303 = vadd.f32 %v1128, %v1272
      %v1304 = vadd.f32 %v1129, %v1275
      %v1305 = vadd.f32 %v1130, %v1280
      %v1306 = vadd.f32 %v1131, %v1283
      %v1307 = vadd.f32 %v1132, %v1288
      %v1308 = vadd.f32 %v1133, %v1291
      %v1309 = vadd.f32 %v1134, %v1296
      %v1310 = vld [vmem:[%s276 + $0x4] sm:$0xf]
      %v1311 = vld [vmem:[%s276 + $0x8] sm:$0xf]
      %v1312 = vld [vmem:[%s276 + $0xc] sm:$0xf]
      %v1313 = vld [vmem:[%s276 + $0x10] sm:$0xf]
      %v1314 = vld [vmem:[%s276 + $0x14] sm:$0xf]
      %v1315 = vld [vmem:[%s276 + $0x18] sm:$0xf]
      %v1316 = vld [vmem:[%s276 + $0x1c] sm:$0xf]
      %v1317 = vld [vmem:[%s276 + $0x20] sm:$0xf]
      %v1318 = vld [vmem:[%s276 + $0x24] sm:$0xf]
      %v1319 = vld [vmem:[%s276 + $0x28] sm:$0x1]
      %s1320 = scalar_lea.vmem %s1, 14
      %v1321 = vld [vmem:[%s1320] sm:$0x3]
      %v1332 = vunpack.c.l.b16 %v1310
      %v1333 = vunpack.c.l.b16 %v1311
      %v1334 = vunpack.c.l.b16 %v1312
      %v1335 = vunpack.c.l.b16 %v1313
      %v1336 = vunpack.c.l.b16 %v1314
      %v1337 = vunpack.c.l.b16 %v1315
      %v1338 = vunpack.c.l.b16 %v1316
      %v1339 = vunpack.c.l.b16 %v1317
      %v1340 = vunpack.c.l.b16 %v1318
      %v1341 = vunpack.c.l.b16 %v1319
      %v1342 = vpack.c.b16 %v1333, %v1332
      %v1343 = vpack.c.b16 %v1335, %v1334
      %v1344 = vpack.c.b16 %v1337, %v1336
      %v1345 = vpack.c.b16 %v1339, %v1338
      %v1346 = vpack.c.b16 %v1341, %v1340
      %v1348 = vshrl.u32 %v1342, 16
      %v1350 = vshll.u32 %v1342, 16
      %v1352 = vrot.slane %v1350, 1
      %v1353 = vor.u32 %v1348, %v1352
      %v1355 = vshll.u32 %v1343, 16
      %v1357 = vrot.slane %v1355, 1
      %v1358 = vsel %vm553, %v1353, %v1357
      %v1359 = vshrl.u32 %v1343, 16
      %v1361 = vor.u32 %v1359, %v1357
      %v1363 = vshll.u32 %v1344, 16
      %v1365 = vrot.slane %v1363, 1
      %v1366 = vsel %vm553, %v1361, %v1365
      %v1367 = vshrl.u32 %v1344, 16
      %v1369 = vor.u32 %v1367, %v1365
      %v1371 = vshll.u32 %v1345, 16
      %v1373 = vrot.slane %v1371, 1
      %v1374 = vsel %vm553, %v1369, %v1373
      %v1375 = vshrl.u32 %v1345, 16
      %v1377 = vor.u32 %v1375, %v1373
      %v1379 = vshll.u32 %v1346, 16
      %v1381 = vrot.slane %v1379, 1
      %v1382 = vsel %vm553, %v1377, %v1381
      %v1383 = vshrl.u32 %v1346, 16
      %v1385 = vor.u32 %v1383, %v1381
      %v1387 = vsel %vm311, %v1358, 0
      %v1390 = vsel %vm311, %v1366, 0
      %v1393 = vsel %vm311, %v1374, 0
      %v1396 = vsel %vm311, %v1382, 0
      %v1399 = vsel %vm311, %v1385, 0
      %v1402 = vsel %vm327, %v1321, 0
      %1404 = vmatprep.subr.bf16.mxu0 0
      %1405 = vmatpush1.bf16.msra.mxu0 %v1402
      %1406 = vmatprep.subr.bf16.mxu0 0
      %1407 = vmatpush1.bf16.msra.mxu0 0
      %1408 = vmatprep.subr.bf16.mxu0 0
      %1409 = vmatpush1.bf16.msra.mxu0 0
      %1410 = vmatprep.subr.bf16.mxu0 0
      %1411 = vmatpush1.bf16.msra.mxu0 0
      %1412 = vmatprep.subr.bf16.mxu0 0
      %1413 = vmatpush1.bf16.msra.mxu0 0
      %1414 = vmatprep.subr.bf16.mxu0 0
      %1415 = vmatpush1.bf16.msra.mxu0 0
      %1416 = vmatprep.subr.bf16.mxu0 0
      %1417 = vmatpush1.bf16.msra.mxu0 0
      %1418 = vmatprep.subr.bf16.mxu0 0
      %1419 = vmatpush1.bf16.msra.mxu0 0
      %1420 = vmatprep.subr.bf16.mxu0 0
      %1421 = vmatpush1.bf16.msra.mxu0 0
      %1422 = vmatprep.subr.bf16.mxu0 0
      %1423 = vmatpush1.bf16.msra.mxu0 0
      %1424 = vmatprep.subr.bf16.mxu0 0
      %1425 = vmatpush1.bf16.msra.mxu0 0
      %1426 = vmatprep.subr.bf16.mxu0 0
      %1427 = vmatpush1.bf16.msra.mxu0 0
      %1428 = vmatprep.subr.bf16.mxu0 0
      %1429 = vmatpush1.bf16.msra.mxu0 0
      %1430 = vmatprep.subr.bf16.mxu0 0
      %1431 = vmatpush1.bf16.msra.mxu0 0
      %1432 = vmatprep.subr.bf16.mxu0 0
      %1433 = vmatpush1.bf16.msra.mxu0 0
      %1434 = vmatprep.subr.bf16.mxu0 0
      %1435 = vmatpush1.bf16.msra.mxu0 0
      %1436 = vmatprep.mubr.bf16.mxu0 0
      %1437 = vmatmul.mubr.bf16.gmra.mrb[0].mxu0 %v1387
      %v1438 = vpop.f32.mrb[0].mxu0
      %v1439 = vadd.f32 0.0, %v1438
      %v1440 = vpop.f32.mrb[0].mxu0
      %v1441 = vpop.f32.mrb[0].mxu0
      %v1442 = vadd.f32 0.0, %v1441
      %v1443 = vpop.f32.mrb[0].mxu0
      %1444 = vmatprep.mubr.bf16.mxu0 0
      %1445 = vmatmul.mubr.bf16.gmra.mrb[0].mxu0 %v1390
      %v1446 = vpop.f32.mrb[0].mxu0
      %v1447 = vadd.f32 0.0, %v1446
      %v1448 = vpop.f32.mrb[0].mxu0
      %v1449 = vpop.f32.mrb[0].mxu0
      %v1450 = vadd.f32 0.0, %v1449
      %v1451 = vpop.f32.mrb[0].mxu0
      %1452 = vmatprep.mubr.bf16.mxu0 0
      %1453 = vmatmul.mubr.bf16.gmra.mrb[0].mxu0 %v1393
      %v1454 = vpop.f32.mrb[0].mxu0
      %v1455 = vadd.f32 0.0, %v1454
      %v1456 = vpop.f32.mrb[0].mxu0
      %v1457 = vpop.f32.mrb[0].mxu0
      %v1458 = vadd.f32 0.0, %v1457
      %v1459 = vpop.f32.mrb[0].mxu0
      %1460 = vmatprep.mubr.bf16.mxu0 0
      %1461 = vmatmul.mubr.bf16.gmra.mrb[0].mxu0 %v1396
      %v1462 = vpop.f32.mrb[0].mxu0
      %v1463 = vadd.f32 0.0, %v1462
      %v1464 = vpop.f32.mrb[0].mxu0
      %v1465 = vpop.f32.mrb[0].mxu0
      %v1466 = vadd.f32 0.0, %v1465
      %v1467 = vpop.f32.mrb[0].mxu0
      %1468 = vmatprep.mubr.bf16.mxu0 0
      %1469 = vmatmul.mubr.bf16.gmra.mrb[0].mxu0 %v1399
      %v1470 = vpop.f32.mrb[0].mxu0
      %v1471 = vadd.f32 0.0, %v1470
      %v1472 = vpop.f32.mrb[0].mxu0
      %v1473 = vpop.f32.mrb[0].mxu0
      %v1474 = vpop.f32.mrb[0].mxu0
      %1475 = vdwg.mxu0
      %v1476 = vadd.f32 %v1301, %v1439
      %v1477 = vadd.f32 %v1302, %v1442
      %v1478 = vadd.f32 %v1303, %v1447
      %v1479 = vadd.f32 %v1304, %v1450
      %v1480 = vadd.f32 %v1305, %v1455
      %v1481 = vadd.f32 %v1306, %v1458
      %v1482 = vadd.f32 %v1307, %v1463
      %v1483 = vadd.f32 %v1308, %v1466
      %v1484 = vadd.f32 %v1309, %v1471
      %v1485 = vld [vmem:[%s254 + $0x4] sm:$0xe]
      %s1486 = scalar_lea.vmem %s1, 16
      %v1487 = vld [vmem:[%s1486] sm:$0x3]
      %v1489 = vunpack.c.l.b16 %v1485
      %v1490 = vpack.c.b16 %v1158, %v1489
      %vm1491 = vcmask 1046528
      %v1492 = vrot.slane %v1490, 1
      %v1493 = vrot.slane %v1168, 1
      %v1494 = vsel %vm1491, %v1492, %v1493
      %v1495 = vrot.slane %v1169, 1
      %v1496 = vsel %vm1491, %v1493, %v1495
      %v1497 = vrot.slane %v1170, 1
      %v1498 = vsel %vm1491, %v1495, %v1497
      %v1499 = vrot.slane %v1171, 1
      %v1500 = vsel %vm1491, %v1497, %v1499
      %v1502 = vsel %vm311, %v1494, 0
      %v1505 = vsel %vm311, %v1496, 0
      %v1508 = vsel %vm311, %v1498, 0
      %v1511 = vsel %vm311, %v1500, 0
      %v1514 = vsel %vm311, %v1499, 0
      %v1517 = vsel %vm327, %v1487, 0
      %1519 = vmatprep.subr.bf16.mxu0 0
      %1520 = vmatpush1.bf16.msra.mxu0 %v1517
      %1521 = vmatprep.subr.bf16.mxu0 0
      %1522 = vmatpush1.bf16.msra.mxu0 0
      %1523 = vmatprep.subr.bf16.mxu0 0
      %1524 = vmatpush1.bf16.msra.mxu0 0
      %1525 = vmatprep.subr.bf16.mxu0 0
      %1526 = vmatpush1.bf16.msra.mxu0 0
      %1527 = vmatprep.subr.bf16.mxu0 0
      %1528 = vmatpush1.bf16.msra.mxu0 0
      %1529 = vmatprep.subr.bf16.mxu0 0
      %1530 = vmatpush1.bf16.msra.mxu0 0
      %1531 = vmatprep.subr.bf16.mxu0 0
      %1532 = vmatpush1.bf16.msra.mxu0 0
      %1533 = vmatprep.subr.bf16.mxu0 0
      %1534 = vmatpush1.bf16.msra.mxu0 0
      %1535 = vmatprep.subr.bf16.mxu0 0
      %1536 = vmatpush1.bf16.msra.mxu0 0
      %1537 = vmatprep.subr.bf16.mxu0 0
      %1538 = vmatpush1.bf16.msra.mxu0 0
      %1539 = vmatprep.subr.bf16.mxu0 0
      %1540 = vmatpush1.bf16.msra.mxu0 0
      %1541 = vmatprep.subr.bf16.mxu0 0
      %1542 = vmatpush1.bf16.msra.mxu0 0
      %1543 = vmatprep.subr.bf16.mxu0 0
      %1544 = vmatpush1.bf16.msra.mxu0 0
      %1545 = vmatprep.subr.bf16.mxu0 0
      %1546 = vmatpush1.bf16.msra.mxu0 0
      %1547 = vmatprep.subr.bf16.mxu0 0
      %1548 = vmatpush1.bf16.msra.mxu0 0
      %1549 = vmatprep.subr.bf16.mxu0 0
      %1550 = vmatpush1.bf16.msra.mxu0 0
      %1551 = vmatprep.mubr.bf16.mxu0 0
      %1552 = vmatmul.mubr.bf16.gmra.mrb[0].mxu0 %v1502
      %v1553 = vpop.f32.mrb[0].mxu0
      %v1554 = vadd.f32 0.0, %v1553
      %v1555 = vpop.f32.mrb[0].mxu0
      %v1556 = vpop.f32.mrb[0].mxu0
      %v1557 = vadd.f32 0.0, %v1556
      %v1558 = vpop.f32.mrb[0].mxu0
      %1559 = vmatprep.mubr.bf16.mxu0 0
      %1560 = vmatmul.mubr.bf16.gmra.mrb[0].mxu0 %v1505
      %v1561 = vpop.f32.mrb[0].mxu0
      %v1562 = vadd.f32 0.0, %v1561
      %v1563 = vpop.f32.mrb[0].mxu0
      %v1564 = vpop.f32.mrb[0].mxu0
      %v1565 = vadd.f32 0.0, %v1564
      %v1566 = vpop.f32.mrb[0].mxu0
      %1567 = vmatprep.mubr.bf16.mxu0 0
      %1568 = vmatmul.mubr.bf16.gmra.mrb[0].mxu0 %v1508
      %v1569 = vpop.f32.mrb[0].mxu0
      %v1570 = vadd.f32 0.0, %v1569
      %v1571 = vpop.f32.mrb[0].mxu0
      %v1572 = vpop.f32.mrb[0].mxu0
      %v1573 = vadd.f32 0.0, %v1572
      %v1574 = vpop.f32.mrb[0].mxu0
      %1575 = vmatprep.mubr.bf16.mxu0 0
      %1576 = vmatmul.mubr.bf16.gmra.mrb[0].mxu0 %v1511
      %v1577 = vpop.f32.mrb[0].mxu0
      %v1578 = vadd.f32 0.0, %v1577
      %v1579 = vpop.f32.mrb[0].mxu0
      %v1580 = vpop.f32.mrb[0].mxu0
      %v1581 = vadd.f32 0.0, %v1580
      %v1582 = vpop.f32.mrb[0].mxu0
      %1583 = vmatprep.mubr.bf16.mxu0 0
      %1584 = vmatmul.mubr.bf16.gmra.mrb[0].mxu0 %v1514
      %v1585 = vpop.f32.mrb[0].mxu0
      %v1586 = vadd.f32 0.0, %v1585
      %v1587 = vpop.f32.mrb[0].mxu0
      %v1588 = vpop.f32.mrb[0].mxu0
      %v1589 = vpop.f32.mrb[0].mxu0
      %1590 = vdwg.mxu0
      %v1591 = vadd.f32 %v1476, %v1554
      %v1592 = vadd.f32 %v1477, %v1557
      %v1593 = vadd.f32 %v1478, %v1562
      %v1594 = vadd.f32 %v1479, %v1565
      %v1595 = vadd.f32 %v1480, %v1570
      %v1596 = vadd.f32 %v1481, %v1573
      %v1597 = vadd.f32 %v1482, %v1578
      %v1598 = vadd.f32 %v1483, %v1581
      %v1599 = vadd.f32 %v1484, %v1586
      %v1600 = vld [vmem:[%s2] sm:$0x1]
      %v1602 = vlaneseq
      %v1603 = vshrl.u32 %v1602, 7
      %v1604 = vsub.s32 0, %v1603
      %v1605 = vrot.slane %v1600, %v1604
      %v1607 = vadd.f32 %v1591, %v1605
      %v1608 = vadd.f32 %v1592, %v1605
      %v1609 = vadd.f32 %v1593, %v1605
      %v1610 = vadd.f32 %v1594, %v1605
      %v1611 = vadd.f32 %v1595, %v1605
      %v1612 = vadd.f32 %v1596, %v1605
      %v1613 = vadd.f32 %v1597, %v1605
      %v1614 = vadd.f32 %v1598, %v1605
      %v1615 = vadd.f32 %v1599, %v1605
      %v1616 = vmax.f32 %v1607, 0.0
      %v1617 = vmax.f32 %v1608, 0.0
      %v1618 = vmax.f32 %v1609, 0.0
      %v1619 = vmax.f32 %v1610, 0.0
      %v1620 = vmax.f32 %v1611, 0.0
      %v1621 = vmax.f32 %v1612, 0.0
      %v1622 = vmax.f32 %v1613, 0.0
      %v1623 = vmax.f32 %v1614, 0.0
      %v1624 = vmax.f32 %v1615, 0.0
      %v1625 = vpack.c.bf16 %v1617, %v1616
      %v1626 = vpack.c.bf16 %v1619, %v1618
      %v1627 = vpack.c.bf16 %v1621, %v1620
      %v1628 = vpack.c.bf16 %v1623, %v1622
      %v1629 = vpack.c.bf16 %v1624, %v1624
      %v1635 = vunpack.c.l.b16 %v1625
      %v1636 = vunpack.c.h.b16 %v1625
      %v1637 = vunpack.c.l.b16 %v1626
      %v1638 = vunpack.c.h.b16 %v1626
      %v1639 = vunpack.c.l.b16 %v1627
      %v1640 = vunpack.c.h.b16 %v1627
      %v1641 = vunpack.c.l.b16 %v1628
      %v1642 = vunpack.c.h.b16 %v1628
      %v1643 = vunpack.c.l.b16 %v1629
      %v1644 = vpack.c.b16 %v1635, %v1635
      %v1645 = vpack.c.b16 %v1636, %v1636
      %v1646 = vpack.c.b16 %v1637, %v1637
      %v1647 = vpack.c.b16 %v1638, %v1638
      %v1648 = vpack.c.b16 %v1639, %v1639
      %v1649 = vpack.c.b16 %v1640, %v1640
      %v1650 = vpack.c.b16 %v1641, %v1641
      %v1651 = vpack.c.b16 %v1642, %v1642
      %v1652 = vpack.c.b16 %v1643, %v1643
      %vm1662 = vcmask 60416
      %1663 = vst.msk [vmem:[%s259] sm:$0xf] %vm1662, %v1644
      %1664 = vst.msk [vmem:[%s259 + $0x4] sm:$0xf] %vm1662, %v1645
      %1665 = vst.msk [vmem:[%s259 + $0x8] sm:$0xf] %vm1662, %v1646
      %1666 = vst.msk [vmem:[%s259 + $0xc] sm:$0xf] %vm1662, %v1647
      %1667 = vst.msk [vmem:[%s259 + $0x10] sm:$0xf] %vm1662, %v1648
      %1668 = vst.msk [vmem:[%s259 + $0x14] sm:$0xf] %vm1662, %v1649
      %1669 = vst.msk [vmem:[%s259 + $0x18] sm:$0xf] %vm1662, %v1650
      %1670 = vst.msk [vmem:[%s259 + $0x1c] sm:$0xf] %vm1662, %v1651
      %1671 = vst.msk [vmem:[%s259 + $0x20] sm:$0xf] %vm1662, %v1652
      %v1672 = vld [vmem:[%s826] sm:$0xf]
      %v1673 = vld [vmem:[%s826 + $0x4] sm:$0xf]
      %v1674 = vld [vmem:[%s826 + $0x8] sm:$0xf]
      %v1675 = vld [vmem:[%s826 + $0xc] sm:$0xf]
      %v1676 = vld [vmem:[%s826 + $0x10] sm:$0xf]
      %v1677 = vld [vmem:[%s826 + $0x14] sm:$0xf]
      %v1678 = vld [vmem:[%s826 + $0x18] sm:$0xf]
      %v1679 = vld [vmem:[%s826 + $0x1c] sm:$0xf]
      %v1680 = vld [vmem:[%s826 + $0x20] sm:$0xf]
      %v1681 = vld [vmem:[%s3] sm:$0x3]
      %v1682 = vld [vmem:[%s4] sm:$0x1]
      %v1684 = vlaneseq
      %v1685 = vshrl.u32 %v1684, 7
      %v1686 = vsub.s32 0, %v1685
      %v1687 = vrot.slane %v1682, %v1686
      %v1698 = vunpack.c.l.b16 %v1672
      %v1699 = vunpack.c.l.b16 %v1673
      %v1700 = vunpack.c.l.b16 %v1674
      %v1701 = vunpack.c.l.b16 %v1675
      %v1702 = vunpack.c.l.b16 %v1676
      %v1703 = vunpack.c.l.b16 %v1677
      %v1704 = vunpack.c.l.b16 %v1678
      %v1705 = vunpack.c.l.b16 %v1679
      %v1706 = vunpack.c.l.b16 %v1680
      %v1707 = vpack.c.b16 %v1699, %v1698
      %v1708 = vpack.c.b16 %v1701, %v1700
      %v1709 = vpack.c.b16 %v1703, %v1702
      %v1710 = vpack.c.b16 %v1705, %v1704
      %v1711 = vpack.c.b16 %v1706, %v1706
      %v1713 = vsel %vm311, %v1707, 0
      %v1716 = vsel %vm311, %v1708, 0
      %v1719 = vsel %vm311, %v1709, 0
      %v1722 = vsel %vm311, %v1710, 0
      %v1725 = vsel %vm311, %v1711, 0
      %v1728 = vsel %vm327, %v1681, 0
      %1730 = vmatprep.subr.bf16.mxu0 0
      %1731 = vmatpush1.bf16.msra.mxu0 %v1728
      %1732 = vmatprep.subr.bf16.mxu0 0
      %1733 = vmatpush1.bf16.msra.mxu0 0
      %1734 = vmatprep.subr.bf16.mxu0 0
      %1735 = vmatpush1.bf16.msra.mxu0 0
      %1736 = vmatprep.subr.bf16.mxu0 0
      %1737 = vmatpush1.bf16.msra.mxu0 0
      %1738 = vmatprep.subr.bf16.mxu0 0
      %1739 = vmatpush1.bf16.msra.mxu0 0
      %1740 = vmatprep.subr.bf16.mxu0 0
      %1741 = vmatpush1.bf16.msra.mxu0 0
      %1742 = vmatprep.subr.bf16.mxu0 0
      %1743 = vmatpush1.bf16.msra.mxu0 0
      %1744 = vmatprep.subr.bf16.mxu0 0
      %1745 = vmatpush1.bf16.msra.mxu0 0
      %1746 = vmatprep.subr.bf16.mxu0 0
      %1747 = vmatpush1.bf16.msra.mxu0 0
      %1748 = vmatprep.subr.bf16.mxu0 0
      %1749 = vmatpush1.bf16.msra.mxu0 0
      %1750 = vmatprep.subr.bf16.mxu0 0
      %1751 = vmatpush1.bf16.msra.mxu0 0
      %1752 = vmatprep.subr.bf16.mxu0 0
      %1753 = vmatpush1.bf16.msra.mxu0 0
      %1754 = vmatprep.subr.bf16.mxu0 0
      %1755 = vmatpush1.bf16.msra.mxu0 0
      %1756 = vmatprep.subr.bf16.mxu0 0
      %1757 = vmatpush1.bf16.msra.mxu0 0
      %1758 = vmatprep.subr.bf16.mxu0 0
      %1759 = vmatpush1.bf16.msra.mxu0 0
      %1760 = vmatprep.subr.bf16.mxu0 0
      %1761 = vmatpush1.bf16.msra.mxu0 0
      %1762 = vmatprep.mubr.bf16.mxu0 0
      %1763 = vmatmul.mubr.bf16.gmra.mrb[0].mxu0 %v1713
      %v1764 = vpop.f32.mrb[0].mxu0
      %v1765 = vadd.f32 %v1687, %v1764
      %v1766 = vpop.f32.mrb[0].mxu0
      %v1767 = vpop.f32.mrb[0].mxu0
      %v1768 = vadd.f32 %v1687, %v1767
      %v1769 = vpop.f32.mrb[0].mxu0
      %1770 = vmatprep.mubr.bf16.mxu0 0
      %1771 = vmatmul.mubr.bf16.gmra.mrb[0].mxu0 %v1716
      %v1772 = vpop.f32.mrb[0].mxu0
      %v1773 = vadd.f32 %v1687, %v1772
      %v1774 = vpop.f32.mrb[0].mxu0
      %v1775 = vpop.f32.mrb[0].mxu0
      %v1776 = vadd.f32 %v1687, %v1775
      %v1777 = vpop.f32.mrb[0].mxu0
      %1778 = vmatprep.mubr.bf16.mxu0 0
      %1779 = vmatmul.mubr.bf16.gmra.mrb[0].mxu0 %v1719
      %v1780 = vpop.f32.mrb[0].mxu0
      %v1781 = vadd.f32 %v1687, %v1780
      %v1782 = vpop.f32.mrb[0].mxu0
      %v1783 = vpop.f32.mrb[0].mxu0
      %v1784 = vadd.f32 %v1687, %v1783
      %v1785 = vpop.f32.mrb[0].mxu0
      %1786 = vmatprep.mubr.bf16.mxu0 0
      %1787 = vmatmul.mubr.bf16.gmra.mrb[0].mxu0 %v1722
      %v1788 = vpop.f32.mrb[0].mxu0
      %v1789 = vadd.f32 %v1687, %v1788
      %v1790 = vpop.f32.mrb[0].mxu0
      %v1791 = vpop.f32.mrb[0].mxu0
      %v1792 = vadd.f32 %v1687, %v1791
      %v1793 = vpop.f32.mrb[0].mxu0
      %1794 = vmatprep.mubr.bf16.mxu0 0
      %1795 = vmatmul.mubr.bf16.gmra.mrb[0].mxu0 %v1725
      %v1796 = vpop.f32.mrb[0].mxu0
      %v1797 = vadd.f32 %v1687, %v1796
      %v1798 = vpop.f32.mrb[0].mxu0
      %v1799 = vpop.f32.mrb[0].mxu0
      %v1800 = vpop.f32.mrb[0].mxu0
      %1801 = vdwg.mxu0
      %vm1802 = vcmask 64512
      %1803 = vst.msk [vmem:[%s264] sm:$0xff] %vm1802, %v1765
      %1804 = vst.msk [vmem:[%s264 + $0x8] sm:$0xff] %vm1802, %v1768
      %1805 = vst.msk [vmem:[%s264 + $0x10] sm:$0xff] %vm1802, %v1773
      %1806 = vst.msk [vmem:[%s264 + $0x18] sm:$0xff] %vm1802, %v1776
      %1807 = vst.msk [vmem:[%s264 + $0x20] sm:$0xff] %vm1802, %v1781
      %1808 = vst.msk [vmem:[%s264 + $0x28] sm:$0xff] %vm1802, %v1784
      %1809 = vst.msk [vmem:[%s264 + $0x30] sm:$0xff] %vm1802, %v1789
      %1810 = vst.msk [vmem:[%s264 + $0x38] sm:$0xff] %vm1802, %v1792
      %1811 = vst.msk [vmem:[%s264 + $0x40] sm:$0xff] %vm1802, %v1797
      %p1812 = scmp.lt.s32.totalorder %s18, 1
      %s1813 = scalar_select %p1812, %s18, 1
      %s1814 = smul.addr %s1813, 9
      %s1815 = smul.addr %s1814, 4
      %s1816 = scalar_lea.vmem %s5, %s1815
      %p1817 = scmp.lt.s32.totalorder %s18, 1
      %s1818 = scalar_select %p1817, %s18, 1
      %s1819 = smul.addr %s1818, 9
      %s1820 = smul.addr %s1819, 8
      %s1821 = scalar_lea.vmem %s6, %s1820
      // Predicated region
      $region41: #{basic_block_forward.2} parent=39 // pred_check
        %p1822 = pneg %p146
      $region42: #{basic_block_forward.2} parent=39 // pred_check_branch
        %1824 = sbr.rel (%p1822) target = $region44
      $region43: #{basic_block_forward.2} parent=39 // pred_region
        _
      $region44: #{basic_block_forward.2} parent=39 // pred_fallthru
        _
      // Predicated region
      $region45: #{basic_block_forward.2} parent=39 // pred_check
        %p1825 = pneg %p172
      $region46: #{basic_block_forward.2} parent=39 // pred_check_branch
        %1827 = sbr.rel (%p1825) target = $region48
      $region47: #{basic_block_forward.2} parent=39 // pred_region
        _
      $region48: #{basic_block_forward.2} parent=39 // pred_fallthru
        _
    $region40: #{basic_block_forward.2} parent=5 // pred_fallthru
      _
    %p1828 = scmp.le.s32.totalorder 2, %s13
    // Predicated region
    $region49: #{basic_block_forward.2} parent=5 // pred_check
      %p1829 = pneg %p1828
    $region50: #{basic_block_forward.2} parent=5 // pred_check_branch
      %1831 = sbr.rel (%p1829) target = $region52
    $region51: #{basic_block_forward.2} parent=5 // pred_region
      %s1832 = ssub.s32 %s13, 2
      // Predicated region
      $region53: #{basic_block_forward.2} parent=51 // pred_check
        %p1833 = pneg %p152
      $region54: #{basic_block_forward.2} parent=51 // pred_check_branch
        %1835 = sbr.rel (%p1833) target = $region56
      $region55: #{basic_block_forward.2} parent=51 // pred_region
        %p1836 = scmp.lt.s32.totalorder %s19, 1
        %s1837 = scalar_select %p1836, %s19, 1
        %s1838 = smul.addr %s1837, 9
        %s1839 = smul.addr %s1838, 4
        %s1840 = scalar_lea.vmem %s5, %s1839
      $region56: #{basic_block_forward.2} parent=51 // pred_fallthru
        _
      // Predicated region
      $region57: #{basic_block_forward.2} parent=51 // pred_check
        %p1841 = pneg %p178
      $region58: #{basic_block_forward.2} parent=51 // pred_check_branch
        %1843 = sbr.rel (%p1841) target = $region60
      $region59: #{basic_block_forward.2} parent=51 // pred_region
        %p1844 = scmp.lt.s32.totalorder %s19, 1
        %s1845 = scalar_select %p1844, %s19, 1
        %s1846 = smul.addr %s1845, 9
        %s1847 = smul.addr %s1846, 8
        %s1848 = scalar_lea.vmem %s6, %s1847
      $region60: #{basic_block_forward.2} parent=51 // pred_fallthru
        _
    $region52: #{basic_block_forward.2} parent=5 // pred_fallthru
      _
  $region6: #{basic_block_forward.2} parent=0 // loop_footer
    %s17 = sadd.s32 1, %s13
  $region7: #{basic_block_forward.2} parent=0 // loop_footer_branch
    %12 = sbr.rel target = $region3
  $region8: #{basic_block_forward.2} parent=0 // loop_exit
    _

// kernel: basic_block_forward.3
$region0: #{basic_block_forward.3}
  #allocation0 [shape = 'u32[]', space=smem, size = 0x4, offset = 0x4, fixed_abs, tag = 'smem constant byte address 0x4 - core index']
  #allocation1 [shape = 'u32[144,128]{1,0:T(1,128)}', space=vmem, size = 0x12000, scoped, tag = 'internal scratch']
  %s0 = inlined_call_operand.vmem [shape: bf16[2,1,110,8], index: 0, kind: input, shape index: {}]
  %s1 = inlined_call_operand.vmem [shape: bf16[9,8,8], index: 1, kind: input, shape index: {}]
  %s2 = inlined_call_operand.vmem [shape: f32[1,8], index: 2, kind: input, shape index: {}]
  %s3 = inlined_call_operand.vmem [shape: f32[2,80,8], index: 3, kind: input, shape index: {}]
  %s4 = inlined_call_operand.vmem [shape: f32[2,80,8], index: 4, kind: output, shape index: {}]
  %s5 = sld [smem:[#allocation0]]
  $region49: #{basic_block_forward.3} parent=0
    _
  %s7 = ssub.s32 1, %s5
  %s8 = scalar_select 0, %s7, %s5
  loop: start=0, step=1, limit=4
  $region2: #{basic_block_forward.3} parent=0 // loop_pre_header
    _
  $region3: #{basic_block_forward.3} parent=0 // loop_header
    %s10 = sphi 0, %s14
    %p11 = scmp.ge.s32.totalorder %s10, 4
    %s20 = sphi 0, %s22
    %s23 = sphi 0, %s20
    %s24 = sphi 0, %s23
    %s40 = sphi 0, %s24
    %s44 = sphi 0, %s44
    %s46 = sphi 0, %s44
    %s47 = sphi 0, %s46
    %s61 = sphi 0, %s47
    %s65 = sphi 0, %s65
    %s67 = sphi 0, %s65
    %s68 = sphi 0, %s67
    %s82 = sphi 0, %s68
    %s88 = sphi 0, %s90
    %s91 = sphi 0, %s88
    %s92 = sphi 0, %s91
    %s108 = sphi 0, %s92
    %s114 = sphi 0, %s116
    %s117 = sphi 0, %s114
    %s118 = sphi 0, %s117
    %s134 = sphi 0, %s118
  $region4: #{basic_block_forward.3} parent=0 // loop_header_branch
    %13 = sbr.rel (%p11) target = $region8
  $region5: #{basic_block_forward.3} parent=0 // loop_body
    %s15 = ssub.s32 %s10, 1
    %s16 = ssub.s32 %s10, 2
    %s17 = sadd.s32 %s10, 1
    %s18 = ssub.s32 %s10, %s17
    %p19 = scmp.eq.s32.totalorder %s18, 0
    %s21 = sadd.s32 %s20, 1
    %s22 = scalar_select %p19, %s20, %s21
    %p25 = pneg %p19
    %p26 = scmp.eq.s32.totalorder %s10, 1
    %p27 = por %p25, %p26
    %p28 = scmp.ne.s32.totalorder %s20, %s23
    %p29 = scmp.eq.s32.totalorder %s10, 0
    %p30 = por %p28, %p29
    %p31 = scmp.ne.s32.totalorder %s20, %s23
    %p32 = scmp.eq.s32.totalorder %s15, 1
    %p33 = por %p31, %p32
    %p34 = scmp.ne.s32.totalorder %s23, %s24
    %p35 = scmp.eq.s32.totalorder %s15, 0
    %p36 = por %p34, %p35
    %p37 = scmp.ne.s32.totalorder %s23, %s24
    %p38 = scmp.eq.s32.totalorder %s16, 1
    %p39 = por %p37, %p38
    %p41 = scmp.ne.s32.totalorder %s24, %s40
    %p42 = scmp.eq.s32.totalorder %s16, 0
    %p43 = por %p41, %p42
    %s45 = sadd.s32 %s44, 1
    %p48 = scmp.eq.s32.totalorder %s10, 1
    %p49 = scmp.ne.s32.totalorder %s44, %s46
    %p50 = scmp.eq.s32.totalorder %s10, 0
    %p51 = por %p49, %p50
    %p52 = scmp.ne.s32.totalorder %s44, %s46
    %p53 = scmp.eq.s32.totalorder %s15, 1
    %p54 = por %p52, %p53
    %p55 = scmp.ne.s32.totalorder %s46, %s47
    %p56 = scmp.eq.s32.totalorder %s15, 0
    %p57 = por %p55, %p56
    %p58 = scmp.ne.s32.totalorder %s46, %s47
    %p59 = scmp.eq.s32.totalorder %s16, 1
    %p60 = por %p58, %p59
    %p62 = scmp.ne.s32.totalorder %s47, %s61
    %p63 = scmp.eq.s32.totalorder %s16, 0
    %p64 = por %p62, %p63
    %s66 = sadd.s32 %s65, 1
    %p69 = scmp.eq.s32.totalorder %s10, 1
    %p70 = scmp.ne.s32.totalorder %s65, %s67
    %p71 = scmp.eq.s32.totalorder %s10, 0
    %p72 = por %p70, %p71
    %p73 = scmp.ne.s32.totalorder %s65, %s67
    %p74 = scmp.eq.s32.totalorder %s15, 1
    %p75 = por %p73, %p74
    %p76 = scmp.ne.s32.totalorder %s67, %s68
    %p77 = scmp.eq.s32.totalorder %s15, 0
    %p78 = por %p76, %p77
    %p79 = scmp.ne.s32.totalorder %s67, %s68
    %p80 = scmp.eq.s32.totalorder %s16, 1
    %p81 = por %p79, %p80
    %p83 = scmp.ne.s32.totalorder %s68, %s82
    %p84 = scmp.eq.s32.totalorder %s16, 0
    %p85 = por %p83, %p84
    %s86 = ssub.s32 %s10, %s17
    %p87 = scmp.eq.s32.totalorder %s86, 0
    %s89 = sadd.s32 %s88, 1
    %s90 = scalar_select %p87, %s88, %s89
    %p93 = pneg %p87
    %p94 = scmp.eq.s32.totalorder %s10, 1
    %p95 = por %p93, %p94
    %p96 = scmp.ne.s32.totalorder %s88, %s91
    %p97 = scmp.eq.s32.totalorder %s10, 0
    %p98 = por %p96, %p97
    %p99 = scmp.ne.s32.totalorder %s88, %s91
    %p100 = scmp.eq.s32.totalorder %s15, 1
    %p101 = por %p99, %p100
    %p102 = scmp.ne.s32.totalorder %s91, %s92
    %p103 = scmp.eq.s32.totalorder %s15, 0
    %p104 = por %p102, %p103
    %p105 = scmp.ne.s32.totalorder %s91, %s92
    %p106 = scmp.eq.s32.totalorder %s16, 1
    %p107 = por %p105, %p106
    %p109 = scmp.ne.s32.totalorder %s92, %s108
    %p110 = scmp.eq.s32.totalorder %s16, 0
    %p111 = por %p109, %p110
    %s112 = ssub.s32 %s10, %s17
    %p113 = scmp.eq.s32.totalorder %s112, 0
    %s115 = sadd.s32 %s114, 1
    %s116 = scalar_select %p113, %s114, %s115
    %p119 = pneg %p113
    %p120 = scmp.eq.s32.totalorder %s10, 1
    %p121 = por %p119, %p120
    %p122 = scmp.ne.s32.totalorder %s114, %s117
    %p123 = scmp.eq.s32.totalorder %s10, 0
    %p124 = por %p122, %p123
    %p125 = scmp.ne.s32.totalorder %s114, %s117
    %p126 = scmp.eq.s32.totalorder %s15, 1
    %p127 = por %p125, %p126
    %p128 = scmp.ne.s32.totalorder %s117, %s118
    %p129 = scmp.eq.s32.totalorder %s15, 0
    %p130 = por %p128, %p129
    %p131 = scmp.ne.s32.totalorder %s117, %s118
    %p132 = scmp.eq.s32.totalorder %s16, 1
    %p133 = por %p131, %p132
    %p135 = scmp.ne.s32.totalorder %s118, %s134
    %p136 = scmp.eq.s32.totalorder %s16, 0
    %p137 = por %p135, %p136
    %p138 = scmp.le.s32.totalorder 1, %s10
    %p139 = scmp.lt.s32.totalorder %s10, 3
    %p140 = pnand %p138, %p139
    %p141 = pneg %p140
    // Predicated region
    $region9: #{basic_block_forward.3} parent=5 // pred_check
      _
    $region10: #{basic_block_forward.3} parent=5 // pred_check_branch
      %143 = sbr.rel (%p140) target = $region12
    $region11: #{basic_block_forward.3} parent=5 // pred_region
      %s144 = ssub.s32 %s10, 1
      // Predicated region
      $region13: #{basic_block_forward.3} parent=11 // pred_check
        %p145 = pneg %p57
      $region14: #{basic_block_forward.3} parent=11 // pred_check_branch
        %147 = sbr.rel (%p145) target = $region16
      $region15: #{basic_block_forward.3} parent=11 // pred_region
        _
      $region16: #{basic_block_forward.3} parent=11 // pred_fallthru
        _
      // Predicated region
      $region17: #{basic_block_forward.3} parent=11 // pred_check
        %p148 = pneg %p78
      $region18: #{basic_block_forward.3} parent=11 // pred_check_branch
        %150 = sbr.rel (%p148) target = $region20
      $region19: #{basic_block_forward.3} parent=11 // pred_region
        _
      $region20: #{basic_block_forward.3} parent=11 // pred_fallthru
        _
    $region12: #{basic_block_forward.3} parent=5 // pred_fallthru
      _
    %p151 = scmp.lt.s32.totalorder %s10, 2
    // Predicated region
    $region21: #{basic_block_forward.3} parent=5 // pred_check
      %p152 = pneg %p151
    $region22: #{basic_block_forward.3} parent=5 // pred_check_branch
      %154 = sbr.rel (%p152) target = $region24
    $region23: #{basic_block_forward.3} parent=5 // pred_region
      // Predicated region
      $region25: #{basic_block_forward.3} parent=23 // pred_check
        %p155 = pneg %p30
      $region26: #{basic_block_forward.3} parent=23 // pred_check_branch
        %157 = sbr.rel (%p155) target = $region28
      $region27: #{basic_block_forward.3} parent=23 // pred_region
        %p158 = scmp.lt.s32.totalorder %s10, 1
        %s159 = scalar_select %p158, %s10, 1
        %s160 = smul.addr %s159, 14
        %s161 = smul.addr %s160, 4
        %s162 = scalar_lea.vmem %s0, %s161
      $region28: #{basic_block_forward.3} parent=23 // pred_fallthru
        _
      // Predicated region
      $region29: #{basic_block_forward.3} parent=23 // pred_check
        %p163 = pneg %p98
      $region30: #{basic_block_forward.3} parent=23 // pred_check_branch
        %165 = sbr.rel (%p163) target = $region32
      $region31: #{basic_block_forward.3} parent=23 // pred_region
        %p166 = scmp.lt.s32.totalorder %s10, 1
        %s167 = scalar_select %p166, %s10, 1
        %s168 = smul.addr %s167, 10
        %s169 = smul.addr %s168, 8
        %s170 = scalar_lea.vmem %s3, %s169
      $region32: #{basic_block_forward.3} parent=23 // pred_fallthru
        _
    $region24: #{basic_block_forward.3} parent=5 // pred_fallthru
      _
    %p171 = scmp.le.s32.totalorder 1, %s10
    %p172 = scmp.lt.s32.totalorder %s10, 3
    %p173 = pnand %p171, %p172
    %p174 = pneg %p173
    // Predicated region
    $region33: #{basic_block_forward.3} parent=5 // pred_check
      _
    $region34: #{basic_block_forward.3} parent=5 // pred_check_branch
      %176 = sbr.rel (%p173) target = $region36
    $region35: #{basic_block_forward.3} parent=5 // pred_region
      %s177 = ssub.s32 %s10, 1
      %p178 = scmp.lt.s32.totalorder %s15, 1
      %s179 = scalar_select %p178, %s15, 1
      %s180 = smul.addr %s179, 14
      %s181 = smul.addr %s180, 4
      %s182 = scalar_lea.vmem %s0, %s181
      %p183 = pneg %p36
      %p184 = pneg %p33
      %p185 = pneg %p57
      %p186 = pneg %p54
      %p187 = pneg %p78
      %p188 = pneg %p75
      %p189 = scmp.lt.s32.totalorder %s15, 1
      %s190 = scalar_select %p189, %s15, 1
      %s191 = smul.addr %s190, 10
      %s192 = smul.addr %s191, 8
      %s193 = scalar_lea.vmem %s3, %s192
      %p194 = pneg %p104
      %p195 = pneg %p101
      %p196 = pneg %p130
      %p197 = pneg %p127
      %p198 = scmp.lt.s32.totalorder %s15, 1
      %s199 = scalar_select %p198, %s15, 1
      %s200 = smul.addr %s199, 10
      %s201 = smul.addr %s200, 8
      %s202 = scalar_lea.vmem %s4, %s201
      %p203 = scmp.lt.s32.totalorder %s15, 1
      %s204 = scalar_select %p203, %s15, 1
      %s205 = smul.addr %s204, 14
      %s206 = smul.addr %s205, 4
      %s207 = scalar_lea.vmem %s0, %s206
      %p208 = scmp.lt.s32.totalorder %s15, 1
      %s209 = scalar_select %p208, %s15, 1
      %s210 = smul.addr %s209, 10
      %s211 = smul.addr %s210, 8
      %s212 = scalar_lea.vmem %s3, %s211
      %p213 = scmp.lt.s32.totalorder %s15, 1
      %s214 = scalar_select %p213, %s15, 1
      %s215 = smul.addr %s214, 10
      %s216 = smul.addr %s215, 8
      %s217 = scalar_lea.vmem %s4, %s216
      %v219 = vld [vmem:[%s207] sm:$0xf]
      %v220 = vld [vmem:[%s207 + $0x4] sm:$0xf]
      %v221 = vld [vmem:[%s207 + $0x8] sm:$0xf]
      %v222 = vld [vmem:[%s207 + $0xc] sm:$0xf]
      %v223 = vld [vmem:[%s207 + $0x10] sm:$0xf]
      %v224 = vld [vmem:[%s207 + $0x14] sm:$0xf]
      %v225 = vld [vmem:[%s207 + $0x18] sm:$0xf]
      %v226 = vld [vmem:[%s207 + $0x1c] sm:$0xf]
      %v227 = vld [vmem:[%s207 + $0x20] sm:$0xf]
      %v228 = vld [vmem:[%s207 + $0x24] sm:$0xf]
      %v229 = vld [vmem:[%s1] sm:$0xf]
      %v230 = vld [vmem:[%s207 + $0x28] sm:$0x1]
      %s231 = scalar_lea.vmem %s1, 4
      %v232 = vld [vmem:[%s231] sm:$0xf]
      %v244 = vunpack.c.l.b16 %v219
      %v245 = vunpack.c.l.b16 %v220
      %v246 = vunpack.c.l.b16 %v221
      %v247 = vunpack.c.l.b16 %v222
      %v248 = vunpack.c.l.b16 %v223
      %v249 = vunpack.c.l.b16 %v224
      %v250 = vunpack.c.l.b16 %v225
      %v251 = vunpack.c.l.b16 %v226
      %v252 = vunpack.c.l.b16 %v227
      %v253 = vunpack.c.l.b16 %v228
      %v254 = vunpack.c.l.b16 %v230
      %v255 = vpack.c.b16 %v245, %v244
      %v256 = vpack.c.b16 %v247, %v246
      %v257 = vpack.c.b16 %v249, %v248
      %v258 = vpack.c.b16 %v251, %v250
      %v259 = vpack.c.b16 %v253, %v252
      %v260 = vpack.c.b16 %v254, %v254
      %vm261 = vsmask.f32 7424
      %v263 = vshrl.u32 %v255, 16
      %v265 = vshll.u32 %v255, 16
      %v267 = vrot.slane %v265, 1
      %v268 = vor.u32 %v263, %v267
      %v270 = vshll.u32 %v256, 16
      %v272 = vrot.slane %v270, 1
      %v273 = vsel %vm261, %v268, %v272
      %v274 = vshrl.u32 %v256, 16
      %v276 = vor.u32 %v274, %v272
      %v278 = vshll.u32 %v257, 16
      %v280 = vrot.slane %v278, 1
      %v281 = vsel %vm261, %v276, %v280
      %v282 = vshrl.u32 %v257, 16
      %v284 = vor.u32 %v282, %v280
      %v286 = vshll.u32 %v258, 16
      %v288 = vrot.slane %v286, 1
      %v289 = vsel %vm261, %v284, %v288
      %v290 = vshrl.u32 %v258, 16
      %v292 = vor.u32 %v290, %v288
      %v294 = vshll.u32 %v259, 16
      %v296 = vrot.slane %v294, 1
      %v297 = vsel %vm261, %v292, %v296
      %v298 = vshrl.u32 %v259, 16
      %v300 = vor.u32 %v298, %v296
      %v302 = vshll.u32 %v260, 16
      %v304 = vrot.slane %v302, 1
      %v305 = vsel %vm261, %v300, %v304
      %vm306 = vcmask 64512
      %v308 = vsel %vm306, %v273, 0
      %v311 = vsel %vm306, %v281, 0
      %v314 = vsel %vm306, %v289, 0
      %v317 = vsel %vm306, %v297, 0
      %v320 = vsel %vm306, %v305, 0
      %vm322 = vcmask 1043456
      %v324 = vsel %vm322, %v232, 0
      %326 = vmatprep.subr.bf16.mxu0 0
      %327 = vmatpush1.bf16.msra.mxu0 %v324
      %328 = vmatprep.subr.bf16.mxu0 0
      %329 = vmatpush1.bf16.msra.mxu0 0
      %330 = vmatprep.subr.bf16.mxu0 0
      %331 = vmatpush1.bf16.msra.mxu0 0
      %332 = vmatprep.subr.bf16.mxu0 0
      %333 = vmatpush1.bf16.msra.mxu0 0
      %334 = vmatprep.subr.bf16.mxu0 0
      %335 = vmatpush1.bf16.msra.mxu0 0
      %336 = vmatprep.subr.bf16.mxu0 0
      %337 = vmatpush1.bf16.msra.mxu0 0
      %338 = vmatprep.subr.bf16.mxu0 0
      %339 = vmatpush1.bf16.msra.mxu0 0
      %340 = vmatprep.subr.bf16.mxu0 0
      %341 = vmatpush1.bf16.msra.mxu0 0
      %342 = vmatprep.subr.bf16.mxu0 0
      %343 = vmatpush1.bf16.msra.mxu0 0
      %344 = vmatprep.subr.bf16.mxu0 0
      %345 = vmatpush1.bf16.msra.mxu0 0
      %346 = vmatprep.subr.bf16.mxu0 0
      %347 = vmatpush1.bf16.msra.mxu0 0
      %348 = vmatprep.subr.bf16.mxu0 0
      %349 = vmatpush1.bf16.msra.mxu0 0
      %350 = vmatprep.subr.bf16.mxu0 0
      %351 = vmatpush1.bf16.msra.mxu0 0
      %352 = vmatprep.subr.bf16.mxu0 0
      %353 = vmatpush1.bf16.msra.mxu0 0
      %354 = vmatprep.subr.bf16.mxu0 0
      %355 = vmatpush1.bf16.msra.mxu0 0
      %356 = vmatprep.subr.bf16.mxu0 0
      %357 = vmatpush1.bf16.msra.mxu0 0
      %358 = vmatprep.mubr.bf16.mxu0 0
      %359 = vmatmul.mubr.bf16.gmra.mrb[0].mxu0 %v308
      %v360 = vpop.f32.mrb[0].mxu0
      %v361 = vadd.f32 0.0, %v360
      %v362 = vpop.f32.mrb[0].mxu0
      %v363 = vpop.f32.mrb[0].mxu0
      %v364 = vadd.f32 0.0, %v363
      %v365 = vpop.f32.mrb[0].mxu0
      %366 = vmatprep.mubr.bf16.mxu0 0
      %367 = vmatmul.mubr.bf16.gmra.mrb[0].mxu0 %v311
      %v368 = vpop.f32.mrb[0].mxu0
      %v369 = vadd.f32 0.0, %v368
      %v370 = vpop.f32.mrb[0].mxu0
      %v371 = vpop.f32.mrb[0].mxu0
      %v372 = vadd.f32 0.0, %v371
      %v373 = vpop.f32.mrb[0].mxu0
      %374 = vmatprep.mubr.bf16.mxu0 0
      %375 = vmatmul.mubr.bf16.gmra.mrb[0].mxu0 %v314
      %v376 = vpop.f32.mrb[0].mxu0
      %v377 = vadd.f32 0.0, %v376
      %v378 = vpop.f32.mrb[0].mxu0
      %v379 = vpop.f32.mrb[0].mxu0
      %v380 = vadd.f32 0.0, %v379
      %v381 = vpop.f32.mrb[0].mxu0
      %382 = vmatprep.mubr.bf16.mxu0 0
      %383 = vmatmul.mubr.bf16.gmra.mrb[0].mxu0 %v317
      %v384 = vpop.f32.mrb[0].mxu0
      %v385 = vadd.f32 0.0, %v384
      %v386 = vpop.f32.mrb[0].mxu0
      %v387 = vpop.f32.mrb[0].mxu0
      %v388 = vadd.f32 0.0, %v387
      %v389 = vpop.f32.mrb[0].mxu0
      %390 = vmatprep.mubr.bf16.mxu0 0
      %391 = vmatmul.mubr.bf16.gmra.mrb[0].mxu0 %v320
      %v392 = vpop.f32.mrb[0].mxu0
      %v393 = vadd.f32 0.0, %v392
      %v394 = vpop.f32.mrb[0].mxu0
      %v395 = vpop.f32.mrb[0].mxu0
      %v396 = vadd.f32 0.0, %v395
      %v397 = vpop.f32.mrb[0].mxu0
      %398 = vdwg.mxu0
      %v399 = vsel %vm306, %v255, 0
      %v401 = vsel %vm306, %v256, 0
      %v403 = vsel %vm306, %v257, 0
      %v405 = vsel %vm306, %v258, 0
      %v407 = vsel %vm306, %v259, 0
      %v410 = vsel %vm322, %v229, 0
      %412 = vmatprep.subr.bf16.mxu0 0
      %413 = vmatpush1.bf16.msra.mxu0 %v410
      %414 = vmatprep.subr.bf16.mxu0 0
      %415 = vmatpush1.bf16.msra.mxu0 0
      %416 = vmatprep.subr.bf16.mxu0 0
      %417 = vmatpush1.bf16.msra.mxu0 0
      %418 = vmatprep.subr.bf16.mxu0 0
      %419 = vmatpush1.bf16.msra.mxu0 0
      %420 = vmatprep.subr.bf16.mxu0 0
      %421 = vmatpush1.bf16.msra.mxu0 0
      %422 = vmatprep.subr.bf16.mxu0 0
      %423 = vmatpush1.bf16.msra.mxu0 0
      %424 = vmatprep.subr.bf16.mxu0 0
      %425 = vmatpush1.bf16.msra.mxu0 0
      %426 = vmatprep.subr.bf16.mxu0 0
      %427 = vmatpush1.bf16.msra.mxu0 0
      %428 = vmatprep.subr.bf16.mxu0 0
      %429 = vmatpush1.bf16.msra.mxu0 0
      %430 = vmatprep.subr.bf16.mxu0 0
      %431 = vmatpush1.bf16.msra.mxu0 0
      %432 = vmatprep.subr.bf16.mxu0 0
      %433 = vmatpush1.bf16.msra.mxu0 0
      %434 = vmatprep.subr.bf16.mxu0 0
      %435 = vmatpush1.bf16.msra.mxu0 0
      %436 = vmatprep.subr.bf16.mxu0 0
      %437 = vmatpush1.bf16.msra.mxu0 0
      %438 = vmatprep.subr.bf16.mxu0 0
      %439 = vmatpush1.bf16.msra.mxu0 0
      %440 = vmatprep.subr.bf16.mxu0 0
      %441 = vmatpush1.bf16.msra.mxu0 0
      %442 = vmatprep.subr.bf16.mxu0 0
      %443 = vmatpush1.bf16.msra.mxu0 0
      %444 = vmatprep.mubr.bf16.mxu0 0
      %445 = vmatmul.mubr.bf16.gmra.mrb[0].mxu0 %v399
      %v446 = vpop.f32.mrb[0].mxu0
      %v447 = vadd.f32 %v361, %v446
      %v448 = vpop.f32.mrb[0].mxu0
      %v449 = vpop.f32.mrb[0].mxu0
      %v450 = vadd.f32 %v364, %v449
      %v451 = vpop.f32.mrb[0].mxu0
      %452 = vmatprep.mubr.bf16.mxu0 0
      %453 = vmatmul.mubr.bf16.gmra.mrb[0].mxu0 %v401
      %v454 = vpop.f32.mrb[0].mxu0
      %v455 = vadd.f32 %v369, %v454
      %v456 = vpop.f32.mrb[0].mxu0
      %v457 = vpop.f32.mrb[0].mxu0
      %v458 = vadd.f32 %v372, %v457
      %v459 = vpop.f32.mrb[0].mxu0
      %460 = vmatprep.mubr.bf16.mxu0 0
      %461 = vmatmul.mubr.bf16.gmra.mrb[0].mxu0 %v403
      %v462 = vpop.f32.mrb[0].mxu0
      %v463 = vadd.f32 %v377, %v462
      %v464 = vpop.f32.mrb[0].mxu0
      %v465 = vpop.f32.mrb[0].mxu0
      %v466 = vadd.f32 %v380, %v465
      %v467 = vpop.f32.mrb[0].mxu0
      %468 = vmatprep.mubr.bf16.mxu0 0
      %469 = vmatmul.mubr.bf16.gmra.mrb[0].mxu0 %v405
      %v470 = vpop.f32.mrb[0].mxu0
      %v471 = vadd.f32 %v385, %v470
      %v472 = vpop.f32.mrb[0].mxu0
      %v473 = vpop.f32.mrb[0].mxu0
      %v474 = vadd.f32 %v388, %v473
      %v475 = vpop.f32.mrb[0].mxu0
      %476 = vmatprep.mubr.bf16.mxu0 0
      %477 = vmatmul.mubr.bf16.gmra.mrb[0].mxu0 %v407
      %v478 = vpop.f32.mrb[0].mxu0
      %v479 = vadd.f32 %v393, %v478
      %v480 = vpop.f32.mrb[0].mxu0
      %v481 = vpop.f32.mrb[0].mxu0
      %v482 = vadd.f32 %v396, %v481
      %v483 = vpop.f32.mrb[0].mxu0
      %484 = vdwg.mxu0
      %v485 = vld [vmem:[%s207] sm:$0xe]
      %s486 = scalar_lea.vmem %s1, 8
      %v487 = vld [vmem:[%s486] sm:$0xf]
      %v489 = vunpack.c.l.b16 %v485
      %v490 = vpack.c.b16 %v245, %v489
      %vm491 = vcmask 1046528
      %v492 = vrot.slane %v490, 1
      %v493 = vrot.slane %v256, 1
      %v494 = vsel %vm491, %v492, %v493
      %v495 = vrot.slane %v257, 1
      %v496 = vsel %vm491, %v493, %v495
      %v497 = vrot.slane %v258, 1
      %v498 = vsel %vm491, %v495, %v497
      %v499 = vrot.slane %v259, 1
      %v500 = vsel %vm491, %v497, %v499
      %v501 = vrot.slane %v260, 1
      %v502 = vsel %vm491, %v499, %v501
      %v504 = vsel %vm306, %v494, 0
      %v507 = vsel %vm306, %v496, 0
      %v510 = vsel %vm306, %v498, 0
      %v513 = vsel %vm306, %v500, 0
      %v516 = vsel %vm306, %v502, 0
      %v519 = vsel %vm322, %v487, 0
      %521 = vmatprep.subr.bf16.mxu0 0
      %522 = vmatpush1.bf16.msra.mxu0 %v519
      %523 = vmatprep.subr.bf16.mxu0 0
      %524 = vmatpush1.bf16.msra.mxu0 0
      %525 = vmatprep.subr.bf16.mxu0 0
      %526 = vmatpush1.bf16.msra.mxu0 0
      %527 = vmatprep.subr.bf16.mxu0 0
      %528 = vmatpush1.bf16.msra.mxu0 0
      %529 = vmatprep.subr.bf16.mxu0 0
      %530 = vmatpush1.bf16.msra.mxu0 0
      %531 = vmatprep.subr.bf16.mxu0 0
      %532 = vmatpush1.bf16.msra.mxu0 0
      %533 = vmatprep.subr.bf16.mxu0 0
      %534 = vmatpush1.bf16.msra.mxu0 0
      %535 = vmatprep.subr.bf16.mxu0 0
      %536 = vmatpush1.bf16.msra.mxu0 0
      %537 = vmatprep.subr.bf16.mxu0 0
      %538 = vmatpush1.bf16.msra.mxu0 0
      %539 = vmatprep.subr.bf16.mxu0 0
      %540 = vmatpush1.bf16.msra.mxu0 0
      %541 = vmatprep.subr.bf16.mxu0 0
      %542 = vmatpush1.bf16.msra.mxu0 0
      %543 = vmatprep.subr.bf16.mxu0 0
      %544 = vmatpush1.bf16.msra.mxu0 0
      %545 = vmatprep.subr.bf16.mxu0 0
      %546 = vmatpush1.bf16.msra.mxu0 0
      %547 = vmatprep.subr.bf16.mxu0 0
      %548 = vmatpush1.bf16.msra.mxu0 0
      %549 = vmatprep.subr.bf16.mxu0 0
      %550 = vmatpush1.bf16.msra.mxu0 0
      %551 = vmatprep.subr.bf16.mxu0 0
      %552 = vmatpush1.bf16.msra.mxu0 0
      %553 = vmatprep.mubr.bf16.mxu0 0
      %554 = vmatmul.mubr.bf16.gmra.mrb[0].mxu0 %v504
      %v555 = vpop.f32.mrb[0].mxu0
      %v556 = vadd.f32 0.0, %v555
      %v557 = vpop.f32.mrb[0].mxu0
      %v558 = vpop.f32.mrb[0].mxu0
      %v559 = vadd.f32 0.0, %v558
      %v560 = vpop.f32.mrb[0].mxu0
      %561 = vmatprep.mubr.bf16.mxu0 0
      %562 = vmatmul.mubr.bf16.gmra.mrb[0].mxu0 %v507
      %v563 = vpop.f32.mrb[0].mxu0
      %v564 = vadd.f32 0.0, %v563
      %v565 = vpop.f32.mrb[0].mxu0
      %v566 = vpop.f32.mrb[0].mxu0
      %v567 = vadd.f32 0.0, %v566
      %v568 = vpop.f32.mrb[0].mxu0
      %569 = vmatprep.mubr.bf16.mxu0 0
      %570 = vmatmul.mubr.bf16.gmra.mrb[0].mxu0 %v510
      %v571 = vpop.f32.mrb[0].mxu0
      %v572 = vadd.f32 0.0, %v571
      %v573 = vpop.f32.mrb[0].mxu0
      %v574 = vpop.f32.mrb[0].mxu0
      %v575 = vadd.f32 0.0, %v574
      %v576 = vpop.f32.mrb[0].mxu0
      %577 = vmatprep.mubr.bf16.mxu0 0
      %578 = vmatmul.mubr.bf16.gmra.mrb[0].mxu0 %v513
      %v579 = vpop.f32.mrb[0].mxu0
      %v580 = vadd.f32 0.0, %v579
      %v581 = vpop.f32.mrb[0].mxu0
      %v582 = vpop.f32.mrb[0].mxu0
      %v583 = vadd.f32 0.0, %v582
      %v584 = vpop.f32.mrb[0].mxu0
      %585 = vmatprep.mubr.bf16.mxu0 0
      %586 = vmatmul.mubr.bf16.gmra.mrb[0].mxu0 %v516
      %v587 = vpop.f32.mrb[0].mxu0
      %v588 = vadd.f32 0.0, %v587
      %v589 = vpop.f32.mrb[0].mxu0
      %v590 = vpop.f32.mrb[0].mxu0
      %v591 = vadd.f32 0.0, %v590
      %v592 = vpop.f32.mrb[0].mxu0
      %593 = vdwg.mxu0
      %v594 = vadd.f32 %v447, %v556
      %v595 = vadd.f32 %v450, %v559
      %v596 = vadd.f32 %v455, %v564
      %v597 = vadd.f32 %v458, %v567
      %v598 = vadd.f32 %v463, %v572
      %v599 = vadd.f32 %v466, %v575
      %v600 = vadd.f32 %v471, %v580
      %v601 = vadd.f32 %v474, %v583
      %v602 = vadd.f32 %v479, %v588
      %v603 = vadd.f32 %v482, %v591
      %v604 = vld [vmem:[%s207 + $0x4] sm:$0xe]
      %v605 = vld [vmem:[%s207 + $0x8] sm:$0xf]
      %v606 = vld [vmem:[%s207 + $0xc] sm:$0xf]
      %v607 = vld [vmem:[%s207 + $0x10] sm:$0xf]
      %v608 = vld [vmem:[%s207 + $0x14] sm:$0xf]
      %v609 = vld [vmem:[%s207 + $0x18] sm:$0xf]
      %v610 = vld [vmem:[%s207 + $0x1c] sm:$0xf]
      %v611 = vld [vmem:[%s207 + $0x20] sm:$0xf]
      %v612 = vld [vmem:[%s207 + $0x24] sm:$0xf]
      %v613 = vld [vmem:[%s207 + $0x28] sm:$0xf]
      %v614 = vld [vmem:[%s207 + $0x2c] sm:$0x1]
      %s615 = scalar_lea.vmem %s1, 12
      %v616 = vld [vmem:[%s615] sm:$0xf]
      %v628 = vunpack.c.l.b16 %v604
      %v629 = vunpack.c.l.b16 %v605
      %v630 = vunpack.c.l.b16 %v606
      %v631 = vunpack.c.l.b16 %v607
      %v632 = vunpack.c.l.b16 %v608
      %v633 = vunpack.c.l.b16 %v609
      %v634 = vunpack.c.l.b16 %v610
      %v635 = vunpack.c.l.b16 %v611
      %v636 = vunpack.c.l.b16 %v612
      %v637 = vunpack.c.l.b16 %v613
      %v638 = vunpack.c.l.b16 %v614
      %v639 = vpack.c.b16 %v629, %v628
      %v640 = vpack.c.b16 %v631, %v630
      %v641 = vpack.c.b16 %v633, %v632
      %v642 = vpack.c.b16 %v635, %v634
      %v643 = vpack.c.b16 %v637, %v636
      %v644 = vpack.c.b16 %v638, %v638
      %v645 = vrot.slane %v639, 1
      %v646 = vrot.slane %v640, 1
      %v647 = vsel %vm491, %v645, %v646
      %v648 = vrot.slane %v641, 1
      %v649 = vsel %vm491, %v646, %v648
      %v650 = vrot.slane %v642, 1
      %v651 = vsel %vm491, %v648, %v650
      %v652 = vrot.slane %v643, 1
      %v653 = vsel %vm491, %v650, %v652
      %v654 = vrot.slane %v644, 1
      %v655 = vsel %vm491, %v652, %v654
      %v657 = vsel %vm306, %v647, 0
      %v660 = vsel %vm306, %v649, 0
      %v663 = vsel %vm306, %v651, 0
      %v666 = vsel %vm306, %v653, 0
      %v669 = vsel %vm306, %v655, 0
      %v672 = vsel %vm322, %v616, 0
      %674 = vmatprep.subr.bf16.mxu0 0
      %675 = vmatpush1.bf16.msra.mxu0 %v672
      %676 = vmatprep.subr.bf16.mxu0 0
      %677 = vmatpush1.bf16.msra.mxu0 0
      %678 = vmatprep.subr.bf16.mxu0 0
      %679 = vmatpush1.bf16.msra.mxu0 0
      %680 = vmatprep.subr.bf16.mxu0 0
      %681 = vmatpush1.bf16.msra.mxu0 0
      %682 = vmatprep.subr.bf16.mxu0 0
      %683 = vmatpush1.bf16.msra.mxu0 0
      %684 = vmatprep.subr.bf16.mxu0 0
      %685 = vmatpush1.bf16.msra.mxu0 0
      %686 = vmatprep.subr.bf16.mxu0 0
      %687 = vmatpush1.bf16.msra.mxu0 0
      %688 = vmatprep.subr.bf16.mxu0 0
      %689 = vmatpush1.bf16.msra.mxu0 0
      %690 = vmatprep.subr.bf16.mxu0 0
      %691 = vmatpush1.bf16.msra.mxu0 0
      %692 = vmatprep.subr.bf16.mxu0 0
      %693 = vmatpush1.bf16.msra.mxu0 0
      %694 = vmatprep.subr.bf16.mxu0 0
      %695 = vmatpush1.bf16.msra.mxu0 0
      %696 = vmatprep.subr.bf16.mxu0 0
      %697 = vmatpush1.bf16.msra.mxu0 0
      %698 = vmatprep.subr.bf16.mxu0 0
      %699 = vmatpush1.bf16.msra.mxu0 0
      %700 = vmatprep.subr.bf16.mxu0 0
      %701 = vmatpush1.bf16.msra.mxu0 0
      %702 = vmatprep.subr.bf16.mxu0 0
      %703 = vmatpush1.bf16.msra.mxu0 0
      %704 = vmatprep.subr.bf16.mxu0 0
      %705 = vmatpush1.bf16.msra.mxu0 0
      %706 = vmatprep.mubr.bf16.mxu0 0
      %707 = vmatmul.mubr.bf16.gmra.mrb[0].mxu0 %v657
      %v708 = vpop.f32.mrb[0].mxu0
      %v709 = vadd.f32 0.0, %v708
      %v710 = vpop.f32.mrb[0].mxu0
      %v711 = vpop.f32.mrb[0].mxu0
      %v712 = vadd.f32 0.0, %v711
      %v713 = vpop.f32.mrb[0].mxu0
      %714 = vmatprep.mubr.bf16.mxu0 0
      %715 = vmatmul.mubr.bf16.gmra.mrb[0].mxu0 %v660
      %v716 = vpop.f32.mrb[0].mxu0
      %v717 = vadd.f32 0.0, %v716
      %v718 = vpop.f32.mrb[0].mxu0
      %v719 = vpop.f32.mrb[0].mxu0
      %v720 = vadd.f32 0.0, %v719
      %v721 = vpop.f32.mrb[0].mxu0
      %722 = vmatprep.mubr.bf16.mxu0 0
      %723 = vmatmul.mubr.bf16.gmra.mrb[0].mxu0 %v663
      %v724 = vpop.f32.mrb[0].mxu0
      %v725 = vadd.f32 0.0, %v724
      %v726 = vpop.f32.mrb[0].mxu0
      %v727 = vpop.f32.mrb[0].mxu0
      %v728 = vadd.f32 0.0, %v727
      %v729 = vpop.f32.mrb[0].mxu0
      %730 = vmatprep.mubr.bf16.mxu0 0
      %731 = vmatmul.mubr.bf16.gmra.mrb[0].mxu0 %v666
      %v732 = vpop.f32.mrb[0].mxu0
      %v733 = vadd.f32 0.0, %v732
      %v734 = vpop.f32.mrb[0].mxu0
      %v735 = vpop.f32.mrb[0].mxu0
      %v736 = vadd.f32 0.0, %v735
      %v737 = vpop.f32.mrb[0].mxu0
      %738 = vmatprep.mubr.bf16.mxu0 0
      %739 = vmatmul.mubr.bf16.gmra.mrb[0].mxu0 %v669
      %v740 = vpop.f32.mrb[0].mxu0
      %v741 = vadd.f32 0.0, %v740
      %v742 = vpop.f32.mrb[0].mxu0
      %v743 = vpop.f32.mrb[0].mxu0
      %v744 = vadd.f32 0.0, %v743
      %v745 = vpop.f32.mrb[0].mxu0
      %746 = vdwg.mxu0
      %v747 = vadd.f32 %v594, %v709
      %v748 = vadd.f32 %v595, %v712
      %v749 = vadd.f32 %v596, %v717
      %v750 = vadd.f32 %v597, %v720
      %v751 = vadd.f32 %v598, %v725
      %v752 = vadd.f32 %v599, %v728
      %v753 = vadd.f32 %v600, %v733
      %v754 = vadd.f32 %v601, %v736
      %v755 = vadd.f32 %v602, %v741
      %v756 = vadd.f32 %v603, %v744
      %v757 = vld [vmem:[%s207 + $0x2c] sm:$0x3]
      %s758 = scalar_lea.vmem %s1, 16
      %v759 = vld [vmem:[%s758] sm:$0xf]
      %v761 = vunpack.c.l.b16 %v757
      %v762 = vpack.c.b16 %v761, %v761
      %vm763 = vsmask.f32 6400
      %v765 = vshrl.u32 %v639, 16
      %v767 = vrot.slane %v765, 1
      %v768 = vshll.u32 %v639, 16
      %v770 = vrot.slane %v768, 2
      %v771 = vor.u32 %v767, %v770
      %v773 = vshrl.u32 %v640, 16
      %v775 = vrot.slane %v773, 1
      %v776 = vshll.u32 %v640, 16
      %v778 = vrot.slane %v776, 2
      %v779 = vor.u32 %v775, %v778
      %v780 = vsel %vm763, %v771, %v779
      %v782 = vshrl.u32 %v641, 16
      %v784 = vrot.slane %v782, 1
      %v785 = vshll.u32 %v641, 16
      %v787 = vrot.slane %v785, 2
      %v788 = vor.u32 %v784, %v787
      %v789 = vsel %vm763, %v779, %v788
      %v791 = vshrl.u32 %v642, 16
      %v793 = vrot.slane %v791, 1
      %v794 = vshll.u32 %v642, 16
      %v796 = vrot.slane %v794, 2
      %v797 = vor.u32 %v793, %v796
      %v798 = vsel %vm763, %v788, %v797
      %v800 = vshrl.u32 %v643, 16
      %v802 = vrot.slane %v800, 1
      %v803 = vshll.u32 %v643, 16
      %v805 = vrot.slane %v803, 2
      %v806 = vor.u32 %v802, %v805
      %v807 = vsel %vm763, %v797, %v806
      %v809 = vshrl.u32 %v762, 16
      %v811 = vrot.slane %v809, 1
      %v812 = vshll.u32 %v762, 16
      %v814 = vrot.slane %v812, 2
      %v815 = vor.u32 %v811, %v814
      %v816 = vsel %vm763, %v806, %v815
      %v818 = vsel %vm306, %v780, 0
      %v821 = vsel %vm306, %v789, 0
      %v824 = vsel %vm306, %v798, 0
      %v827 = vsel %vm306, %v807, 0
      %v830 = vsel %vm306, %v816, 0
      %v833 = vsel %vm322, %v759, 0
      %835 = vmatprep.subr.bf16.mxu0 0
      %836 = vmatpush1.bf16.msra.mxu0 %v833
      %837 = vmatprep.subr.bf16.mxu0 0
      %838 = vmatpush1.bf16.msra.mxu0 0
      %839 = vmatprep.subr.bf16.mxu0 0
      %840 = vmatpush1.bf16.msra.mxu0 0
      %841 = vmatprep.subr.bf16.mxu0 0
      %842 = vmatpush1.bf16.msra.mxu0 0
      %843 = vmatprep.subr.bf16.mxu0 0
      %844 = vmatpush1.bf16.msra.mxu0 0
      %845 = vmatprep.subr.bf16.mxu0 0
      %846 = vmatpush1.bf16.msra.mxu0 0
      %847 = vmatprep.subr.bf16.mxu0 0
      %848 = vmatpush1.bf16.msra.mxu0 0
      %849 = vmatprep.subr.bf16.mxu0 0
      %850 = vmatpush1.bf16.msra.mxu0 0
      %851 = vmatprep.subr.bf16.mxu0 0
      %852 = vmatpush1.bf16.msra.mxu0 0
      %853 = vmatprep.subr.bf16.mxu0 0
      %854 = vmatpush1.bf16.msra.mxu0 0
      %855 = vmatprep.subr.bf16.mxu0 0
      %856 = vmatpush1.bf16.msra.mxu0 0
      %857 = vmatprep.subr.bf16.mxu0 0
      %858 = vmatpush1.bf16.msra.mxu0 0
      %859 = vmatprep.subr.bf16.mxu0 0
      %860 = vmatpush1.bf16.msra.mxu0 0
      %861 = vmatprep.subr.bf16.mxu0 0
      %862 = vmatpush1.bf16.msra.mxu0 0
      %863 = vmatprep.subr.bf16.mxu0 0
      %864 = vmatpush1.bf16.msra.mxu0 0
      %865 = vmatprep.subr.bf16.mxu0 0
      %866 = vmatpush1.bf16.msra.mxu0 0
      %867 = vmatprep.mubr.bf16.mxu0 0
      %868 = vmatmul.mubr.bf16.gmra.mrb[0].mxu0 %v818
      %v869 = vpop.f32.mrb[0].mxu0
      %v870 = vadd.f32 0.0, %v869
      %v871 = vpop.f32.mrb[0].mxu0
      %v872 = vpop.f32.mrb[0].mxu0
      %v873 = vadd.f32 0.0, %v872
      %v874 = vpop.f32.mrb[0].mxu0
      %875 = vmatprep.mubr.bf16.mxu0 0
      %876 = vmatmul.mubr.bf16.gmra.mrb[0].mxu0 %v821
      %v877 = vpop.f32.mrb[0].mxu0
      %v878 = vadd.f32 0.0, %v877
      %v879 = vpop.f32.mrb[0].mxu0
      %v880 = vpop.f32.mrb[0].mxu0
      %v881 = vadd.f32 0.0, %v880
      %v882 = vpop.f32.mrb[0].mxu0
      %883 = vmatprep.mubr.bf16.mxu0 0
      %884 = vmatmul.mubr.bf16.gmra.mrb[0].mxu0 %v824
      %v885 = vpop.f32.mrb[0].mxu0
      %v886 = vadd.f32 0.0, %v885
      %v887 = vpop.f32.mrb[0].mxu0
      %v888 = vpop.f32.mrb[0].mxu0
      %v889 = vadd.f32 0.0, %v888
      %v890 = vpop.f32.mrb[0].mxu0
      %891 = vmatprep.mubr.bf16.mxu0 0
      %892 = vmatmul.mubr.bf16.gmra.mrb[0].mxu0 %v827
      %v893 = vpop.f32.mrb[0].mxu0
      %v894 = vadd.f32 0.0, %v893
      %v895 = vpop.f32.mrb[0].mxu0
      %v896 = vpop.f32.mrb[0].mxu0
      %v897 = vadd.f32 0.0, %v896
      %v898 = vpop.f32.mrb[0].mxu0
      %899 = vmatprep.mubr.bf16.mxu0 0
      %900 = vmatmul.mubr.bf16.gmra.mrb[0].mxu0 %v830
      %v901 = vpop.f32.mrb[0].mxu0
      %v902 = vadd.f32 0.0, %v901
      %v903 = vpop.f32.mrb[0].mxu0
      %v904 = vpop.f32.mrb[0].mxu0
      %v905 = vadd.f32 0.0, %v904
      %v906 = vpop.f32.mrb[0].mxu0
      %907 = vdwg.mxu0
      %v908 = vadd.f32 %v747, %v870
      %v909 = vadd.f32 %v748, %v873
      %v910 = vadd.f32 %v749, %v878
      %v911 = vadd.f32 %v750, %v881
      %v912 = vadd.f32 %v751, %v886
      %v913 = vadd.f32 %v752, %v889
      %v914 = vadd.f32 %v753, %v894
      %v915 = vadd.f32 %v754, %v897
      %v916 = vadd.f32 %v755, %v902
      %v917 = vadd.f32 %v756, %v905
      %v918 = vld [vmem:[%s207 + $0x4] sm:$0xc]
      %s919 = scalar_lea.vmem %s1, 20
      %v920 = vld [vmem:[%s919] sm:$0xf]
      %v922 = vunpack.c.l.b16 %v918
      %v923 = vpack.c.b16 %v629, %v922
      %vm924 = vcmask 1045504
      %v925 = vrot.slane %v923, 2
      %v926 = vrot.slane %v640, 2
      %v927 = vsel %vm924, %v925, %v926
      %v928 = vrot.slane %v641, 2
      %v929 = vsel %vm924, %v926, %v928
      %v930 = vrot.slane %v642, 2
      %v931 = vsel %vm924, %v928, %v930
      %v932 = vrot.slane %v643, 2
      %v933 = vsel %vm924, %v930, %v932
      %v934 = vrot.slane %v762, 2
      %v935 = vsel %vm924, %v932, %v934
      %v937 = vsel %vm306, %v927, 0
      %v940 = vsel %vm306, %v929, 0
      %v943 = vsel %vm306, %v931, 0
      %v946 = vsel %vm306, %v933, 0
      %v949 = vsel %vm306, %v935, 0
      %v952 = vsel %vm322, %v920, 0
      %954 = vmatprep.subr.bf16.mxu0 0
      %955 = vmatpush1.bf16.msra.mxu0 %v952
      %956 = vmatprep.subr.bf16.mxu0 0
      %957 = vmatpush1.bf16.msra.mxu0 0
      %958 = vmatprep.subr.bf16.mxu0 0
      %959 = vmatpush1.bf16.msra.mxu0 0
      %960 = vmatprep.subr.bf16.mxu0 0
      %961 = vmatpush1.bf16.msra.mxu0 0
      %962 = vmatprep.subr.bf16.mxu0 0
      %963 = vmatpush1.bf16.msra.mxu0 0
      %964 = vmatprep.subr.bf16.mxu0 0
      %965 = vmatpush1.bf16.msra.mxu0 0
      %966 = vmatprep.subr.bf16.mxu0 0
      %967 = vmatpush1.bf16.msra.mxu0 0
      %968 = vmatprep.subr.bf16.mxu0 0
      %969 = vmatpush1.bf16.msra.mxu0 0
      %970 = vmatprep.subr.bf16.mxu0 0
      %971 = vmatpush1.bf16.msra.mxu0 0
      %972 = vmatprep.subr.bf16.mxu0 0
      %973 = vmatpush1.bf16.msra.mxu0 0
      %974 = vmatprep.subr.bf16.mxu0 0
      %975 = vmatpush1.bf16.msra.mxu0 0
      %976 = vmatprep.subr.bf16.mxu0 0
      %977 = vmatpush1.bf16.msra.mxu0 0
      %978 = vmatprep.subr.bf16.mxu0 0
      %979 = vmatpush1.bf16.msra.mxu0 0
      %980 = vmatprep.subr.bf16.mxu0 0
      %981 = vmatpush1.bf16.msra.mxu0 0
      %982 = vmatprep.subr.bf16.mxu0 0
      %983 = vmatpush1.bf16.msra.mxu0 0
      %984 = vmatprep.subr.bf16.mxu0 0
      %985 = vmatpush1.bf16.msra.mxu0 0
      %986 = vmatprep.mubr.bf16.mxu0 0
      %987 = vmatmul.mubr.bf16.gmra.mrb[0].mxu0 %v937
      %v988 = vpop.f32.mrb[0].mxu0
      %v989 = vadd.f32 0.0, %v988
      %v990 = vpop.f32.mrb[0].mxu0
      %v991 = vpop.f32.mrb[0].mxu0
      %v992 = vadd.f32 0.0, %v991
      %v993 = vpop.f32.mrb[0].mxu0
      %994 = vmatprep.mubr.bf16.mxu0 0
      %995 = vmatmul.mubr.bf16.gmra.mrb[0].mxu0 %v940
      %v996 = vpop.f32.mrb[0].mxu0
      %v997 = vadd.f32 0.0, %v996
      %v998 = vpop.f32.mrb[0].mxu0
      %v999 = vpop.f32.mrb[0].mxu0
      %v1000 = vadd.f32 0.0, %v999
      %v1001 = vpop.f32.mrb[0].mxu0
      %1002 = vmatprep.mubr.bf16.mxu0 0
      %1003 = vmatmul.mubr.bf16.gmra.mrb[0].mxu0 %v943
      %v1004 = vpop.f32.mrb[0].mxu0
      %v1005 = vadd.f32 0.0, %v1004
      %v1006 = vpop.f32.mrb[0].mxu0
      %v1007 = vpop.f32.mrb[0].mxu0
      %v1008 = vadd.f32 0.0, %v1007
      %v1009 = vpop.f32.mrb[0].mxu0
      %1010 = vmatprep.mubr.bf16.mxu0 0
      %1011 = vmatmul.mubr.bf16.gmra.mrb[0].mxu0 %v946
      %v1012 = vpop.f32.mrb[0].mxu0
      %v1013 = vadd.f32 0.0, %v1012
      %v1014 = vpop.f32.mrb[0].mxu0
      %v1015 = vpop.f32.mrb[0].mxu0
      %v1016 = vadd.f32 0.0, %v1015
      %v1017 = vpop.f32.mrb[0].mxu0
      %1018 = vmatprep.mubr.bf16.mxu0 0
      %1019 = vmatmul.mubr.bf16.gmra.mrb[0].mxu0 %v949
      %v1020 = vpop.f32.mrb[0].mxu0
      %v1021 = vadd.f32 0.0, %v1020
      %v1022 = vpop.f32.mrb[0].mxu0
      %v1023 = vpop.f32.mrb[0].mxu0
      %v1024 = vadd.f32 0.0, %v1023
      %v1025 = vpop.f32.mrb[0].mxu0
      %1026 = vdwg.mxu0
      %v1027 = vadd.f32 %v908, %v989
      %v1028 = vadd.f32 %v909, %v992
      %v1029 = vadd.f32 %v910, %v997
      %v1030 = vadd.f32 %v911, %v1000
      %v1031 = vadd.f32 %v912, %v1005
      %v1032 = vadd.f32 %v913, %v1008
      %v1033 = vadd.f32 %v914, %v1013
      %v1034 = vadd.f32 %v915, %v1016
      %v1035 = vadd.f32 %v916, %v1021
      %v1036 = vadd.f32 %v917, %v1024
      %v1037 = vld [vmem:[%s207 + $0x8] sm:$0xc]
      %v1038 = vld [vmem:[%s207 + $0xc] sm:$0xf]
      %v1039 = vld [vmem:[%s207 + $0x10] sm:$0xf]
      %v1040 = vld [vmem:[%s207 + $0x14] sm:$0xf]
      %v1041 = vld [vmem:[%s207 + $0x18] sm:$0xf]
      %v1042 = vld [vmem:[%s207 + $0x1c] sm:$0xf]
      %v1043 = vld [vmem:[%s207 + $0x20] sm:$0xf]
      %v1044 = vld [vmem:[%s207 + $0x24] sm:$0xf]
      %v1045 = vld [vmem:[%s207 + $0x28] sm:$0xf]
      %v1046 = vld [vmem:[%s207 + $0x2c] sm:$0xf]
      %v1047 = vld [vmem:[%s207 + $0x30] sm:$0x3]
      %s1048 = scalar_lea.vmem %s1, 24
      %v1049 = vld [vmem:[%s1048] sm:$0xf]
      %v1061 = vunpack.c.l.b16 %v1037
      %v1062 = vunpack.c.l.b16 %v1038
      %v1063 = vunpack.c.l.b16 %v1039
      %v1064 = vunpack.c.l.b16 %v1040
      %v1065 = vunpack.c.l.b16 %v1041
      %v1066 = vunpack.c.l.b16 %v1042
      %v1067 = vunpack.c.l.b16 %v1043
      %v1068 = vunpack.c.l.b16 %v1044
      %v1069 = vunpack.c.l.b16 %v1045
      %v1070 = vunpack.c.l.b16 %v1046
      %v1071 = vunpack.c.l.b16 %v1047
      %v1072 = vpack.c.b16 %v1062, %v1061
      %v1073 = vpack.c.b16 %v1064, %v1063
      %v1074 = vpack.c.b16 %v1066, %v1065
      %v1075 = vpack.c.b16 %v1068, %v1067
      %v1076 = vpack.c.b16 %v1070, %v1069
      %v1077 = vpack.c.b16 %v1071, %v1071
      %v1078 = vrot.slane %v1072, 2
      %v1079 = vrot.slane %v1073, 2
      %v1080 = vsel %vm924, %v1078, %v1079
      %v1081 = vrot.slane %v1074, 2
      %v1082 = vsel %vm924, %v1079, %v1081
      %v1083 = vrot.slane %v1075, 2
      %v1084 = vsel %vm924, %v1081, %v1083
      %v1085 = vrot.slane %v1076, 2
      %v1086 = vsel %vm924, %v1083, %v1085
      %v1087 = vrot.slane %v1077, 2
      %v1088 = vsel %vm924, %v1085, %v1087
      %v1090 = vsel %vm306, %v1080, 0
      %v1093 = vsel %vm306, %v1082, 0
      %v1096 = vsel %vm306, %v1084, 0
      %v1099 = vsel %vm306, %v1086, 0
      %v1102 = vsel %vm306, %v1088, 0
      %v1105 = vsel %vm322, %v1049, 0
      %1107 = vmatprep.subr.bf16.mxu0 0
      %1108 = vmatpush1.bf16.msra.mxu0 %v1105
      %1109 = vmatprep.subr.bf16.mxu0 0
      %1110 = vmatpush1.bf16.msra.mxu0 0
      %1111 = vmatprep.subr.bf16.mxu0 0
      %1112 = vmatpush1.bf16.msra.mxu0 0
      %1113 = vmatprep.subr.bf16.mxu0 0
      %1114 = vmatpush1.bf16.msra.mxu0 0
      %1115 = vmatprep.subr.bf16.mxu0 0
      %1116 = vmatpush1.bf16.msra.mxu0 0
      %1117 = vmatprep.subr.bf16.mxu0 0
      %1118 = vmatpush1.bf16.msra.mxu0 0
      %1119 = vmatprep.subr.bf16.mxu0 0
      %1120 = vmatpush1.bf16.msra.mxu0 0
      %1121 = vmatprep.subr.bf16.mxu0 0
      %1122 = vmatpush1.bf16.msra.mxu0 0
      %1123 = vmatprep.subr.bf16.mxu0 0
      %1124 = vmatpush1.bf16.msra.mxu0 0
      %1125 = vmatprep.subr.bf16.mxu0 0
      %1126 = vmatpush1.bf16.msra.mxu0 0
      %1127 = vmatprep.subr.bf16.mxu0 0
      %1128 = vmatpush1.bf16.msra.mxu0 0
      %1129 = vmatprep.subr.bf16.mxu0 0
      %1130 = vmatpush1.bf16.msra.mxu0 0
      %1131 = vmatprep.subr.bf16.mxu0 0
      %1132 = vmatpush1.bf16.msra.mxu0 0
      %1133 = vmatprep.subr.bf16.mxu0 0
      %1134 = vmatpush1.bf16.msra.mxu0 0
      %1135 = vmatprep.subr.bf16.mxu0 0
      %1136 = vmatpush1.bf16.msra.mxu0 0
      %1137 = vmatprep.subr.bf16.mxu0 0
      %1138 = vmatpush1.bf16.msra.mxu0 0
      %1139 = vmatprep.mubr.bf16.mxu0 0
      %1140 = vmatmul.mubr.bf16.gmra.mrb[0].mxu0 %v1090
      %v1141 = vpop.f32.mrb[0].mxu0
      %v1142 = vadd.f32 0.0, %v1141
      %v1143 = vpop.f32.mrb[0].mxu0
      %v1144 = vpop.f32.mrb[0].mxu0
      %v1145 = vadd.f32 0.0, %v1144
      %v1146 = vpop.f32.mrb[0].mxu0
      %1147 = vmatprep.mubr.bf16.mxu0 0
      %1148 = vmatmul.mubr.bf16.gmra.mrb[0].mxu0 %v1093
      %v1149 = vpop.f32.mrb[0].mxu0
      %v1150 = vadd.f32 0.0, %v1149
      %v1151 = vpop.f32.mrb[0].mxu0
      %v1152 = vpop.f32.mrb[0].mxu0
      %v1153 = vadd.f32 0.0, %v1152
      %v1154 = vpop.f32.mrb[0].mxu0
      %1155 = vmatprep.mubr.bf16.mxu0 0
      %1156 = vmatmul.mubr.bf16.gmra.mrb[0].mxu0 %v1096
      %v1157 = vpop.f32.mrb[0].mxu0
      %v1158 = vadd.f32 0.0, %v1157
      %v1159 = vpop.f32.mrb[0].mxu0
      %v1160 = vpop.f32.mrb[0].mxu0
      %v1161 = vadd.f32 0.0, %v1160
      %v1162 = vpop.f32.mrb[0].mxu0
      %1163 = vmatprep.mubr.bf16.mxu0 0
      %1164 = vmatmul.mubr.bf16.gmra.mrb[0].mxu0 %v1099
      %v1165 = vpop.f32.mrb[0].mxu0
      %v1166 = vadd.f32 0.0, %v1165
      %v1167 = vpop.f32.mrb[0].mxu0
      %v1168 = vpop.f32.mrb[0].mxu0
      %v1169 = vadd.f32 0.0, %v1168
      %v1170 = vpop.f32.mrb[0].mxu0
      %1171 = vmatprep.mubr.bf16.mxu0 0
      %1172 = vmatmul.mubr.bf16.gmra.mrb[0].mxu0 %v1102
      %v1173 = vpop.f32.mrb[0].mxu0
      %v1174 = vadd.f32 0.0, %v1173
      %v1175 = vpop.f32.mrb[0].mxu0
      %v1176 = vpop.f32.mrb[0].mxu0
      %v1177 = vadd.f32 0.0, %v1176
      %v1178 = vpop.f32.mrb[0].mxu0
      %1179 = vdwg.mxu0
      %v1180 = vadd.f32 %v1027, %v1142
      %v1181 = vadd.f32 %v1028, %v1145
      %v1182 = vadd.f32 %v1029, %v1150
      %v1183 = vadd.f32 %v1030, %v1153
      %v1184 = vadd.f32 %v1031, %v1158
      %v1185 = vadd.f32 %v1032, %v1161
      %v1186 = vadd.f32 %v1033, %v1166
      %v1187 = vadd.f32 %v1034, %v1169
      %v1188 = vadd.f32 %v1035, %v1174
      %v1189 = vadd.f32 %v1036, %v1177
      %v1190 = vld [vmem:[%s207 + $0x30] sm:$0x7]
      %s1191 = scalar_lea.vmem %s1, 28
      %v1192 = vld [vmem:[%s1191] sm:$0xf]
      %v1194 = vunpack.c.l.b16 %v1190
      %v1195 = vpack.c.b16 %v1194, %v1194
      %vm1196 = vsmask.f32 5376
      %v1198 = vshrl.u32 %v1072, 16
      %v1200 = vrot.slane %v1198, 2
      %v1201 = vshll.u32 %v1072, 16
      %v1203 = vrot.slane %v1201, 3
      %v1204 = vor.u32 %v1200, %v1203
      %v1206 = vshrl.u32 %v1073, 16
      %v1208 = vrot.slane %v1206, 2
      %v1209 = vshll.u32 %v1073, 16
      %v1211 = vrot.slane %v1209, 3
      %v1212 = vor.u32 %v1208, %v1211
      %v1213 = vsel %vm1196, %v1204, %v1212
      %v1215 = vshrl.u32 %v1074, 16
      %v1217 = vrot.slane %v1215, 2
      %v1218 = vshll.u32 %v1074, 16
      %v1220 = vrot.slane %v1218, 3
      %v1221 = vor.u32 %v1217, %v1220
      %v1222 = vsel %vm1196, %v1212, %v1221
      %v1224 = vshrl.u32 %v1075, 16
      %v1226 = vrot.slane %v1224, 2
      %v1227 = vshll.u32 %v1075, 16
      %v1229 = vrot.slane %v1227, 3
      %v1230 = vor.u32 %v1226, %v1229
      %v1231 = vsel %vm1196, %v1221, %v1230
      %v1233 = vshrl.u32 %v1076, 16
      %v1235 = vrot.slane %v1233, 2
      %v1236 = vshll.u32 %v1076, 16
      %v1238 = vrot.slane %v1236, 3
      %v1239 = vor.u32 %v1235, %v1238
      %v1240 = vsel %vm1196, %v1230, %v1239
      %v1242 = vshrl.u32 %v1195, 16
      %v1244 = vrot.slane %v1242, 2
      %v1245 = vshll.u32 %v1195, 16
      %v1247 = vrot.slane %v1245, 3
      %v1248 = vor.u32 %v1244, %v1247
      %v1249 = vsel %vm1196, %v1239, %v1248
      %v1251 = vsel %vm306, %v1213, 0
      %v1254 = vsel %vm306, %v1222, 0
      %v1257 = vsel %vm306, %v1231, 0
      %v1260 = vsel %vm306, %v1240, 0
      %v1263 = vsel %vm306, %v1249, 0
      %v1266 = vsel %vm322, %v1192, 0
      %1268 = vmatprep.subr.bf16.mxu0 0
      %1269 = vmatpush1.bf16.msra.mxu0 %v1266
      %1270 = vmatprep.subr.bf16.mxu0 0
      %1271 = vmatpush1.bf16.msra.mxu0 0
      %1272 = vmatprep.subr.bf16.mxu0 0
      %1273 = vmatpush1.bf16.msra.mxu0 0
      %1274 = vmatprep.subr.bf16.mxu0 0
      %1275 = vmatpush1.bf16.msra.mxu0 0
      %1276 = vmatprep.subr.bf16.mxu0 0
      %1277 = vmatpush1.bf16.msra.mxu0 0
      %1278 = vmatprep.subr.bf16.mxu0 0
      %1279 = vmatpush1.bf16.msra.mxu0 0
      %1280 = vmatprep.subr.bf16.mxu0 0
      %1281 = vmatpush1.bf16.msra.mxu0 0
      %1282 = vmatprep.subr.bf16.mxu0 0
      %1283 = vmatpush1.bf16.msra.mxu0 0
      %1284 = vmatprep.subr.bf16.mxu0 0
      %1285 = vmatpush1.bf16.msra.mxu0 0
      %1286 = vmatprep.subr.bf16.mxu0 0
      %1287 = vmatpush1.bf16.msra.mxu0 0
      %1288 = vmatprep.subr.bf16.mxu0 0
      %1289 = vmatpush1.bf16.msra.mxu0 0
      %1290 = vmatprep.subr.bf16.mxu0 0
      %1291 = vmatpush1.bf16.msra.mxu0 0
      %1292 = vmatprep.subr.bf16.mxu0 0
      %1293 = vmatpush1.bf16.msra.mxu0 0
      %1294 = vmatprep.subr.bf16.mxu0 0
      %1295 = vmatpush1.bf16.msra.mxu0 0
      %1296 = vmatprep.subr.bf16.mxu0 0
      %1297 = vmatpush1.bf16.msra.mxu0 0
      %1298 = vmatprep.subr.bf16.mxu0 0
      %1299 = vmatpush1.bf16.msra.mxu0 0
      %1300 = vmatprep.mubr.bf16.mxu0 0
      %1301 = vmatmul.mubr.bf16.gmra.mrb[0].mxu0 %v1251
      %v1302 = vpop.f32.mrb[0].mxu0
      %v1303 = vadd.f32 0.0, %v1302
      %v1304 = vpop.f32.mrb[0].mxu0
      %v1305 = vpop.f32.mrb[0].mxu0
      %v1306 = vadd.f32 0.0, %v1305
      %v1307 = vpop.f32.mrb[0].mxu0
      %1308 = vmatprep.mubr.bf16.mxu0 0
      %1309 = vmatmul.mubr.bf16.gmra.mrb[0].mxu0 %v1254
      %v1310 = vpop.f32.mrb[0].mxu0
      %v1311 = vadd.f32 0.0, %v1310
      %v1312 = vpop.f32.mrb[0].mxu0
      %v1313 = vpop.f32.mrb[0].mxu0
      %v1314 = vadd.f32 0.0, %v1313
      %v1315 = vpop.f32.mrb[0].mxu0
      %1316 = vmatprep.mubr.bf16.mxu0 0
      %1317 = vmatmul.mubr.bf16.gmra.mrb[0].mxu0 %v1257
      %v1318 = vpop.f32.mrb[0].mxu0
      %v1319 = vadd.f32 0.0, %v1318
      %v1320 = vpop.f32.mrb[0].mxu0
      %v1321 = vpop.f32.mrb[0].mxu0
      %v1322 = vadd.f32 0.0, %v1321
      %v1323 = vpop.f32.mrb[0].mxu0
      %1324 = vmatprep.mubr.bf16.mxu0 0
      %1325 = vmatmul.mubr.bf16.gmra.mrb[0].mxu0 %v1260
      %v1326 = vpop.f32.mrb[0].mxu0
      %v1327 = vadd.f32 0.0, %v1326
      %v1328 = vpop.f32.mrb[0].mxu0
      %v1329 = vpop.f32.mrb[0].mxu0
      %v1330 = vadd.f32 0.0, %v1329
      %v1331 = vpop.f32.mrb[0].mxu0
      %1332 = vmatprep.mubr.bf16.mxu0 0
      %1333 = vmatmul.mubr.bf16.gmra.mrb[0].mxu0 %v1263
      %v1334 = vpop.f32.mrb[0].mxu0
      %v1335 = vadd.f32 0.0, %v1334
      %v1336 = vpop.f32.mrb[0].mxu0
      %v1337 = vpop.f32.mrb[0].mxu0
      %v1338 = vadd.f32 0.0, %v1337
      %v1339 = vpop.f32.mrb[0].mxu0
      %1340 = vdwg.mxu0
      %v1341 = vadd.f32 %v1180, %v1303
      %v1342 = vadd.f32 %v1181, %v1306
      %v1343 = vadd.f32 %v1182, %v1311
      %v1344 = vadd.f32 %v1183, %v1314
      %v1345 = vadd.f32 %v1184, %v1319
      %v1346 = vadd.f32 %v1185, %v1322
      %v1347 = vadd.f32 %v1186, %v1327
      %v1348 = vadd.f32 %v1187, %v1330
      %v1349 = vadd.f32 %v1188, %v1335
      %v1350 = vadd.f32 %v1189, %v1338
      %v1351 = vld [vmem:[%s207 + $0x8] sm:$0x8]
      %s1352 = scalar_lea.vmem %s1, 32
      %v1353 = vld [vmem:[%s1352] sm:$0xf]
      %v1355 = vunpack.c.l.b16 %v1351
      %v1356 = vpack.c.b16 %v1062, %v1355
      %vm1357 = vcmask 1044480
      %v1358 = vrot.slane %v1356, 3
      %v1359 = vrot.slane %v1073, 3
      %v1360 = vsel %vm1357, %v1358, %v1359
      %v1361 = vrot.slane %v1074, 3
      %v1362 = vsel %vm1357, %v1359, %v1361
      %v1363 = vrot.slane %v1075, 3
      %v1364 = vsel %vm1357, %v1361, %v1363
      %v1365 = vrot.slane %v1076, 3
      %v1366 = vsel %vm1357, %v1363, %v1365
      %v1367 = vrot.slane %v1195, 3
      %v1368 = vsel %vm1357, %v1365, %v1367
      %v1370 = vsel %vm306, %v1360, 0
      %v1373 = vsel %vm306, %v1362, 0
      %v1376 = vsel %vm306, %v1364, 0
      %v1379 = vsel %vm306, %v1366, 0
      %v1382 = vsel %vm306, %v1368, 0
      %v1385 = vsel %vm322, %v1353, 0
      %1387 = vmatprep.subr.bf16.mxu0 0
      %1388 = vmatpush1.bf16.msra.mxu0 %v1385
      %1389 = vmatprep.subr.bf16.mxu0 0
      %1390 = vmatpush1.bf16.msra.mxu0 0
      %1391 = vmatprep.subr.bf16.mxu0 0
      %1392 = vmatpush1.bf16.msra.mxu0 0
      %1393 = vmatprep.subr.bf16.mxu0 0
      %1394 = vmatpush1.bf16.msra.mxu0 0
      %1395 = vmatprep.subr.bf16.mxu0 0
      %1396 = vmatpush1.bf16.msra.mxu0 0
      %1397 = vmatprep.subr.bf16.mxu0 0
      %1398 = vmatpush1.bf16.msra.mxu0 0
      %1399 = vmatprep.subr.bf16.mxu0 0
      %1400 = vmatpush1.bf16.msra.mxu0 0
      %1401 = vmatprep.subr.bf16.mxu0 0
      %1402 = vmatpush1.bf16.msra.mxu0 0
      %1403 = vmatprep.subr.bf16.mxu0 0
      %1404 = vmatpush1.bf16.msra.mxu0 0
      %1405 = vmatprep.subr.bf16.mxu0 0
      %1406 = vmatpush1.bf16.msra.mxu0 0
      %1407 = vmatprep.subr.bf16.mxu0 0
      %1408 = vmatpush1.bf16.msra.mxu0 0
      %1409 = vmatprep.subr.bf16.mxu0 0
      %1410 = vmatpush1.bf16.msra.mxu0 0
      %1411 = vmatprep.subr.bf16.mxu0 0
      %1412 = vmatpush1.bf16.msra.mxu0 0
      %1413 = vmatprep.subr.bf16.mxu0 0
      %1414 = vmatpush1.bf16.msra.mxu0 0
      %1415 = vmatprep.subr.bf16.mxu0 0
      %1416 = vmatpush1.bf16.msra.mxu0 0
      %1417 = vmatprep.subr.bf16.mxu0 0
      %1418 = vmatpush1.bf16.msra.mxu0 0
      %1419 = vmatprep.mubr.bf16.mxu0 0
      %1420 = vmatmul.mubr.bf16.gmra.mrb[0].mxu0 %v1370
      %v1421 = vpop.f32.mrb[0].mxu0
      %v1422 = vadd.f32 0.0, %v1421
      %v1423 = vpop.f32.mrb[0].mxu0
      %v1424 = vpop.f32.mrb[0].mxu0
      %v1425 = vadd.f32 0.0, %v1424
      %v1426 = vpop.f32.mrb[0].mxu0
      %1427 = vmatprep.mubr.bf16.mxu0 0
      %1428 = vmatmul.mubr.bf16.gmra.mrb[0].mxu0 %v1373
      %v1429 = vpop.f32.mrb[0].mxu0
      %v1430 = vadd.f32 0.0, %v1429
      %v1431 = vpop.f32.mrb[0].mxu0
      %v1432 = vpop.f32.mrb[0].mxu0
      %v1433 = vadd.f32 0.0, %v1432
      %v1434 = vpop.f32.mrb[0].mxu0
      %1435 = vmatprep.mubr.bf16.mxu0 0
      %1436 = vmatmul.mubr.bf16.gmra.mrb[0].mxu0 %v1376
      %v1437 = vpop.f32.mrb[0].mxu0
      %v1438 = vadd.f32 0.0, %v1437
      %v1439 = vpop.f32.mrb[0].mxu0
      %v1440 = vpop.f32.mrb[0].mxu0
      %v1441 = vadd.f32 0.0, %v1440
      %v1442 = vpop.f32.mrb[0].mxu0
      %1443 = vmatprep.mubr.bf16.mxu0 0
      %1444 = vmatmul.mubr.bf16.gmra.mrb[0].mxu0 %v1379
      %v1445 = vpop.f32.mrb[0].mxu0
      %v1446 = vadd.f32 0.0, %v1445
      %v1447 = vpop.f32.mrb[0].mxu0
      %v1448 = vpop.f32.mrb[0].mxu0
      %v1449 = vadd.f32 0.0, %v1448
      %v1450 = vpop.f32.mrb[0].mxu0
      %1451 = vmatprep.mubr.bf16.mxu0 0
      %1452 = vmatmul.mubr.bf16.gmra.mrb[0].mxu0 %v1382
      %v1453 = vpop.f32.mrb[0].mxu0
      %v1454 = vadd.f32 0.0, %v1453
      %v1455 = vpop.f32.mrb[0].mxu0
      %v1456 = vpop.f32.mrb[0].mxu0
      %v1457 = vadd.f32 0.0, %v1456
      %v1458 = vpop.f32.mrb[0].mxu0
      %1459 = vdwg.mxu0
      %v1460 = vadd.f32 %v1341, %v1422
      %v1461 = vadd.f32 %v1342, %v1425
      %v1462 = vadd.f32 %v1343, %v1430
      %v1463 = vadd.f32 %v1344, %v1433
      %v1464 = vadd.f32 %v1345, %v1438
      %v1465 = vadd.f32 %v1346, %v1441
      %v1466 = vadd.f32 %v1347, %v1446
      %v1467 = vadd.f32 %v1348, %v1449
      %v1468 = vadd.f32 %v1349, %v1454
      %v1469 = vadd.f32 %v1350, %v1457
      %v1470 = vld [vmem:[%s2] sm:$0x1]
      %v1472 = vlaneseq
      %v1473 = vshrl.u32 %v1472, 7
      %v1474 = vsub.s32 0, %v1473
      %v1475 = vrot.slane %v1470, %v1474
      %v1477 = vadd.f32 %v1460, %v1475
      %v1478 = vadd.f32 %v1461, %v1475
      %v1479 = vadd.f32 %v1462, %v1475
      %v1480 = vadd.f32 %v1463, %v1475
      %v1481 = vadd.f32 %v1464, %v1475
      %v1482 = vadd.f32 %v1465, %v1475
      %v1483 = vadd.f32 %v1466, %v1475
      %v1484 = vadd.f32 %v1467, %v1475
      %v1485 = vadd.f32 %v1468, %v1475
      %v1486 = vadd.f32 %v1469, %v1475
      %v1487 = vld [vmem:[%s212] sm:$0xff]
      %v1488 = vld [vmem:[%s212 + $0x8] sm:$0xff]
      %v1489 = vld [vmem:[%s212 + $0x10] sm:$0xff]
      %v1490 = vld [vmem:[%s212 + $0x18] sm:$0xff]
      %v1491 = vld [vmem:[%s212 + $0x20] sm:$0xff]
      %v1492 = vld [vmem:[%s212 + $0x28] sm:$0xff]
      %v1493 = vld [vmem:[%s212 + $0x30] sm:$0xff]
      %v1494 = vld [vmem:[%s212 + $0x38] sm:$0xff]
      %v1495 = vld [vmem:[%s212 + $0x40] sm:$0xff]
      %v1496 = vld [vmem:[%s212 + $0x48] sm:$0xff]
      %v1497 = vadd.f32 %v1477, %v1487
      %v1498 = vadd.f32 %v1478, %v1488
      %v1499 = vadd.f32 %v1479, %v1489
      %v1500 = vadd.f32 %v1480, %v1490
      %v1501 = vadd.f32 %v1481, %v1491
      %v1502 = vadd.f32 %v1482, %v1492
      %v1503 = vadd.f32 %v1483, %v1493
      %v1504 = vadd.f32 %v1484, %v1494
      %v1505 = vadd.f32 %v1485, %v1495
      %v1506 = vadd.f32 %v1486, %v1496
      %v1507 = vmax.f32 %v1497, 0.0
      %v1508 = vmax.f32 %v1498, 0.0
      %v1509 = vmax.f32 %v1499, 0.0
      %v1510 = vmax.f32 %v1500, 0.0
      %v1511 = vmax.f32 %v1501, 0.0
      %v1512 = vmax.f32 %v1502, 0.0
      %v1513 = vmax.f32 %v1503, 0.0
      %v1514 = vmax.f32 %v1504, 0.0
      %v1515 = vmax.f32 %v1505, 0.0
      %v1516 = vmax.f32 %v1506, 0.0
      %1517 = vst.msk [vmem:[%s217] sm:$0xff] %vm306, %v1507
      %1518 = vst.msk [vmem:[%s217 + $0x8] sm:$0xff] %vm306, %v1508
      %1519 = vst.msk [vmem:[%s217 + $0x10] sm:$0xff] %vm306, %v1509
      %1520 = vst.msk [vmem:[%s217 + $0x18] sm:$0xff] %vm306, %v1510
      %1521 = vst.msk [vmem:[%s217 + $0x20] sm:$0xff] %vm306, %v1511
      %1522 = vst.msk [vmem:[%s217 + $0x28] sm:$0xff] %vm306, %v1512
      %1523 = vst.msk [vmem:[%s217 + $0x30] sm:$0xff] %vm306, %v1513
      %1524 = vst.msk [vmem:[%s217 + $0x38] sm:$0xff] %vm306, %v1514
      %1525 = vst.msk [vmem:[%s217 + $0x40] sm:$0xff] %vm306, %v1515
      %1526 = vst.msk [vmem:[%s217 + $0x48] sm:$0xff] %vm306, %v1516
      %p1527 = scmp.lt.s32.totalorder %s15, 1
      %s1528 = scalar_select %p1527, %s15, 1
      %s1529 = smul.addr %s1528, 10
      %s1530 = smul.addr %s1529, 8
      %s1531 = scalar_lea.vmem %s4, %s1530
      // Predicated region
      $region37: #{basic_block_forward.3} parent=35 // pred_check
        %p1532 = pneg %p127
      $region38: #{basic_block_forward.3} parent=35 // pred_check_branch
        %1534 = sbr.rel (%p1532) target = $region40
      $region39: #{basic_block_forward.3} parent=35 // pred_region
        _
      $region40: #{basic_block_forward.3} parent=35 // pred_fallthru
        _
    $region36: #{basic_block_forward.3} parent=5 // pred_fallthru
      _
    %p1535 = scmp.le.s32.totalorder 2, %s10
    // Predicated region
    $region41: #{basic_block_forward.3} parent=5 // pred_check
      %p1536 = pneg %p1535
    $region42: #{basic_block_forward.3} parent=5 // pred_check_branch
      %1538 = sbr.rel (%p1536) target = $region44
    $region43: #{basic_block_forward.3} parent=5 // pred_region
      %s1539 = ssub.s32 %s10, 2
      // Predicated region
      $region45: #{basic_block_forward.3} parent=43 // pred_check
        %p1540 = pneg %p133
      $region46: #{basic_block_forward.3} parent=43 // pred_check_branch
        %1542 = sbr.rel (%p1540) target = $region48
      $region47: #{basic_block_forward.3} parent=43 // pred_region
        %p1543 = scmp.lt.s32.totalorder %s16, 1
        %s1544 = scalar_select %p1543, %s16, 1
        %s1545 = smul.addr %s1544, 10
        %s1546 = smul.addr %s1545, 8
        %s1547 = scalar_lea.vmem %s4, %s1546
      $region48: #{basic_block_forward.3} parent=43 // pred_fallthru
        _
    $region44: #{basic_block_forward.3} parent=5 // pred_fallthru
      _
  $region6: #{basic_block_forward.3} parent=0 // loop_footer
    %s14 = sadd.s32 1, %s10
  $region7: #{basic_block_forward.3} parent=0 // loop_footer_branch
    %9 = sbr.rel target = $region3
  $region8: #{basic_block_forward.3} parent=0 // loop_exit
    _

</llo_original>
